<compile_context>
chip_gen: v6e
topology: v6e:2x2x1
jax: 0.10.0
libtpu: 0.0.40
codegen_flags: <defaults>
</compile_context>

<pallas_src>
import functools

import jax
import jax.numpy as jnp
from jax import lax
from jax.experimental import pallas as pl
from jax.experimental.pallas import tpu as pltpu


def _sigmoid(x):
    # Explicit formulation (exp + divide) for robust Mosaic lowering; math in f32.
    return 1.0 / (1.0 + jnp.exp(-x))


def _decoder_kernel(hist_ref, lat_ref, h0_ref,
                    wobs_ref, wlat_ref, blin_ref,
                    wih_ref, whh_ref, bgi_ref, bhhn_ref,
                    wout_ref, bout_ref,
                    y_ref, hn_ref,
                    seq_scr, gi_scr,
                    *, L, H, S, TB, O, compute_dtype, unroll):
    """One batch tile of the decoder.

    hist_ref : (S, TB, D_obs)   time-major history slice
    lat_ref  : (TB, D_lat)      latent slice
    h0_ref   : (L, TB, H)       initial hidden
    wobs_ref : (D_obs, H)       first-Linear rows for the history part (transposed)
    wlat_ref : (D_lat, H)       first-Linear rows for the latent part (transposed)
    blin_ref : (1, H)
    wih_ref  : (L, H, 3H)       GRU W_ih, gates concat [r|z|n] along lanes
    whh_ref  : (L, H, 3H)       GRU W_hh, gates concat [r|z|n] along lanes
    bgi_ref  : (L, 1, 3H)       b_ih + [b_hh_r | b_hh_z | 0]   (folded in wrapper)
    bhhn_ref : (L, 1, H)        b_hh_n (stays on the per-step path)
    wout_ref : (H, O)           output Linear weight (transposed)
    bout_ref : (1, O)
    y_ref    : (S, TB, O)       decoded output (time-major; wrapper transposes back)
    hn_ref   : (L, TB, H)       final hidden per layer
    seq_scr  : (S, TB, H)  f32  current layer input/output sequence (VMEM)
    gi_scr   : (S, TB, 3H) f32  hoisted fused input-projection gates (VMEM)
    """
    cdt = compute_dtype

    # ---- Fused concat + Linear + ReLU ----
    # Latent projected ONCE per sequence (b_lin folded in); no concat/tile materialized.
    lat_base = (jnp.dot(lat_ref[...].astype(cdt), wlat_ref[...].astype(cdt),
                        preferred_element_type=jnp.float32)
                + blin_ref[...])                                    # (TB, H) f32
    wobs = wobs_ref[...].astype(cdt)
    for t in range(S):                                              # static, small
        xt = jnp.dot(hist_ref[t].astype(cdt), wobs,
                     preferred_element_type=jnp.float32)            # (TB, H)
        seq_scr[t] = jnp.maximum(xt + lat_base, 0.0)

    # ---- Stacked GRU ----
    for l in range(L):                                              # static, small
        wih_l = wih_ref[l].astype(cdt)                              # (H, 3H)
        whh_l = whh_ref[l].astype(cdt)                              # (H, 3H)
        # Hoisted broadcasts (JAX does not CSE broadcast_in_dim inside loops).
        bgi_l = jnp.broadcast_to(bgi_ref[l], (TB, 3 * H))           # b_ih + b_hh_{r,z}
        bhhn_l = jnp.broadcast_to(bhhn_ref[l], (TB, H))             # b_hh_n

        # Hoisted input projection: one fused 3-gate dot per timestep, off the
        # serial recurrence path.
        for t in range(S):                                          # static
            gi_scr[t] = (jnp.dot(seq_scr[t].astype(cdt), wih_l,
                                 preferred_element_type=jnp.float32)
                         + bgi_l)

        def step(t, h, whh_l=whh_l, bhhn_l=bhhn_l):
            # Single (TB,H)x(H,3H) MXU dot on the critical path (was 3 dots).
            gh = jnp.dot(h.astype(cdt), whh_l,
                         preferred_element_type=jnp.float32)        # (TB, 3H)
            gi = gi_scr[t]                                          # (TB, 3H)
            rz = _sigmoid(gi[:, :2 * H] + gh[:, :2 * H])            # r|z in one pass
            r = rz[:, :H]
            z = rz[:, H:]
            n = jnp.tanh(gi[:, 2 * H:] + r * (gh[:, 2 * H:] + bhhn_l))
            h_new = n + z * (h - n)                                 # == (1-z)*n + z*h
            seq_scr[t] = h_new                                      # feed next layer
            return h_new

        # Fully unrolled while H is small; capped unroll at larger H (vreg guard).
        hn_ref[l] = lax.fori_loop(0, S, step, h0_ref[l], unroll=unroll)

    # ---- tanh -> dropout (eval-mode identity) -> output Linear ----
    # TODO(synk): nn.Dropout(p=0.5) training-mode random masking is not implemented
    # (forward is treated as eval mode, i.e. identity).
    wout = wout_ref[...].astype(cdt)
    bout = jnp.broadcast_to(bout_ref[...], (TB, O))
    for t in range(S):                                              # static
        act = jnp.tanh(seq_scr[t]).astype(cdt)                      # (TB, H)
        y_ref[t] = jnp.dot(act, wout, preferred_element_type=jnp.float32) + bout


def _tensorcores_per_chip():
    """2 TensorCores per chip on v7x / v4 / v5p; 1 on v5e / v6e."""
    try:
        kind = jax.devices()[0].device_kind.lower().replace(" ", "")
    except Exception:
        return 1
    if any(tag in kind for tag in ("v7", "7x", "v4", "v5p")):
        return 2
    return 1


def behavior_latent_decoder_forward(curr_history, prev_latent, hidden, params,
                                    *, batch_tile=None, use_bf16=True):
    """curr_history: (n_thread, n_veh, S, d_obs), prev_latent: (n_thread, n_veh, d_lat),
    hidden: (L, n_thread*n_veh, H).  Returns (outputs (B, S, O), hidden (L, B, H))."""
    n_thread, n_veh, S, d_obs = curr_history.shape
    d_lat = prev_latent.shape[-1]
    L, B, H = hidden.shape
    assert B == n_thread * n_veh
    (w_obs, w_lat, b_lin, w_ih, w_hh, b_ih, b_hh, w_out, b_out) = params
    O = w_out.shape[-1]

    # ---- Parameter plumbing (XLA side, once): gate-concat [r|z|n] along lanes and
    # fold b_hh_r / b_hh_z into the hoisted input-projection bias. ----
    w_ih_cat = jnp.transpose(w_ih, (0, 2, 1, 3)).reshape(L, H, 3 * H)
    w_hh_cat = jnp.transpose(w_hh, (0, 2, 1, 3)).reshape(L, H, 3 * H)
    b_ih_cat = jnp.transpose(b_ih, (0, 2, 1, 3)).reshape(L, 1, 3 * H)
    b_hh_cat = jnp.transpose(b_hh, (0, 2, 1, 3)).reshape(L, 1, 3 * H)
    b_gi = b_ih_cat + jnp.concatenate(
        [b_hh_cat[:, :, :2 * H], jnp.zeros((L, 1, H), b_hh_cat.dtype)], axis=-1)
    b_hh_n = b_hh_cat[:, :, 2 * H:]

    # Layout plumbing: flatten (thread, vehicle) -> batch and go time-major so the
    # kernel never transposes.
    hist = jnp.transpose(curr_history.reshape(B, S, d_obs), (1, 0, 2))   # (S, B, d_obs)
    lat = prev_latent.reshape(B, d_lat)

    # Generation-specific batch tiling: one tile on single-TC chips (v5e/v6e) so the
    # serial S*L recurrence runs exactly once; split across TensorCores on 2-TC chips.
    if batch_tile is None:
        ncores = _tensorcores_per_chip()
        batch_tile = B
        if ncores > 1 and B % ncores == 0 and (B // ncores) % 8 == 0:
            batch_tile = B // ncores
    TB = batch_tile
    assert B % TB == 0 and TB % 8 == 0, "batch tile must keep >=8 sublanes"
    grid = (B // TB,)

    # Vreg-pressure guard on the unrolled recurrence (review item).
    unroll = True if H <= 64 else 4

    kernel = functools.partial(
        _decoder_kernel, L=L, H=H, S=S, TB=TB, O=O,
        compute_dtype=(jnp.bfloat16 if use_bf16 else jnp.float32), unroll=unroll)

    def _full(shape):
        zeros = (0,) * len(shape)
        return pl.BlockSpec(shape, lambda b, _z=zeros: _z)

    # NOTE: weight/bias specs keep default double-buffering; pl.Buffered(1) skipped
    # (negligible VMEM at these sizes, per review).
    y_sbo, h_n = pl.pallas_call(
        kernel,
        out_shape=(jax.ShapeDtypeStruct((S, B, O), jnp.float32),
                   jax.ShapeDtypeStruct((L, B, H), jnp.float32)),
        grid=grid,
        in_specs=[
            pl.BlockSpec((S, TB, d_obs), lambda b: (0, b, 0)),   # history (time-major)
            pl.BlockSpec((TB, d_lat), lambda b: (b, 0)),         # latent
            pl.BlockSpec((L, TB, H), lambda b: (0, b, 0)),       # h0
            _full((d_obs, H)),                                   # W_lin (history rows)
            _full((d_lat, H)),                                   # W_lin (latent rows)
            _full((1, H)),                                       # b_lin
            _full((L, H, 3 * H)),                                # W_ih  [r|z|n]
            _full((L, H, 3 * H)),                                # W_hh  [r|z|n]
            _full((L, 1, 3 * H)),                                # b_ih + b_hh_{r,z}
            _full((L, 1, H)),                                    # b_hh_n
            _full((H, O)),                                       # W_out
            _full((1, O)),                                       # b_out
        ],
        out_specs=(pl.BlockSpec((S, TB, O), lambda b: (0, b, 0)),
                   pl.BlockSpec((L, TB, H), lambda b: (0, b, 0))),
        scratch_shapes=[pltpu.VMEM((S, TB, H), jnp.float32),     # layer sequence
                        pltpu.VMEM((S, TB, 3 * H), jnp.float32)],  # fused gi gates
        compiler_params=pltpu.CompilerParams(
            dimension_semantics=("parallel",)),                  # batch tiles independent
    )(hist, lat, hidden, w_obs, w_lat, b_lin,
      w_ih_cat, w_hh_cat, b_gi, b_hh_n, w_out, b_out)

    outputs = jnp.transpose(y_sbo, (1, 0, 2))    # back to batch_first (B, S, O)
    return outputs, h_n


def _reference_forward(curr_history, prev_latent, hidden, params,
                       cast_dtype=jnp.float32):
    """Pure-JAX reference mirroring the PyTorch module (dropout in eval mode).
    `cast_dtype=jnp.bfloat16` mirrors the kernel's bf16 MXU operands exactly."""
    (w_obs, w_lat, b_lin, w_ih, w_hh, b_ih, b_hh, w_out, b_out) = params
    n_thread, n_veh, S, d_obs = curr_history.shape
    d_lat = prev_latent.shape[-1]
    L, B, H = hidden.shape

    def mm(a, b):
        return jnp.dot(a.astype(cast_dtype), b.astype(cast_dtype),
                       preferred_element_type=jnp.float32)

    lat = jnp.tile(prev_latent.reshape(n_thread, n_veh, 1, d_lat), (1, 1, S, 1))
    dec_in = jnp.concatenate([curr_history, lat], axis=-1).reshape(B, S, d_obs + d_lat)
    w_lin = jnp.concatenate([w_obs, w_lat], axis=0)                    # (d_obs+d_lat, H)
    seq = jnp.maximum(mm(dec_in, w_lin) + b_lin, 0.0)                  # (B, S, H)

    finals = []
    for l in range(L):
        h = hidden[l]
        outs = []
        for t in range(S):
            xt = seq[:, t, :]
            gi_r = mm(xt, w_ih[l, 0]) + b_ih[l, 0]
            gi_z = mm(xt, w_ih[l, 1]) + b_ih[l, 1]
            gi_n = mm(xt, w_ih[l, 2]) + b_ih[l, 2]
            gh_r = mm(h, w_hh[l, 0]) + b_hh[l, 0]
            gh_z = mm(h, w_hh[l, 1]) + b_hh[l, 1]
            gh_n = mm(h, w_hh[l, 2]) + b_hh[l, 2]
            r = jax.nn.sigmoid(gi_r + gh_r)
            z = jax.nn.sigmoid(gi_z + gh_z)
            n = jnp.tanh(gi_n + r * gh_n)
            h = (1.0 - z) * n + z * h
            outs.append(h)
        seq = jnp.stack(outs, axis=1)
        finals.append(h)

    dec_out = jnp.tanh(seq)                 # tanh; dropout = identity in eval mode
    out = mm(dec_out, w_out) + b_out
    return out, jnp.stack(finals, axis=0)


def _init_params(key, obs_dim, latent_dim, hidden_size, num_layers, output_size):
    """Deterministic synthetic parameters (shapes match nn.Linear + nn.GRU + nn.Linear,
    stored pre-transposed / gate-major; the wrapper lane-concats gates)."""
    ks = jax.random.split(key, 9)
    s = 0.2
    w_obs = s * jax.random.normal(ks[0], (obs_dim, hidden_size), jnp.float32)
    w_lat = s * jax.random.normal(ks[1], (latent_dim, hidden_size), jnp.float32)
    b_lin = s * jax.random.normal(ks[2], (1, hidden_size), jnp.float32)
    w_ih = s * jax.random.normal(ks[3], (num_layers, 3, hidden_size, hidden_size),
                                 jnp.float32)
    w_hh = s * jax.random.normal(ks[4], (num_layers, 3, hidden_size, hidden_size),
                                 jnp.float32)
    b_ih = s * jax.random.normal(ks[5], (num_layers, 3, 1, hidden_size), jnp.float32)
    b_hh = s * jax.random.normal(ks[6], (num_layers, 3, 1, hidden_size), jnp.float32)
    w_out = s * jax.random.normal(ks[7], (hidden_size, output_size), jnp.float32)
    b_out = s * jax.random.normal(ks[8], (1, output_size), jnp.float32)
    return (w_obs, w_lat, b_lin, w_ih, w_hh, b_ih, b_hh, w_out, b_out)


if __name__ == "__main__":
    N_THREAD, N_VEH, S, D_OBS, D_LAT = 2, 8, 8, 4, 4
    H, L, O = 32, 2, 16
    B = N_THREAD * N_VEH   # 16

    key = jax.random.PRNGKey(0)
    k_hist, k_lat, k_h, k_p = jax.random.split(key, 4)
    curr_history = jax.random.normal(k_hist, (N_THREAD, N_VEH, S, D_OBS), jnp.float32)
    prev_latent = jax.random.normal(k_lat, (N_THREAD, N_VEH, D_LAT), jnp.float32)
    hidden = jax.random.normal(k_h, (L, B, H), jnp.float32)
    params = _init_params(k_p, D_OBS, D_LAT, H, L, O)

    outputs, h_n = behavior_latent_decoder_forward(
        curr_history, prev_latent, hidden, params)   # auto batch tile, bf16 MXU operands
    outputs = jax.block_until_ready(outputs)
    h_n = jax.block_until_ready(h_n)
    assert outputs.shape == (B, S, O)
    assert h_n.shape == (L, B, H)

    # Tight check vs a reference using the same bf16 MXU operands (exactness of the
    # kernel's gate fusion / bias folding / layout plumbing).
    ref_out_bf, ref_h_bf = _reference_forward(curr_history, prev_latent, hidden,
                                              params, cast_dtype=jnp.bfloat16)
    assert jnp.allclose(outputs, ref_out_bf, atol=2e-3, rtol=2e-3), "outputs vs bf16 ref"
    assert jnp.allclose(h_n, ref_h_bf, atol=2e-3, rtol=2e-3), "hidden vs bf16 ref"

    # Semantic check vs the strict f32 PyTorch-equivalent reference (tolerance bounds
    # the expected bf16-MXU drift accumulated over the S*L recurrence).
    ref_out, ref_h = _reference_forward(curr_history, prev_latent, hidden, params)
    assert jnp.allclose(outputs, ref_out, atol=5e-2, rtol=5e-2), "outputs vs f32 ref"
    assert jnp.allclose(h_n, ref_h, atol=5e-2, rtol=5e-2), "hidden vs f32 ref"

    print("KERNEL_OK")
</pallas_src>

<mosaic_0001>
module attributes {stable_mosaic.version = 11 : i64} {
  func.func @_decoder_kernel(%arg0: i32, %arg1: memref<8x16x4xf32, #tpu.memory_space<vmem>>, %arg2: memref<16x4xf32, #tpu.memory_space<vmem>>, %arg3: memref<2x16x32xf32, #tpu.memory_space<vmem>>, %arg4: memref<4x32xf32, #tpu.memory_space<vmem>>, %arg5: memref<4x32xf32, #tpu.memory_space<vmem>>, %arg6: memref<1x32xf32, #tpu.memory_space<vmem>>, %arg7: memref<2x32x96xf32, #tpu.memory_space<vmem>>, %arg8: memref<2x32x96xf32, #tpu.memory_space<vmem>>, %arg9: memref<2x1x96xf32, #tpu.memory_space<vmem>>, %arg10: memref<2x1x32xf32, #tpu.memory_space<vmem>>, %arg11: memref<32x16xf32, #tpu.memory_space<vmem>>, %arg12: memref<1x16xf32, #tpu.memory_space<vmem>>, %arg13: memref<8x16x16xf32, #tpu.memory_space<vmem>>, %arg14: memref<2x16x32xf32, #tpu.memory_space<vmem>>, %arg15: memref<8x16x32xf32, #tpu.memory_space<vmem>>, %arg16: memref<8x16x96xf32, #tpu.memory_space<vmem>>) attributes {dimension_semantics = [#tpu.dimension_semantics<parallel>], iteration_bounds = array<i64: 1>, scalar_prefetch = 0 : i64, scratch_operands = 2 : i64, tpu.core_type = #tpu.core_type<tc>, window_params = [{transform_indices = @transform_0, window_bounds = array<i64: 8, 16, 4>}, {transform_indices = @transform_1, window_bounds = array<i64: 16, 4>}, {transform_indices = @transform_2, window_bounds = array<i64: 2, 16, 32>}, {pipeline_mode = #tpu.pipeline_mode<synchronous>, transform_indices = @transform_3, window_bounds = array<i64: 4, 32>}, {pipeline_mode = #tpu.pipeline_mode<synchronous>, transform_indices = @transform_4, window_bounds = array<i64: 4, 32>}, {pipeline_mode = #tpu.pipeline_mode<synchronous>, transform_indices = @transform_5, window_bounds = array<i64: 1, 32>}, {pipeline_mode = #tpu.pipeline_mode<synchronous>, transform_indices = @transform_6, window_bounds = array<i64: 2, 32, 96>}, {pipeline_mode = #tpu.pipeline_mode<synchronous>, transform_indices = @transform_7, window_bounds = array<i64: 2, 32, 96>}, {pipeline_mode = #tpu.pipeline_mode<synchronous>, transform_indices = @transform_8, window_bounds = array<i64: 2, 1, 96>}, {pipeline_mode = #tpu.pipeline_mode<synchronous>, transform_indices = @transform_9, window_bounds = array<i64: 2, 1, 32>}, {pipeline_mode = #tpu.pipeline_mode<synchronous>, transform_indices = @transform_10, window_bounds = array<i64: 32, 16>}, {pipeline_mode = #tpu.pipeline_mode<synchronous>, transform_indices = @transform_11, window_bounds = array<i64: 1, 16>}, {transform_indices = @transform_12, window_bounds = array<i64: 8, 16, 16>}, {transform_indices = @transform_13, window_bounds = array<i64: 2, 16, 32>}]} {
    %c0 = arith.constant 0 : index
    %c0_0 = arith.constant 0 : index
    %0 = vector.load %arg2[%c0, %c0_0] : memref<16x4xf32, #tpu.memory_space<vmem>>, vector<16x4xf32>
    %1 = arith.truncf %0 : vector<16x4xf32> to vector<16x4xbf16>
    %c0_1 = arith.constant 0 : index
    %c0_2 = arith.constant 0 : index
    %2 = vector.load %arg5[%c0_1, %c0_2] : memref<4x32xf32, #tpu.memory_space<vmem>>, vector<4x32xf32>
    %3 = arith.truncf %2 : vector<4x32xf32> to vector<4x32xbf16>
    %cst = arith.constant dense<0.000000e+00> : vector<16x32xf32>
    %4 = tpu.matmul %1, %3, %cst {dimension_numbers = #tpu.dot_dimension_numbers<[1], [0], [0], [1], [0, 0, 1, 1], [], []>} : vector<16x4xbf16>, vector<4x32xbf16>, vector<16x32xf32> -> vector<16x32xf32>
    %c0_3 = arith.constant 0 : index
    %c0_4 = arith.constant 0 : index
    %5 = vector.load %arg6[%c0_3, %c0_4] : memref<1x32xf32, #tpu.memory_space<vmem>>, vector<1x32xf32>
    %6 = vector.broadcast %5 : vector<1x32xf32> to vector<16x32xf32>
    %7 = arith.addf %4, %6 : vector<16x32xf32>
    %c0_5 = arith.constant 0 : index
    %c0_6 = arith.constant 0 : index
    %8 = vector.load %arg4[%c0_5, %c0_6] : memref<4x32xf32, #tpu.memory_space<vmem>>, vector<4x32xf32>
    %9 = arith.truncf %8 : vector<4x32xf32> to vector<4x32xbf16>
    %c0_7 = arith.constant 0 : index
    %c0_8 = arith.constant 0 : index
    %c0_9 = arith.constant 0 : index
    %10 = vector.load %arg1[%c0_7, %c0_8, %c0_9] : memref<8x16x4xf32, #tpu.memory_space<vmem>>, vector<1x16x4xf32>
    %11 = vector.shape_cast %10 : vector<1x16x4xf32> to vector<16x4xf32>
    %12 = arith.truncf %11 : vector<16x4xf32> to vector<16x4xbf16>
    %cst_10 = arith.constant dense<0.000000e+00> : vector<16x32xf32>
    %13 = tpu.matmul %12, %9, %cst_10 {dimension_numbers = #tpu.dot_dimension_numbers<[1], [0], [0], [1], [0, 0, 1, 1], [], []>} : vector<16x4xbf16>, vector<4x32xbf16>, vector<16x32xf32> -> vector<16x32xf32>
    %14 = arith.addf %13, %7 : vector<16x32xf32>
    %cst_11 = arith.constant 0.000000e+00 : f32
    %15 = vector.broadcast %cst_11 : f32 to vector<16x32xf32>
    %16 = arith.maximumf %14, %15 : vector<16x32xf32>
    %c0_12 = arith.constant 0 : index
    %c0_13 = arith.constant 0 : index
    %c0_14 = arith.constant 0 : index
    %17 = vector.load %arg15[%c0_12, %c0_13, %c0_14] : memref<8x16x32xf32, #tpu.memory_space<vmem>>, vector<1x16x32xf32>
    %18 = vector.shape_cast %17 : vector<1x16x32xf32> to vector<16x32xf32>
    %19 = vector.shape_cast %16 : vector<16x32xf32> to vector<1x16x32xf32>
    tpu.vector_store %arg15[%c0_12, %c0_13, %c0_14], %19 {strides = array<i32>} : memref<8x16x32xf32, #tpu.memory_space<vmem>>, vector<1x16x32xf32>,
    %c1 = arith.constant 1 : index
    %c0_15 = arith.constant 0 : index
    %c0_16 = arith.constant 0 : index
    %20 = vector.load %arg1[%c1, %c0_15, %c0_16] : memref<8x16x4xf32, #tpu.memory_space<vmem>>, vector<1x16x4xf32>
    %21 = vector.shape_cast %20 : vector<1x16x4xf32> to vector<16x4xf32>
    %22 = arith.truncf %21 : vector<16x4xf32> to vector<16x4xbf16>
    %cst_17 = arith.constant dense<0.000000e+00> : vector<16x32xf32>
    %23 = tpu.matmul %22, %9, %cst_17 {dimension_numbers = #tpu.dot_dimension_numbers<[1], [0], [0], [1], [0, 0, 1, 1], [], []>} : vector<16x4xbf16>, vector<4x32xbf16>, vector<16x32xf32> -> vector<16x32xf32>
    %24 = arith.addf %23, %7 : vector<16x32xf32>
    %cst_18 = arith.constant 0.000000e+00 : f32
    %25 = vector.broadcast %cst_18 : f32 to vector<16x32xf32>
    %26 = arith.maximumf %24, %25 : vector<16x32xf32>
    %c1_19 = arith.constant 1 : index
    %c0_20 = arith.constant 0 : index
    %c0_21 = arith.constant 0 : index
    %27 = vector.load %arg15[%c1_19, %c0_20, %c0_21] : memref<8x16x32xf32, #tpu.memory_space<vmem>>, vector<1x16x32xf32>
    %28 = vector.shape_cast %27 : vector<1x16x32xf32> to vector<16x32xf32>
    %29 = vector.shape_cast %26 : vector<16x32xf32> to vector<1x16x32xf32>
    tpu.vector_store %arg15[%c1_19, %c0_20, %c0_21], %29 {strides = array<i32>} : memref<8x16x32xf32, #tpu.memory_space<vmem>>, vector<1x16x32xf32>,
    %c2 = arith.constant 2 : index
    %c0_22 = arith.constant 0 : index
    %c0_23 = arith.constant 0 : index
    %30 = vector.load %arg1[%c2, %c0_22, %c0_23] : memref<8x16x4xf32, #tpu.memory_space<vmem>>, vector<1x16x4xf32>
    %31 = vector.shape_cast %30 : vector<1x16x4xf32> to vector<16x4xf32>
    %32 = arith.truncf %31 : vector<16x4xf32> to vector<16x4xbf16>
    %cst_24 = arith.constant dense<0.000000e+00> : vector<16x32xf32>
    %33 = tpu.matmul %32, %9, %cst_24 {dimension_numbers = #tpu.dot_dimension_numbers<[1], [0], [0], [1], [0, 0, 1, 1], [], []>} : vector<16x4xbf16>, vector<4x32xbf16>, vector<16x32xf32> -> vector<16x32xf32>
    %34 = arith.addf %33, %7 : vector<16x32xf32>
    %cst_25 = arith.constant 0.000000e+00 : f32
    %35 = vector.broadcast %cst_25 : f32 to vector<16x32xf32>
    %36 = arith.maximumf %34, %35 : vector<16x32xf32>
    %c2_26 = arith.constant 2 : index
    %c0_27 = arith.constant 0 : index
    %c0_28 = arith.constant 0 : index
    %37 = vector.load %arg15[%c2_26, %c0_27, %c0_28] : memref<8x16x32xf32, #tpu.memory_space<vmem>>, vector<1x16x32xf32>
    %38 = vector.shape_cast %37 : vector<1x16x32xf32> to vector<16x32xf32>
    %39 = vector.shape_cast %36 : vector<16x32xf32> to vector<1x16x32xf32>
    tpu.vector_store %arg15[%c2_26, %c0_27, %c0_28], %39 {strides = array<i32>} : memref<8x16x32xf32, #tpu.memory_space<vmem>>, vector<1x16x32xf32>,
    %c3 = arith.constant 3 : index
    %c0_29 = arith.constant 0 : index
    %c0_30 = arith.constant 0 : index
    %40 = vector.load %arg1[%c3, %c0_29, %c0_30] : memref<8x16x4xf32, #tpu.memory_space<vmem>>, vector<1x16x4xf32>
    %41 = vector.shape_cast %40 : vector<1x16x4xf32> to vector<16x4xf32>
    %42 = arith.truncf %41 : vector<16x4xf32> to vector<16x4xbf16>
    %cst_31 = arith.constant dense<0.000000e+00> : vector<16x32xf32>
    %43 = tpu.matmul %42, %9, %cst_31 {dimension_numbers = #tpu.dot_dimension_numbers<[1], [0], [0], [1], [0, 0, 1, 1], [], []>} : vector<16x4xbf16>, vector<4x32xbf16>, vector<16x32xf32> -> vector<16x32xf32>
    %44 = arith.addf %43, %7 : vector<16x32xf32>
    %cst_32 = arith.constant 0.000000e+00 : f32
    %45 = vector.broadcast %cst_32 : f32 to vector<16x32xf32>
    %46 = arith.maximumf %44, %45 : vector<16x32xf32>
    %c3_33 = arith.constant 3 : index
    %c0_34 = arith.constant 0 : index
    %c0_35 = arith.constant 0 : index
    %47 = vector.load %arg15[%c3_33, %c0_34, %c0_35] : memref<8x16x32xf32, #tpu.memory_space<vmem>>, vector<1x16x32xf32>
    %48 = vector.shape_cast %47 : vector<1x16x32xf32> to vector<16x32xf32>
    %49 = vector.shape_cast %46 : vector<16x32xf32> to vector<1x16x32xf32>
    tpu.vector_store %arg15[%c3_33, %c0_34, %c0_35], %49 {strides = array<i32>} : memref<8x16x32xf32, #tpu.memory_space<vmem>>, vector<1x16x32xf32>,
    %c4 = arith.constant 4 : index
    %c0_36 = arith.constant 0 : index
    %c0_37 = arith.constant 0 : index
    %50 = vector.load %arg1[%c4, %c0_36, %c0_37] : memref<8x16x4xf32, #tpu.memory_space<vmem>>, vector<1x16x4xf32>
    %51 = vector.shape_cast %50 : vector<1x16x4xf32> to vector<16x4xf32>
    %52 = arith.truncf %51 : vector<16x4xf32> to vector<16x4xbf16>
    %cst_38 = arith.constant dense<0.000000e+00> : vector<16x32xf32>
    %53 = tpu.matmul %52, %9, %cst_38 {dimension_numbers = #tpu.dot_dimension_numbers<[1], [0], [0], [1], [0, 0, 1, 1], [], []>} : vector<16x4xbf16>, vector<4x32xbf16>, vector<16x32xf32> -> vector<16x32xf32>
    %54 = arith.addf %53, %7 : vector<16x32xf32>
    %cst_39 = arith.constant 0.000000e+00 : f32
    %55 = vector.broadcast %cst_39 : f32 to vector<16x32xf32>
    %56 = arith.maximumf %54, %55 : vector<16x32xf32>
    %c4_40 = arith.constant 4 : index
    %c0_41 = arith.constant 0 : index
    %c0_42 = arith.constant 0 : index
    %57 = vector.load %arg15[%c4_40, %c0_41, %c0_42] : memref<8x16x32xf32, #tpu.memory_space<vmem>>, vector<1x16x32xf32>
    %58 = vector.shape_cast %57 : vector<1x16x32xf32> to vector<16x32xf32>
    %59 = vector.shape_cast %56 : vector<16x32xf32> to vector<1x16x32xf32>
    tpu.vector_store %arg15[%c4_40, %c0_41, %c0_42], %59 {strides = array<i32>} : memref<8x16x32xf32, #tpu.memory_space<vmem>>, vector<1x16x32xf32>,
    %c5 = arith.constant 5 : index
    %c0_43 = arith.constant 0 : index
    %c0_44 = arith.constant 0 : index
    %60 = vector.load %arg1[%c5, %c0_43, %c0_44] : memref<8x16x4xf32, #tpu.memory_space<vmem>>, vector<1x16x4xf32>
    %61 = vector.shape_cast %60 : vector<1x16x4xf32> to vector<16x4xf32>
    %62 = arith.truncf %61 : vector<16x4xf32> to vector<16x4xbf16>
    %cst_45 = arith.constant dense<0.000000e+00> : vector<16x32xf32>
    %63 = tpu.matmul %62, %9, %cst_45 {dimension_numbers = #tpu.dot_dimension_numbers<[1], [0], [0], [1], [0, 0, 1, 1], [], []>} : vector<16x4xbf16>, vector<4x32xbf16>, vector<16x32xf32> -> vector<16x32xf32>
    %64 = arith.addf %63, %7 : vector<16x32xf32>
    %cst_46 = arith.constant 0.000000e+00 : f32
    %65 = vector.broadcast %cst_46 : f32 to vector<16x32xf32>
    %66 = arith.maximumf %64, %65 : vector<16x32xf32>
    %c5_47 = arith.constant 5 : index
    %c0_48 = arith.constant 0 : index
    %c0_49 = arith.constant 0 : index
    %67 = vector.load %arg15[%c5_47, %c0_48, %c0_49] : memref<8x16x32xf32, #tpu.memory_space<vmem>>, vector<1x16x32xf32>
    %68 = vector.shape_cast %67 : vector<1x16x32xf32> to vector<16x32xf32>
    %69 = vector.shape_cast %66 : vector<16x32xf32> to vector<1x16x32xf32>
    tpu.vector_store %arg15[%c5_47, %c0_48, %c0_49], %69 {strides = array<i32>} : memref<8x16x32xf32, #tpu.memory_space<vmem>>, vector<1x16x32xf32>,
    %c6 = arith.constant 6 : index
    %c0_50 = arith.constant 0 : index
    %c0_51 = arith.constant 0 : index
    %70 = vector.load %arg1[%c6, %c0_50, %c0_51] : memref<8x16x4xf32, #tpu.memory_space<vmem>>, vector<1x16x4xf32>
    %71 = vector.shape_cast %70 : vector<1x16x4xf32> to vector<16x4xf32>
    %72 = arith.truncf %71 : vector<16x4xf32> to vector<16x4xbf16>
    %cst_52 = arith.constant dense<0.000000e+00> : vector<16x32xf32>
    %73 = tpu.matmul %72, %9, %cst_52 {dimension_numbers = #tpu.dot_dimension_numbers<[1], [0], [0], [1], [0, 0, 1, 1], [], []>} : vector<16x4xbf16>, vector<4x32xbf16>, vector<16x32xf32> -> vector<16x32xf32>
    %74 = arith.addf %73, %7 : vector<16x32xf32>
    %cst_53 = arith.constant 0.000000e+00 : f32
    %75 = vector.broadcast %cst_53 : f32 to vector<16x32xf32>
    %76 = arith.maximumf %74, %75 : vector<16x32xf32>
    %c6_54 = arith.constant 6 : index
    %c0_55 = arith.constant 0 : index
    %c0_56 = arith.constant 0 : index
    %77 = vector.load %arg15[%c6_54, %c0_55, %c0_56] : memref<8x16x32xf32, #tpu.memory_space<vmem>>, vector<1x16x32xf32>
    %78 = vector.shape_cast %77 : vector<1x16x32xf32> to vector<16x32xf32>
    %79 = vector.shape_cast %76 : vector<16x32xf32> to vector<1x16x32xf32>
    tpu.vector_store %arg15[%c6_54, %c0_55, %c0_56], %79 {strides = array<i32>} : memref<8x16x32xf32, #tpu.memory_space<vmem>>, vector<1x16x32xf32>,
    %c7 = arith.constant 7 : index
    %c0_57 = arith.constant 0 : index
    %c0_58 = arith.constant 0 : index
    %80 = vector.load %arg1[%c7, %c0_57, %c0_58] : memref<8x16x4xf32, #tpu.memory_space<vmem>>, vector<1x16x4xf32>
    %81 = vector.shape_cast %80 : vector<1x16x4xf32> to vector<16x4xf32>
    %82 = arith.truncf %81 : vector<16x4xf32> to vector<16x4xbf16>
    %cst_59 = arith.constant dense<0.000000e+00> : vector<16x32xf32>
    %83 = tpu.matmul %82, %9, %cst_59 {dimension_numbers = #tpu.dot_dimension_numbers<[1], [0], [0], [1], [0, 0, 1, 1], [], []>} : vector<16x4xbf16>, vector<4x32xbf16>, vector<16x32xf32> -> vector<16x32xf32>
    %84 = arith.addf %83, %7 : vector<16x32xf32>
    %cst_60 = arith.constant 0.000000e+00 : f32
    %85 = vector.broadcast %cst_60 : f32 to vector<16x32xf32>
    %86 = arith.maximumf %84, %85 : vector<16x32xf32>
    %c7_61 = arith.constant 7 : index
    %c0_62 = arith.constant 0 : index
    %c0_63 = arith.constant 0 : index
    %87 = vector.load %arg15[%c7_61, %c0_62, %c0_63] : memref<8x16x32xf32, #tpu.memory_space<vmem>>, vector<1x16x32xf32>
    %88 = vector.shape_cast %87 : vector<1x16x32xf32> to vector<16x32xf32>
    %89 = vector.shape_cast %86 : vector<16x32xf32> to vector<1x16x32xf32>
    tpu.vector_store %arg15[%c7_61, %c0_62, %c0_63], %89 {strides = array<i32>} : memref<8x16x32xf32, #tpu.memory_space<vmem>>, vector<1x16x32xf32>,
    %c0_64 = arith.constant 0 : index
    %c0_65 = arith.constant 0 : index
    %c0_66 = arith.constant 0 : index
    %90 = vector.load %arg7[%c0_64, %c0_65, %c0_66] : memref<2x32x96xf32, #tpu.memory_space<vmem>>, vector<1x32x96xf32>
    %91 = vector.shape_cast %90 : vector<1x32x96xf32> to vector<32x96xf32>
    %92 = arith.truncf %91 : vector<32x96xf32> to vector<32x96xbf16>
    %c0_67 = arith.constant 0 : index
    %c0_68 = arith.constant 0 : index
    %c0_69 = arith.constant 0 : index
    %93 = vector.load %arg8[%c0_67, %c0_68, %c0_69] : memref<2x32x96xf32, #tpu.memory_space<vmem>>, vector<1x32x96xf32>
    %94 = vector.shape_cast %93 : vector<1x32x96xf32> to vector<32x96xf32>
    %95 = arith.truncf %94 : vector<32x96xf32> to vector<32x96xbf16>
    %c0_70 = arith.constant 0 : index
    %c0_71 = arith.constant 0 : index
    %c0_72 = arith.constant 0 : index
    %96 = vector.load %arg9[%c0_70, %c0_71, %c0_72] : memref<2x1x96xf32, #tpu.memory_space<vmem>>, vector<1x1x96xf32>
    %97 = vector.shape_cast %96 : vector<1x1x96xf32> to vector<1x96xf32>
    %98 = vector.shape_cast %97 : vector<1x96xf32> to vector<1x96xf32>
    %99 = vector.broadcast %98 : vector<1x96xf32> to vector<16x96xf32>
    %c0_73 = arith.constant 0 : index
    %c0_74 = arith.constant 0 : index
    %c0_75 = arith.constant 0 : index
    %100 = vector.load %arg10[%c0_73, %c0_74, %c0_75] : memref<2x1x32xf32, #tpu.memory_space<vmem>>, vector<1x1x32xf32>
    %101 = vector.shape_cast %100 : vector<1x1x32xf32> to vector<1x32xf32>
    %102 = vector.shape_cast %101 : vector<1x32xf32> to vector<1x32xf32>
    %103 = vector.broadcast %102 : vector<1x32xf32> to vector<16x32xf32>
    %c0_76 = arith.constant 0 : index
    %c0_77 = arith.constant 0 : index
    %c0_78 = arith.constant 0 : index
    %104 = vector.load %arg15[%c0_76, %c0_77, %c0_78] : memref<8x16x32xf32, #tpu.memory_space<vmem>>, vector<1x16x32xf32>
    %105 = vector.shape_cast %104 : vector<1x16x32xf32> to vector<16x32xf32>
    %106 = arith.truncf %105 : vector<16x32xf32> to vector<16x32xbf16>
    %cst_79 = arith.constant dense<0.000000e+00> : vector<16x96xf32>
    %107 = tpu.matmul %106, %92, %cst_79 {dimension_numbers = #tpu.dot_dimension_numbers<[1], [0], [0], [1], [0, 0, 1, 1], [], []>} : vector<16x32xbf16>, vector<32x96xbf16>, vector<16x96xf32> -> vector<16x96xf32>
    %108 = arith.addf %107, %99 : vector<16x96xf32>
    %c0_80 = arith.constant 0 : index
    %c0_81 = arith.constant 0 : index
    %c0_82 = arith.constant 0 : index
    %109 = vector.load %arg16[%c0_80, %c0_81, %c0_82] : memref<8x16x96xf32, #tpu.memory_space<vmem>>, vector<1x16x96xf32>
    %110 = vector.shape_cast %109 : vector<1x16x96xf32> to vector<16x96xf32>
    %111 = vector.shape_cast %108 : vector<16x96xf32> to vector<1x16x96xf32>
    tpu.vector_store %arg16[%c0_80, %c0_81, %c0_82], %111 {strides = array<i32>} : memref<8x16x96xf32, #tpu.memory_space<vmem>>, vector<1x16x96xf32>,
    %c1_83 = arith.constant 1 : index
    %c0_84 = arith.constant 0 : index
    %c0_85 = arith.constant 0 : index
    %112 = vector.load %arg15[%c1_83, %c0_84, %c0_85] : memref<8x16x32xf32, #tpu.memory_space<vmem>>, vector<1x16x32xf32>
    %113 = vector.shape_cast %112 : vector<1x16x32xf32> to vector<16x32xf32>
    %114 = arith.truncf %113 : vector<16x32xf32> to vector<16x32xbf16>
    %cst_86 = arith.constant dense<0.000000e+00> : vector<16x96xf32>
    %115 = tpu.matmul %114, %92, %cst_86 {dimension_numbers = #tpu.dot_dimension_numbers<[1], [0], [0], [1], [0, 0, 1, 1], [], []>} : vector<16x32xbf16>, vector<32x96xbf16>, vector<16x96xf32> -> vector<16x96xf32>
    %116 = arith.addf %115, %99 : vector<16x96xf32>
    %c1_87 = arith.constant 1 : index
    %c0_88 = arith.constant 0 : index
    %c0_89 = arith.constant 0 : index
    %117 = vector.load %arg16[%c1_87, %c0_88, %c0_89] : memref<8x16x96xf32, #tpu.memory_space<vmem>>, vector<1x16x96xf32>
    %118 = vector.shape_cast %117 : vector<1x16x96xf32> to vector<16x96xf32>
    %119 = vector.shape_cast %116 : vector<16x96xf32> to vector<1x16x96xf32>
    tpu.vector_store %arg16[%c1_87, %c0_88, %c0_89], %119 {strides = array<i32>} : memref<8x16x96xf32, #tpu.memory_space<vmem>>, vector<1x16x96xf32>,
    %c2_90 = arith.constant 2 : index
    %c0_91 = arith.constant 0 : index
    %c0_92 = arith.constant 0 : index
    %120 = vector.load %arg15[%c2_90, %c0_91, %c0_92] : memref<8x16x32xf32, #tpu.memory_space<vmem>>, vector<1x16x32xf32>
    %121 = vector.shape_cast %120 : vector<1x16x32xf32> to vector<16x32xf32>
    %122 = arith.truncf %121 : vector<16x32xf32> to vector<16x32xbf16>
    %cst_93 = arith.constant dense<0.000000e+00> : vector<16x96xf32>
    %123 = tpu.matmul %122, %92, %cst_93 {dimension_numbers = #tpu.dot_dimension_numbers<[1], [0], [0], [1], [0, 0, 1, 1], [], []>} : vector<16x32xbf16>, vector<32x96xbf16>, vector<16x96xf32> -> vector<16x96xf32>
    %124 = arith.addf %123, %99 : vector<16x96xf32>
    %c2_94 = arith.constant 2 : index
    %c0_95 = arith.constant 0 : index
    %c0_96 = arith.constant 0 : index
    %125 = vector.load %arg16[%c2_94, %c0_95, %c0_96] : memref<8x16x96xf32, #tpu.memory_space<vmem>>, vector<1x16x96xf32>
    %126 = vector.shape_cast %125 : vector<1x16x96xf32> to vector<16x96xf32>
    %127 = vector.shape_cast %124 : vector<16x96xf32> to vector<1x16x96xf32>
    tpu.vector_store %arg16[%c2_94, %c0_95, %c0_96], %127 {strides = array<i32>} : memref<8x16x96xf32, #tpu.memory_space<vmem>>, vector<1x16x96xf32>,
    %c3_97 = arith.constant 3 : index
    %c0_98 = arith.constant 0 : index
    %c0_99 = arith.constant 0 : index
    %128 = vector.load %arg15[%c3_97, %c0_98, %c0_99] : memref<8x16x32xf32, #tpu.memory_space<vmem>>, vector<1x16x32xf32>
    %129 = vector.shape_cast %128 : vector<1x16x32xf32> to vector<16x32xf32>
    %130 = arith.truncf %129 : vector<16x32xf32> to vector<16x32xbf16>
    %cst_100 = arith.constant dense<0.000000e+00> : vector<16x96xf32>
    %131 = tpu.matmul %130, %92, %cst_100 {dimension_numbers = #tpu.dot_dimension_numbers<[1], [0], [0], [1], [0, 0, 1, 1], [], []>} : vector<16x32xbf16>, vector<32x96xbf16>, vector<16x96xf32> -> vector<16x96xf32>
    %132 = arith.addf %131, %99 : vector<16x96xf32>
    %c3_101 = arith.constant 3 : index
    %c0_102 = arith.constant 0 : index
    %c0_103 = arith.constant 0 : index
    %133 = vector.load %arg16[%c3_101, %c0_102, %c0_103] : memref<8x16x96xf32, #tpu.memory_space<vmem>>, vector<1x16x96xf32>
    %134 = vector.shape_cast %133 : vector<1x16x96xf32> to vector<16x96xf32>
    %135 = vector.shape_cast %132 : vector<16x96xf32> to vector<1x16x96xf32>
    tpu.vector_store %arg16[%c3_101, %c0_102, %c0_103], %135 {strides = array<i32>} : memref<8x16x96xf32, #tpu.memory_space<vmem>>, vector<1x16x96xf32>,
    %c4_104 = arith.constant 4 : index
    %c0_105 = arith.constant 0 : index
    %c0_106 = arith.constant 0 : index
    %136 = vector.load %arg15[%c4_104, %c0_105, %c0_106] : memref<8x16x32xf32, #tpu.memory_space<vmem>>, vector<1x16x32xf32>
    %137 = vector.shape_cast %136 : vector<1x16x32xf32> to vector<16x32xf32>
    %138 = arith.truncf %137 : vector<16x32xf32> to vector<16x32xbf16>
    %cst_107 = arith.constant dense<0.000000e+00> : vector<16x96xf32>
    %139 = tpu.matmul %138, %92, %cst_107 {dimension_numbers = #tpu.dot_dimension_numbers<[1], [0], [0], [1], [0, 0, 1, 1], [], []>} : vector<16x32xbf16>, vector<32x96xbf16>, vector<16x96xf32> -> vector<16x96xf32>
    %140 = arith.addf %139, %99 : vector<16x96xf32>
    %c4_108 = arith.constant 4 : index
    %c0_109 = arith.constant 0 : index
    %c0_110 = arith.constant 0 : index
    %141 = vector.load %arg16[%c4_108, %c0_109, %c0_110] : memref<8x16x96xf32, #tpu.memory_space<vmem>>, vector<1x16x96xf32>
    %142 = vector.shape_cast %141 : vector<1x16x96xf32> to vector<16x96xf32>
    %143 = vector.shape_cast %140 : vector<16x96xf32> to vector<1x16x96xf32>
    tpu.vector_store %arg16[%c4_108, %c0_109, %c0_110], %143 {strides = array<i32>} : memref<8x16x96xf32, #tpu.memory_space<vmem>>, vector<1x16x96xf32>,
    %c5_111 = arith.constant 5 : index
    %c0_112 = arith.constant 0 : index
    %c0_113 = arith.constant 0 : index
    %144 = vector.load %arg15[%c5_111, %c0_112, %c0_113] : memref<8x16x32xf32, #tpu.memory_space<vmem>>, vector<1x16x32xf32>
    %145 = vector.shape_cast %144 : vector<1x16x32xf32> to vector<16x32xf32>
    %146 = arith.truncf %145 : vector<16x32xf32> to vector<16x32xbf16>
    %cst_114 = arith.constant dense<0.000000e+00> : vector<16x96xf32>
    %147 = tpu.matmul %146, %92, %cst_114 {dimension_numbers = #tpu.dot_dimension_numbers<[1], [0], [0], [1], [0, 0, 1, 1], [], []>} : vector<16x32xbf16>, vector<32x96xbf16>, vector<16x96xf32> -> vector<16x96xf32>
    %148 = arith.addf %147, %99 : vector<16x96xf32>
    %c5_115 = arith.constant 5 : index
    %c0_116 = arith.constant 0 : index
    %c0_117 = arith.constant 0 : index
    %149 = vector.load %arg16[%c5_115, %c0_116, %c0_117] : memref<8x16x96xf32, #tpu.memory_space<vmem>>, vector<1x16x96xf32>
    %150 = vector.shape_cast %149 : vector<1x16x96xf32> to vector<16x96xf32>
    %151 = vector.shape_cast %148 : vector<16x96xf32> to vector<1x16x96xf32>
    tpu.vector_store %arg16[%c5_115, %c0_116, %c0_117], %151 {strides = array<i32>} : memref<8x16x96xf32, #tpu.memory_space<vmem>>, vector<1x16x96xf32>,
    %c6_118 = arith.constant 6 : index
    %c0_119 = arith.constant 0 : index
    %c0_120 = arith.constant 0 : index
    %152 = vector.load %arg15[%c6_118, %c0_119, %c0_120] : memref<8x16x32xf32, #tpu.memory_space<vmem>>, vector<1x16x32xf32>
    %153 = vector.shape_cast %152 : vector<1x16x32xf32> to vector<16x32xf32>
    %154 = arith.truncf %153 : vector<16x32xf32> to vector<16x32xbf16>
    %cst_121 = arith.constant dense<0.000000e+00> : vector<16x96xf32>
    %155 = tpu.matmul %154, %92, %cst_121 {dimension_numbers = #tpu.dot_dimension_numbers<[1], [0], [0], [1], [0, 0, 1, 1], [], []>} : vector<16x32xbf16>, vector<32x96xbf16>, vector<16x96xf32> -> vector<16x96xf32>
    %156 = arith.addf %155, %99 : vector<16x96xf32>
    %c6_122 = arith.constant 6 : index
    %c0_123 = arith.constant 0 : index
    %c0_124 = arith.constant 0 : index
    %157 = vector.load %arg16[%c6_122, %c0_123, %c0_124] : memref<8x16x96xf32, #tpu.memory_space<vmem>>, vector<1x16x96xf32>
    %158 = vector.shape_cast %157 : vector<1x16x96xf32> to vector<16x96xf32>
    %159 = vector.shape_cast %156 : vector<16x96xf32> to vector<1x16x96xf32>
    tpu.vector_store %arg16[%c6_122, %c0_123, %c0_124], %159 {strides = array<i32>} : memref<8x16x96xf32, #tpu.memory_space<vmem>>, vector<1x16x96xf32>,
    %c7_125 = arith.constant 7 : index
    %c0_126 = arith.constant 0 : index
    %c0_127 = arith.constant 0 : index
    %160 = vector.load %arg15[%c7_125, %c0_126, %c0_127] : memref<8x16x32xf32, #tpu.memory_space<vmem>>, vector<1x16x32xf32>
    %161 = vector.shape_cast %160 : vector<1x16x32xf32> to vector<16x32xf32>
    %162 = arith.truncf %161 : vector<16x32xf32> to vector<16x32xbf16>
    %cst_128 = arith.constant dense<0.000000e+00> : vector<16x96xf32>
    %163 = tpu.matmul %162, %92, %cst_128 {dimension_numbers = #tpu.dot_dimension_numbers<[1], [0], [0], [1], [0, 0, 1, 1], [], []>} : vector<16x32xbf16>, vector<32x96xbf16>, vector<16x96xf32> -> vector<16x96xf32>
    %164 = arith.addf %163, %99 : vector<16x96xf32>
    %c7_129 = arith.constant 7 : index
    %c0_130 = arith.constant 0 : index
    %c0_131 = arith.constant 0 : index
    %165 = vector.load %arg16[%c7_129, %c0_130, %c0_131] : memref<8x16x96xf32, #tpu.memory_space<vmem>>, vector<1x16x96xf32>
    %166 = vector.shape_cast %165 : vector<1x16x96xf32> to vector<16x96xf32>
    %167 = vector.shape_cast %164 : vector<16x96xf32> to vector<1x16x96xf32>
    tpu.vector_store %arg16[%c7_129, %c0_130, %c0_131], %167 {strides = array<i32>} : memref<8x16x96xf32, #tpu.memory_space<vmem>>, vector<1x16x96xf32>,
    %c0_132 = arith.constant 0 : index
    %c0_133 = arith.constant 0 : index
    %c0_134 = arith.constant 0 : index
    %168 = vector.load %arg3[%c0_132, %c0_133, %c0_134] : memref<2x16x32xf32, #tpu.memory_space<vmem>>, vector<1x16x32xf32>
    %169 = vector.shape_cast %168 : vector<1x16x32xf32> to vector<16x32xf32>
    %c0_i32 = arith.constant 0 : i32
    %170 = arith.truncf %169 : vector<16x32xf32> to vector<16x32xbf16>
    %cst_135 = arith.constant dense<0.000000e+00> : vector<16x96xf32>
    %171 = tpu.matmul %170, %95, %cst_135 {dimension_numbers = #tpu.dot_dimension_numbers<[1], [0], [0], [1], [0, 0, 1, 1], [], []>} : vector<16x32xbf16>, vector<32x96xbf16>, vector<16x96xf32> -> vector<16x96xf32>
    %172 = arith.index_cast %c0_i32 : i32 to index
    %c0_136 = arith.constant 0 : index
    %c0_137 = arith.constant 0 : index
    %173 = vector.load %arg16[%172, %c0_136, %c0_137] : memref<8x16x96xf32, #tpu.memory_space<vmem>>, vector<1x16x96xf32>
    %174 = vector.shape_cast %173 : vector<1x16x96xf32> to vector<16x96xf32>
    %175 = vector.extract_strided_slice %174 {offsets = [0, 0], sizes = [16, 64], strides = [1, 1]} : vector<16x96xf32> to vector<16x64xf32>
    %176 = vector.extract_strided_slice %171 {offsets = [0, 0], sizes = [16, 64], strides = [1, 1]} : vector<16x96xf32> to vector<16x64xf32>
    %177 = arith.addf %175, %176 : vector<16x64xf32>
    %cst_138 = arith.constant 0.000000e+00 : f32
    %178 = vector.broadcast %cst_138 : f32 to vector<16x64xf32>
    %179 = arith.subf %178, %177 : vector<16x64xf32>
    %180 = math.exp %179 : vector<16x64xf32>
    %cst_139 = arith.constant 1.000000e+00 : f32
    %181 = vector.broadcast %cst_139 : f32 to vector<16x64xf32>
    %182 = arith.addf %181, %180 : vector<16x64xf32>
    %cst_140 = arith.constant 1.000000e+00 : f32
    %183 = vector.broadcast %cst_140 : f32 to vector<16x64xf32>
    %184 = arith.divf %183, %182 : vector<16x64xf32>
    %185 = vector.extract_strided_slice %184 {offsets = [0, 0], sizes = [16, 32], strides = [1, 1]} : vector<16x64xf32> to vector<16x32xf32>
    %186 = vector.extract_strided_slice %184 {offsets = [0, 32], sizes = [16, 32], strides = [1, 1]} : vector<16x64xf32> to vector<16x32xf32>
    %187 = vector.extract_strided_slice %174 {offsets = [0, 64], sizes = [16, 32], strides = [1, 1]} : vector<16x96xf32> to vector<16x32xf32>
    %188 = vector.extract_strided_slice %171 {offsets = [0, 64], sizes = [16, 32], strides = [1, 1]} : vector<16x96xf32> to vector<16x32xf32>
    %189 = arith.addf %188, %103 : vector<16x32xf32>
    %190 = arith.mulf %185, %189 : vector<16x32xf32>
    %191 = arith.addf %187, %190 : vector<16x32xf32>
    %192 = math.tanh %191 : vector<16x32xf32>
    %193 = arith.subf %169, %192 : vector<16x32xf32>
    %194 = arith.mulf %186, %193 : vector<16x32xf32>
    %195 = arith.addf %192, %194 : vector<16x32xf32>
    %196 = arith.index_cast %c0_i32 : i32 to index
    %c0_141 = arith.constant 0 : index
    %c0_142 = arith.constant 0 : index
    %197 = vector.load %arg15[%196, %c0_141, %c0_142] : memref<8x16x32xf32, #tpu.memory_space<vmem>>, vector<1x16x32xf32>
    %198 = vector.shape_cast %197 : vector<1x16x32xf32> to vector<16x32xf32>
    %199 = vector.shape_cast %195 : vector<16x32xf32> to vector<1x16x32xf32>
    tpu.vector_store %arg15[%196, %c0_141, %c0_142], %199 {strides = array<i32>} : memref<8x16x32xf32, #tpu.memory_space<vmem>>, vector<1x16x32xf32>,
    %c1_i32 = arith.constant 1 : i32
    %200 = arith.truncf %195 : vector<16x32xf32> to vector<16x32xbf16>
    %cst_143 = arith.constant dense<0.000000e+00> : vector<16x96xf32>
    %201 = tpu.matmul %200, %95, %cst_143 {dimension_numbers = #tpu.dot_dimension_numbers<[1], [0], [0], [1], [0, 0, 1, 1], [], []>} : vector<16x32xbf16>, vector<32x96xbf16>, vector<16x96xf32> -> vector<16x96xf32>
    %202 = arith.index_cast %c1_i32 : i32 to index
    %c0_144 = arith.constant 0 : index
    %c0_145 = arith.constant 0 : index
    %203 = vector.load %arg16[%202, %c0_144, %c0_145] : memref<8x16x96xf32, #tpu.memory_space<vmem>>, vector<1x16x96xf32>
    %204 = vector.shape_cast %203 : vector<1x16x96xf32> to vector<16x96xf32>
    %205 = vector.extract_strided_slice %204 {offsets = [0, 0], sizes = [16, 64], strides = [1, 1]} : vector<16x96xf32> to vector<16x64xf32>
    %206 = vector.extract_strided_slice %201 {offsets = [0, 0], sizes = [16, 64], strides = [1, 1]} : vector<16x96xf32> to vector<16x64xf32>
    %207 = arith.addf %205, %206 : vector<16x64xf32>
    %cst_146 = arith.constant 0.000000e+00 : f32
    %208 = vector.broadcast %cst_146 : f32 to vector<16x64xf32>
    %209 = arith.subf %208, %207 : vector<16x64xf32>
    %210 = math.exp %209 : vector<16x64xf32>
    %cst_147 = arith.constant 1.000000e+00 : f32
    %211 = vector.broadcast %cst_147 : f32 to vector<16x64xf32>
    %212 = arith.addf %211, %210 : vector<16x64xf32>
    %cst_148 = arith.constant 1.000000e+00 : f32
    %213 = vector.broadcast %cst_148 : f32 to vector<16x64xf32>
    %214 = arith.divf %213, %212 : vector<16x64xf32>
    %215 = vector.extract_strided_slice %214 {offsets = [0, 0], sizes = [16, 32], strides = [1, 1]} : vector<16x64xf32> to vector<16x32xf32>
    %216 = vector.extract_strided_slice %214 {offsets = [0, 32], sizes = [16, 32], strides = [1, 1]} : vector<16x64xf32> to vector<16x32xf32>
    %217 = vector.extract_strided_slice %204 {offsets = [0, 64], sizes = [16, 32], strides = [1, 1]} : vector<16x96xf32> to vector<16x32xf32>
    %218 = vector.extract_strided_slice %201 {offsets = [0, 64], sizes = [16, 32], strides = [1, 1]} : vector<16x96xf32> to vector<16x32xf32>
    %219 = arith.addf %218, %103 : vector<16x32xf32>
    %220 = arith.mulf %215, %219 : vector<16x32xf32>
    %221 = arith.addf %217, %220 : vector<16x32xf32>
    %222 = math.tanh %221 : vector<16x32xf32>
    %223 = arith.subf %195, %222 : vector<16x32xf32>
    %224 = arith.mulf %216, %223 : vector<16x32xf32>
    %225 = arith.addf %222, %224 : vector<16x32xf32>
    %226 = arith.index_cast %c1_i32 : i32 to index
    %c0_149 = arith.constant 0 : index
    %c0_150 = arith.constant 0 : index
    %227 = vector.load %arg15[%226, %c0_149, %c0_150] : memref<8x16x32xf32, #tpu.memory_space<vmem>>, vector<1x16x32xf32>
    %228 = vector.shape_cast %227 : vector<1x16x32xf32> to vector<16x32xf32>
    %229 = vector.shape_cast %225 : vector<16x32xf32> to vector<1x16x32xf32>
    tpu.vector_store %arg15[%226, %c0_149, %c0_150], %229 {strides = array<i32>} : memref<8x16x32xf32, #tpu.memory_space<vmem>>, vector<1x16x32xf32>,
    %c2_i32 = arith.constant 2 : i32
    %230 = arith.truncf %225 : vector<16x32xf32> to vector<16x32xbf16>
    %cst_151 = arith.constant dense<0.000000e+00> : vector<16x96xf32>
    %231 = tpu.matmul %230, %95, %cst_151 {dimension_numbers = #tpu.dot_dimension_numbers<[1], [0], [0], [1], [0, 0, 1, 1], [], []>} : vector<16x32xbf16>, vector<32x96xbf16>, vector<16x96xf32> -> vector<16x96xf32>
    %232 = arith.index_cast %c2_i32 : i32 to index
    %c0_152 = arith.constant 0 : index
    %c0_153 = arith.constant 0 : index
    %233 = vector.load %arg16[%232, %c0_152, %c0_153] : memref<8x16x96xf32, #tpu.memory_space<vmem>>, vector<1x16x96xf32>
    %234 = vector.shape_cast %233 : vector<1x16x96xf32> to vector<16x96xf32>
    %235 = vector.extract_strided_slice %234 {offsets = [0, 0], sizes = [16, 64], strides = [1, 1]} : vector<16x96xf32> to vector<16x64xf32>
    %236 = vector.extract_strided_slice %231 {offsets = [0, 0], sizes = [16, 64], strides = [1, 1]} : vector<16x96xf32> to vector<16x64xf32>
    %237 = arith.addf %235, %236 : vector<16x64xf32>
    %cst_154 = arith.constant 0.000000e+00 : f32
    %238 = vector.broadcast %cst_154 : f32 to vector<16x64xf32>
    %239 = arith.subf %238, %237 : vector<16x64xf32>
    %240 = math.exp %239 : vector<16x64xf32>
    %cst_155 = arith.constant 1.000000e+00 : f32
    %241 = vector.broadcast %cst_155 : f32 to vector<16x64xf32>
    %242 = arith.addf %241, %240 : vector<16x64xf32>
    %cst_156 = arith.constant 1.000000e+00 : f32
    %243 = vector.broadcast %cst_156 : f32 to vector<16x64xf32>
    %244 = arith.divf %243, %242 : vector<16x64xf32>
    %245 = vector.extract_strided_slice %244 {offsets = [0, 0], sizes = [16, 32], strides = [1, 1]} : vector<16x64xf32> to vector<16x32xf32>
    %246 = vector.extract_strided_slice %244 {offsets = [0, 32], sizes = [16, 32], strides = [1, 1]} : vector<16x64xf32> to vector<16x32xf32>
    %247 = vector.extract_strided_slice %234 {offsets = [0, 64], sizes = [16, 32], strides = [1, 1]} : vector<16x96xf32> to vector<16x32xf32>
    %248 = vector.extract_strided_slice %231 {offsets = [0, 64], sizes = [16, 32], strides = [1, 1]} : vector<16x96xf32> to vector<16x32xf32>
    %249 = arith.addf %248, %103 : vector<16x32xf32>
    %250 = arith.mulf %245, %249 : vector<16x32xf32>
    %251 = arith.addf %247, %250 : vector<16x32xf32>
    %252 = math.tanh %251 : vector<16x32xf32>
    %253 = arith.subf %225, %252 : vector<16x32xf32>
    %254 = arith.mulf %246, %253 : vector<16x32xf32>
    %255 = arith.addf %252, %254 : vector<16x32xf32>
    %256 = arith.index_cast %c2_i32 : i32 to index
    %c0_157 = arith.constant 0 : index
    %c0_158 = arith.constant 0 : index
    %257 = vector.load %arg15[%256, %c0_157, %c0_158] : memref<8x16x32xf32, #tpu.memory_space<vmem>>, vector<1x16x32xf32>
    %258 = vector.shape_cast %257 : vector<1x16x32xf32> to vector<16x32xf32>
    %259 = vector.shape_cast %255 : vector<16x32xf32> to vector<1x16x32xf32>
    tpu.vector_store %arg15[%256, %c0_157, %c0_158], %259 {strides = array<i32>} : memref<8x16x32xf32, #tpu.memory_space<vmem>>, vector<1x16x32xf32>,
    %c3_i32 = arith.constant 3 : i32
    %260 = arith.truncf %255 : vector<16x32xf32> to vector<16x32xbf16>
    %cst_159 = arith.constant dense<0.000000e+00> : vector<16x96xf32>
    %261 = tpu.matmul %260, %95, %cst_159 {dimension_numbers = #tpu.dot_dimension_numbers<[1], [0], [0], [1], [0, 0, 1, 1], [], []>} : vector<16x32xbf16>, vector<32x96xbf16>, vector<16x96xf32> -> vector<16x96xf32>
    %262 = arith.index_cast %c3_i32 : i32 to index
    %c0_160 = arith.constant 0 : index
    %c0_161 = arith.constant 0 : index
    %263 = vector.load %arg16[%262, %c0_160, %c0_161] : memref<8x16x96xf32, #tpu.memory_space<vmem>>, vector<1x16x96xf32>
    %264 = vector.shape_cast %263 : vector<1x16x96xf32> to vector<16x96xf32>
    %265 = vector.extract_strided_slice %264 {offsets = [0, 0], sizes = [16, 64], strides = [1, 1]} : vector<16x96xf32> to vector<16x64xf32>
    %266 = vector.extract_strided_slice %261 {offsets = [0, 0], sizes = [16, 64], strides = [1, 1]} : vector<16x96xf32> to vector<16x64xf32>
    %267 = arith.addf %265, %266 : vector<16x64xf32>
    %cst_162 = arith.constant 0.000000e+00 : f32
    %268 = vector.broadcast %cst_162 : f32 to vector<16x64xf32>
    %269 = arith.subf %268, %267 : vector<16x64xf32>
    %270 = math.exp %269 : vector<16x64xf32>
    %cst_163 = arith.constant 1.000000e+00 : f32
    %271 = vector.broadcast %cst_163 : f32 to vector<16x64xf32>
    %272 = arith.addf %271, %270 : vector<16x64xf32>
    %cst_164 = arith.constant 1.000000e+00 : f32
    %273 = vector.broadcast %cst_164 : f32 to vector<16x64xf32>
    %274 = arith.divf %273, %272 : vector<16x64xf32>
    %275 = vector.extract_strided_slice %274 {offsets = [0, 0], sizes = [16, 32], strides = [1, 1]} : vector<16x64xf32> to vector<16x32xf32>
    %276 = vector.extract_strided_slice %274 {offsets = [0, 32], sizes = [16, 32], strides = [1, 1]} : vector<16x64xf32> to vector<16x32xf32>
    %277 = vector.extract_strided_slice %264 {offsets = [0, 64], sizes = [16, 32], strides = [1, 1]} : vector<16x96xf32> to vector<16x32xf32>
    %278 = vector.extract_strided_slice %261 {offsets = [0, 64], sizes = [16, 32], strides = [1, 1]} : vector<16x96xf32> to vector<16x32xf32>
    %279 = arith.addf %278, %103 : vector<16x32xf32>
    %280 = arith.mulf %275, %279 : vector<16x32xf32>
    %281 = arith.addf %277, %280 : vector<16x32xf32>
    %282 = math.tanh %281 : vector<16x32xf32>
    %283 = arith.subf %255, %282 : vector<16x32xf32>
    %284 = arith.mulf %276, %283 : vector<16x32xf32>
    %285 = arith.addf %282, %284 : vector<16x32xf32>
    %286 = arith.index_cast %c3_i32 : i32 to index
    %c0_165 = arith.constant 0 : index
    %c0_166 = arith.constant 0 : index
    %287 = vector.load %arg15[%286, %c0_165, %c0_166] : memref<8x16x32xf32, #tpu.memory_space<vmem>>, vector<1x16x32xf32>
    %288 = vector.shape_cast %287 : vector<1x16x32xf32> to vector<16x32xf32>
    %289 = vector.shape_cast %285 : vector<16x32xf32> to vector<1x16x32xf32>
    tpu.vector_store %arg15[%286, %c0_165, %c0_166], %289 {strides = array<i32>} : memref<8x16x32xf32, #tpu.memory_space<vmem>>, vector<1x16x32xf32>,
    %c4_i32 = arith.constant 4 : i32
    %290 = arith.truncf %285 : vector<16x32xf32> to vector<16x32xbf16>
    %cst_167 = arith.constant dense<0.000000e+00> : vector<16x96xf32>
    %291 = tpu.matmul %290, %95, %cst_167 {dimension_numbers = #tpu.dot_dimension_numbers<[1], [0], [0], [1], [0, 0, 1, 1], [], []>} : vector<16x32xbf16>, vector<32x96xbf16>, vector<16x96xf32> -> vector<16x96xf32>
    %292 = arith.index_cast %c4_i32 : i32 to index
    %c0_168 = arith.constant 0 : index
    %c0_169 = arith.constant 0 : index
    %293 = vector.load %arg16[%292, %c0_168, %c0_169] : memref<8x16x96xf32, #tpu.memory_space<vmem>>, vector<1x16x96xf32>
    %294 = vector.shape_cast %293 : vector<1x16x96xf32> to vector<16x96xf32>
    %295 = vector.extract_strided_slice %294 {offsets = [0, 0], sizes = [16, 64], strides = [1, 1]} : vector<16x96xf32> to vector<16x64xf32>
    %296 = vector.extract_strided_slice %291 {offsets = [0, 0], sizes = [16, 64], strides = [1, 1]} : vector<16x96xf32> to vector<16x64xf32>
    %297 = arith.addf %295, %296 : vector<16x64xf32>
    %cst_170 = arith.constant 0.000000e+00 : f32
    %298 = vector.broadcast %cst_170 : f32 to vector<16x64xf32>
    %299 = arith.subf %298, %297 : vector<16x64xf32>
    %300 = math.exp %299 : vector<16x64xf32>
    %cst_171 = arith.constant 1.000000e+00 : f32
    %301 = vector.broadcast %cst_171 : f32 to vector<16x64xf32>
    %302 = arith.addf %301, %300 : vector<16x64xf32>
    %cst_172 = arith.constant 1.000000e+00 : f32
    %303 = vector.broadcast %cst_172 : f32 to vector<16x64xf32>
    %304 = arith.divf %303, %302 : vector<16x64xf32>
    %305 = vector.extract_strided_slice %304 {offsets = [0, 0], sizes = [16, 32], strides = [1, 1]} : vector<16x64xf32> to vector<16x32xf32>
    %306 = vector.extract_strided_slice %304 {offsets = [0, 32], sizes = [16, 32], strides = [1, 1]} : vector<16x64xf32> to vector<16x32xf32>
    %307 = vector.extract_strided_slice %294 {offsets = [0, 64], sizes = [16, 32], strides = [1, 1]} : vector<16x96xf32> to vector<16x32xf32>
    %308 = vector.extract_strided_slice %291 {offsets = [0, 64], sizes = [16, 32], strides = [1, 1]} : vector<16x96xf32> to vector<16x32xf32>
    %309 = arith.addf %308, %103 : vector<16x32xf32>
    %310 = arith.mulf %305, %309 : vector<16x32xf32>
    %311 = arith.addf %307, %310 : vector<16x32xf32>
    %312 = math.tanh %311 : vector<16x32xf32>
    %313 = arith.subf %285, %312 : vector<16x32xf32>
    %314 = arith.mulf %306, %313 : vector<16x32xf32>
    %315 = arith.addf %312, %314 : vector<16x32xf32>
    %316 = arith.index_cast %c4_i32 : i32 to index
    %c0_173 = arith.constant 0 : index
    %c0_174 = arith.constant 0 : index
    %317 = vector.load %arg15[%316, %c0_173, %c0_174] : memref<8x16x32xf32, #tpu.memory_space<vmem>>, vector<1x16x32xf32>
    %318 = vector.shape_cast %317 : vector<1x16x32xf32> to vector<16x32xf32>
    %319 = vector.shape_cast %315 : vector<16x32xf32> to vector<1x16x32xf32>
    tpu.vector_store %arg15[%316, %c0_173, %c0_174], %319 {strides = array<i32>} : memref<8x16x32xf32, #tpu.memory_space<vmem>>, vector<1x16x32xf32>,
    %c5_i32 = arith.constant 5 : i32
    %320 = arith.truncf %315 : vector<16x32xf32> to vector<16x32xbf16>
    %cst_175 = arith.constant dense<0.000000e+00> : vector<16x96xf32>
    %321 = tpu.matmul %320, %95, %cst_175 {dimension_numbers = #tpu.dot_dimension_numbers<[1], [0], [0], [1], [0, 0, 1, 1], [], []>} : vector<16x32xbf16>, vector<32x96xbf16>, vector<16x96xf32> -> vector<16x96xf32>
    %322 = arith.index_cast %c5_i32 : i32 to index
    %c0_176 = arith.constant 0 : index
    %c0_177 = arith.constant 0 : index
    %323 = vector.load %arg16[%322, %c0_176, %c0_177] : memref<8x16x96xf32, #tpu.memory_space<vmem>>, vector<1x16x96xf32>
    %324 = vector.shape_cast %323 : vector<1x16x96xf32> to vector<16x96xf32>
    %325 = vector.extract_strided_slice %324 {offsets = [0, 0], sizes = [16, 64], strides = [1, 1]} : vector<16x96xf32> to vector<16x64xf32>
    %326 = vector.extract_strided_slice %321 {offsets = [0, 0], sizes = [16, 64], strides = [1, 1]} : vector<16x96xf32> to vector<16x64xf32>
    %327 = arith.addf %325, %326 : vector<16x64xf32>
    %cst_178 = arith.constant 0.000000e+00 : f32
    %328 = vector.broadcast %cst_178 : f32 to vector<16x64xf32>
    %329 = arith.subf %328, %327 : vector<16x64xf32>
    %330 = math.exp %329 : vector<16x64xf32>
    %cst_179 = arith.constant 1.000000e+00 : f32
    %331 = vector.broadcast %cst_179 : f32 to vector<16x64xf32>
    %332 = arith.addf %331, %330 : vector<16x64xf32>
    %cst_180 = arith.constant 1.000000e+00 : f32
    %333 = vector.broadcast %cst_180 : f32 to vector<16x64xf32>
    %334 = arith.divf %333, %332 : vector<16x64xf32>
    %335 = vector.extract_strided_slice %334 {offsets = [0, 0], sizes = [16, 32], strides = [1, 1]} : vector<16x64xf32> to vector<16x32xf32>
    %336 = vector.extract_strided_slice %334 {offsets = [0, 32], sizes = [16, 32], strides = [1, 1]} : vector<16x64xf32> to vector<16x32xf32>
    %337 = vector.extract_strided_slice %324 {offsets = [0, 64], sizes = [16, 32], strides = [1, 1]} : vector<16x96xf32> to vector<16x32xf32>
    %338 = vector.extract_strided_slice %321 {offsets = [0, 64], sizes = [16, 32], strides = [1, 1]} : vector<16x96xf32> to vector<16x32xf32>
    %339 = arith.addf %338, %103 : vector<16x32xf32>
    %340 = arith.mulf %335, %339 : vector<16x32xf32>
    %341 = arith.addf %337, %340 : vector<16x32xf32>
    %342 = math.tanh %341 : vector<16x32xf32>
    %343 = arith.subf %315, %342 : vector<16x32xf32>
    %344 = arith.mulf %336, %343 : vector<16x32xf32>
    %345 = arith.addf %342, %344 : vector<16x32xf32>
    %346 = arith.index_cast %c5_i32 : i32 to index
    %c0_181 = arith.constant 0 : index
    %c0_182 = arith.constant 0 : index
    %347 = vector.load %arg15[%346, %c0_181, %c0_182] : memref<8x16x32xf32, #tpu.memory_space<vmem>>, vector<1x16x32xf32>
    %348 = vector.shape_cast %347 : vector<1x16x32xf32> to vector<16x32xf32>
    %349 = vector.shape_cast %345 : vector<16x32xf32> to vector<1x16x32xf32>
    tpu.vector_store %arg15[%346, %c0_181, %c0_182], %349 {strides = array<i32>} : memref<8x16x32xf32, #tpu.memory_space<vmem>>, vector<1x16x32xf32>,
    %c6_i32 = arith.constant 6 : i32
    %350 = arith.truncf %345 : vector<16x32xf32> to vector<16x32xbf16>
    %cst_183 = arith.constant dense<0.000000e+00> : vector<16x96xf32>
    %351 = tpu.matmul %350, %95, %cst_183 {dimension_numbers = #tpu.dot_dimension_numbers<[1], [0], [0], [1], [0, 0, 1, 1], [], []>} : vector<16x32xbf16>, vector<32x96xbf16>, vector<16x96xf32> -> vector<16x96xf32>
    %352 = arith.index_cast %c6_i32 : i32 to index
    %c0_184 = arith.constant 0 : index
    %c0_185 = arith.constant 0 : index
    %353 = vector.load %arg16[%352, %c0_184, %c0_185] : memref<8x16x96xf32, #tpu.memory_space<vmem>>, vector<1x16x96xf32>
    %354 = vector.shape_cast %353 : vector<1x16x96xf32> to vector<16x96xf32>
    %355 = vector.extract_strided_slice %354 {offsets = [0, 0], sizes = [16, 64], strides = [1, 1]} : vector<16x96xf32> to vector<16x64xf32>
    %356 = vector.extract_strided_slice %351 {offsets = [0, 0], sizes = [16, 64], strides = [1, 1]} : vector<16x96xf32> to vector<16x64xf32>
    %357 = arith.addf %355, %356 : vector<16x64xf32>
    %cst_186 = arith.constant 0.000000e+00 : f32
    %358 = vector.broadcast %cst_186 : f32 to vector<16x64xf32>
    %359 = arith.subf %358, %357 : vector<16x64xf32>
    %360 = math.exp %359 : vector<16x64xf32>
    %cst_187 = arith.constant 1.000000e+00 : f32
    %361 = vector.broadcast %cst_187 : f32 to vector<16x64xf32>
    %362 = arith.addf %361, %360 : vector<16x64xf32>
    %cst_188 = arith.constant 1.000000e+00 : f32
    %363 = vector.broadcast %cst_188 : f32 to vector<16x64xf32>
    %364 = arith.divf %363, %362 : vector<16x64xf32>
    %365 = vector.extract_strided_slice %364 {offsets = [0, 0], sizes = [16, 32], strides = [1, 1]} : vector<16x64xf32> to vector<16x32xf32>
    %366 = vector.extract_strided_slice %364 {offsets = [0, 32], sizes = [16, 32], strides = [1, 1]} : vector<16x64xf32> to vector<16x32xf32>
    %367 = vector.extract_strided_slice %354 {offsets = [0, 64], sizes = [16, 32], strides = [1, 1]} : vector<16x96xf32> to vector<16x32xf32>
    %368 = vector.extract_strided_slice %351 {offsets = [0, 64], sizes = [16, 32], strides = [1, 1]} : vector<16x96xf32> to vector<16x32xf32>
    %369 = arith.addf %368, %103 : vector<16x32xf32>
    %370 = arith.mulf %365, %369 : vector<16x32xf32>
    %371 = arith.addf %367, %370 : vector<16x32xf32>
    %372 = math.tanh %371 : vector<16x32xf32>
    %373 = arith.subf %345, %372 : vector<16x32xf32>
    %374 = arith.mulf %366, %373 : vector<16x32xf32>
    %375 = arith.addf %372, %374 : vector<16x32xf32>
    %376 = arith.index_cast %c6_i32 : i32 to index
    %c0_189 = arith.constant 0 : index
    %c0_190 = arith.constant 0 : index
    %377 = vector.load %arg15[%376, %c0_189, %c0_190] : memref<8x16x32xf32, #tpu.memory_space<vmem>>, vector<1x16x32xf32>
    %378 = vector.shape_cast %377 : vector<1x16x32xf32> to vector<16x32xf32>
    %379 = vector.shape_cast %375 : vector<16x32xf32> to vector<1x16x32xf32>
    tpu.vector_store %arg15[%376, %c0_189, %c0_190], %379 {strides = array<i32>} : memref<8x16x32xf32, #tpu.memory_space<vmem>>, vector<1x16x32xf32>,
    %c7_i32 = arith.constant 7 : i32
    %380 = arith.truncf %375 : vector<16x32xf32> to vector<16x32xbf16>
    %cst_191 = arith.constant dense<0.000000e+00> : vector<16x96xf32>
    %381 = tpu.matmul %380, %95, %cst_191 {dimension_numbers = #tpu.dot_dimension_numbers<[1], [0], [0], [1], [0, 0, 1, 1], [], []>} : vector<16x32xbf16>, vector<32x96xbf16>, vector<16x96xf32> -> vector<16x96xf32>
    %382 = arith.index_cast %c7_i32 : i32 to index
    %c0_192 = arith.constant 0 : index
    %c0_193 = arith.constant 0 : index
    %383 = vector.load %arg16[%382, %c0_192, %c0_193] : memref<8x16x96xf32, #tpu.memory_space<vmem>>, vector<1x16x96xf32>
    %384 = vector.shape_cast %383 : vector<1x16x96xf32> to vector<16x96xf32>
    %385 = vector.extract_strided_slice %384 {offsets = [0, 0], sizes = [16, 64], strides = [1, 1]} : vector<16x96xf32> to vector<16x64xf32>
    %386 = vector.extract_strided_slice %381 {offsets = [0, 0], sizes = [16, 64], strides = [1, 1]} : vector<16x96xf32> to vector<16x64xf32>
    %387 = arith.addf %385, %386 : vector<16x64xf32>
    %cst_194 = arith.constant 0.000000e+00 : f32
    %388 = vector.broadcast %cst_194 : f32 to vector<16x64xf32>
    %389 = arith.subf %388, %387 : vector<16x64xf32>
    %390 = math.exp %389 : vector<16x64xf32>
    %cst_195 = arith.constant 1.000000e+00 : f32
    %391 = vector.broadcast %cst_195 : f32 to vector<16x64xf32>
    %392 = arith.addf %391, %390 : vector<16x64xf32>
    %cst_196 = arith.constant 1.000000e+00 : f32
    %393 = vector.broadcast %cst_196 : f32 to vector<16x64xf32>
    %394 = arith.divf %393, %392 : vector<16x64xf32>
    %395 = vector.extract_strided_slice %394 {offsets = [0, 0], sizes = [16, 32], strides = [1, 1]} : vector<16x64xf32> to vector<16x32xf32>
    %396 = vector.extract_strided_slice %394 {offsets = [0, 32], sizes = [16, 32], strides = [1, 1]} : vector<16x64xf32> to vector<16x32xf32>
    %397 = vector.extract_strided_slice %384 {offsets = [0, 64], sizes = [16, 32], strides = [1, 1]} : vector<16x96xf32> to vector<16x32xf32>
    %398 = vector.extract_strided_slice %381 {offsets = [0, 64], sizes = [16, 32], strides = [1, 1]} : vector<16x96xf32> to vector<16x32xf32>
    %399 = arith.addf %398, %103 : vector<16x32xf32>
    %400 = arith.mulf %395, %399 : vector<16x32xf32>
    %401 = arith.addf %397, %400 : vector<16x32xf32>
    %402 = math.tanh %401 : vector<16x32xf32>
    %403 = arith.subf %375, %402 : vector<16x32xf32>
    %404 = arith.mulf %396, %403 : vector<16x32xf32>
    %405 = arith.addf %402, %404 : vector<16x32xf32>
    %406 = arith.index_cast %c7_i32 : i32 to index
    %c0_197 = arith.constant 0 : index
    %c0_198 = arith.constant 0 : index
    %407 = vector.load %arg15[%406, %c0_197, %c0_198] : memref<8x16x32xf32, #tpu.memory_space<vmem>>, vector<1x16x32xf32>
    %408 = vector.shape_cast %407 : vector<1x16x32xf32> to vector<16x32xf32>
    %409 = vector.shape_cast %405 : vector<16x32xf32> to vector<1x16x32xf32>
    tpu.vector_store %arg15[%406, %c0_197, %c0_198], %409 {strides = array<i32>} : memref<8x16x32xf32, #tpu.memory_space<vmem>>, vector<1x16x32xf32>,
    %c8_i32 = arith.constant 8 : i32
    %c0_199 = arith.constant 0 : index
    %c0_200 = arith.constant 0 : index
    %c0_201 = arith.constant 0 : index
    %410 = vector.load %arg14[%c0_199, %c0_200, %c0_201] : memref<2x16x32xf32, #tpu.memory_space<vmem>>, vector<1x16x32xf32>
    %411 = vector.shape_cast %410 : vector<1x16x32xf32> to vector<16x32xf32>
    %412 = vector.shape_cast %405 : vector<16x32xf32> to vector<1x16x32xf32>
    tpu.vector_store %arg14[%c0_199, %c0_200, %c0_201], %412 {strides = array<i32>} : memref<2x16x32xf32, #tpu.memory_space<vmem>>, vector<1x16x32xf32>,
    %c1_202 = arith.constant 1 : index
    %c0_203 = arith.constant 0 : index
    %c0_204 = arith.constant 0 : index
    %413 = vector.load %arg7[%c1_202, %c0_203, %c0_204] : memref<2x32x96xf32, #tpu.memory_space<vmem>>, vector<1x32x96xf32>
    %414 = vector.shape_cast %413 : vector<1x32x96xf32> to vector<32x96xf32>
    %415 = arith.truncf %414 : vector<32x96xf32> to vector<32x96xbf16>
    %c1_205 = arith.constant 1 : index
    %c0_206 = arith.constant 0 : index
    %c0_207 = arith.constant 0 : index
    %416 = vector.load %arg8[%c1_205, %c0_206, %c0_207] : memref<2x32x96xf32, #tpu.memory_space<vmem>>, vector<1x32x96xf32>
    %417 = vector.shape_cast %416 : vector<1x32x96xf32> to vector<32x96xf32>
    %418 = arith.truncf %417 : vector<32x96xf32> to vector<32x96xbf16>
    %c1_208 = arith.constant 1 : index
    %c0_209 = arith.constant 0 : index
    %c0_210 = arith.constant 0 : index
    %419 = vector.load %arg9[%c1_208, %c0_209, %c0_210] : memref<2x1x96xf32, #tpu.memory_space<vmem>>, vector<1x1x96xf32>
    %420 = vector.shape_cast %419 : vector<1x1x96xf32> to vector<1x96xf32>
    %421 = vector.shape_cast %420 : vector<1x96xf32> to vector<1x96xf32>
    %422 = vector.broadcast %421 : vector<1x96xf32> to vector<16x96xf32>
    %c1_211 = arith.constant 1 : index
    %c0_212 = arith.constant 0 : index
    %c0_213 = arith.constant 0 : index
    %423 = vector.load %arg10[%c1_211, %c0_212, %c0_213] : memref<2x1x32xf32, #tpu.memory_space<vmem>>, vector<1x1x32xf32>
    %424 = vector.shape_cast %423 : vector<1x1x32xf32> to vector<1x32xf32>
    %425 = vector.shape_cast %424 : vector<1x32xf32> to vector<1x32xf32>
    %426 = vector.broadcast %425 : vector<1x32xf32> to vector<16x32xf32>
    %c0_214 = arith.constant 0 : index
    %c0_215 = arith.constant 0 : index
    %c0_216 = arith.constant 0 : index
    %427 = vector.load %arg15[%c0_214, %c0_215, %c0_216] : memref<8x16x32xf32, #tpu.memory_space<vmem>>, vector<1x16x32xf32>
    %428 = vector.shape_cast %427 : vector<1x16x32xf32> to vector<16x32xf32>
    %429 = arith.truncf %428 : vector<16x32xf32> to vector<16x32xbf16>
    %cst_217 = arith.constant dense<0.000000e+00> : vector<16x96xf32>
    %430 = tpu.matmul %429, %415, %cst_217 {dimension_numbers = #tpu.dot_dimension_numbers<[1], [0], [0], [1], [0, 0, 1, 1], [], []>} : vector<16x32xbf16>, vector<32x96xbf16>, vector<16x96xf32> -> vector<16x96xf32>
    %431 = arith.addf %430, %422 : vector<16x96xf32>
    %c0_218 = arith.constant 0 : index
    %c0_219 = arith.constant 0 : index
    %c0_220 = arith.constant 0 : index
    %432 = vector.load %arg16[%c0_218, %c0_219, %c0_220] : memref<8x16x96xf32, #tpu.memory_space<vmem>>, vector<1x16x96xf32>
    %433 = vector.shape_cast %432 : vector<1x16x96xf32> to vector<16x96xf32>
    %434 = vector.shape_cast %431 : vector<16x96xf32> to vector<1x16x96xf32>
    tpu.vector_store %arg16[%c0_218, %c0_219, %c0_220], %434 {strides = array<i32>} : memref<8x16x96xf32, #tpu.memory_space<vmem>>, vector<1x16x96xf32>,
    %c1_221 = arith.constant 1 : index
    %c0_222 = arith.constant 0 : index
    %c0_223 = arith.constant 0 : index
    %435 = vector.load %arg15[%c1_221, %c0_222, %c0_223] : memref<8x16x32xf32, #tpu.memory_space<vmem>>, vector<1x16x32xf32>
    %436 = vector.shape_cast %435 : vector<1x16x32xf32> to vector<16x32xf32>
    %437 = arith.truncf %436 : vector<16x32xf32> to vector<16x32xbf16>
    %cst_224 = arith.constant dense<0.000000e+00> : vector<16x96xf32>
    %438 = tpu.matmul %437, %415, %cst_224 {dimension_numbers = #tpu.dot_dimension_numbers<[1], [0], [0], [1], [0, 0, 1, 1], [], []>} : vector<16x32xbf16>, vector<32x96xbf16>, vector<16x96xf32> -> vector<16x96xf32>
    %439 = arith.addf %438, %422 : vector<16x96xf32>
    %c1_225 = arith.constant 1 : index
    %c0_226 = arith.constant 0 : index
    %c0_227 = arith.constant 0 : index
    %440 = vector.load %arg16[%c1_225, %c0_226, %c0_227] : memref<8x16x96xf32, #tpu.memory_space<vmem>>, vector<1x16x96xf32>
    %441 = vector.shape_cast %440 : vector<1x16x96xf32> to vector<16x96xf32>
    %442 = vector.shape_cast %439 : vector<16x96xf32> to vector<1x16x96xf32>
    tpu.vector_store %arg16[%c1_225, %c0_226, %c0_227], %442 {strides = array<i32>} : memref<8x16x96xf32, #tpu.memory_space<vmem>>, vector<1x16x96xf32>,
    %c2_228 = arith.constant 2 : index
    %c0_229 = arith.constant 0 : index
    %c0_230 = arith.constant 0 : index
    %443 = vector.load %arg15[%c2_228, %c0_229, %c0_230] : memref<8x16x32xf32, #tpu.memory_space<vmem>>, vector<1x16x32xf32>
    %444 = vector.shape_cast %443 : vector<1x16x32xf32> to vector<16x32xf32>
    %445 = arith.truncf %444 : vector<16x32xf32> to vector<16x32xbf16>
    %cst_231 = arith.constant dense<0.000000e+00> : vector<16x96xf32>
    %446 = tpu.matmul %445, %415, %cst_231 {dimension_numbers = #tpu.dot_dimension_numbers<[1], [0], [0], [1], [0, 0, 1, 1], [], []>} : vector<16x32xbf16>, vector<32x96xbf16>, vector<16x96xf32> -> vector<16x96xf32>
    %447 = arith.addf %446, %422 : vector<16x96xf32>
    %c2_232 = arith.constant 2 : index
    %c0_233 = arith.constant 0 : index
    %c0_234 = arith.constant 0 : index
    %448 = vector.load %arg16[%c2_232, %c0_233, %c0_234] : memref<8x16x96xf32, #tpu.memory_space<vmem>>, vector<1x16x96xf32>
    %449 = vector.shape_cast %448 : vector<1x16x96xf32> to vector<16x96xf32>
    %450 = vector.shape_cast %447 : vector<16x96xf32> to vector<1x16x96xf32>
    tpu.vector_store %arg16[%c2_232, %c0_233, %c0_234], %450 {strides = array<i32>} : memref<8x16x96xf32, #tpu.memory_space<vmem>>, vector<1x16x96xf32>,
    %c3_235 = arith.constant 3 : index
    %c0_236 = arith.constant 0 : index
    %c0_237 = arith.constant 0 : index
    %451 = vector.load %arg15[%c3_235, %c0_236, %c0_237] : memref<8x16x32xf32, #tpu.memory_space<vmem>>, vector<1x16x32xf32>
    %452 = vector.shape_cast %451 : vector<1x16x32xf32> to vector<16x32xf32>
    %453 = arith.truncf %452 : vector<16x32xf32> to vector<16x32xbf16>
    %cst_238 = arith.constant dense<0.000000e+00> : vector<16x96xf32>
    %454 = tpu.matmul %453, %415, %cst_238 {dimension_numbers = #tpu.dot_dimension_numbers<[1], [0], [0], [1], [0, 0, 1, 1], [], []>} : vector<16x32xbf16>, vector<32x96xbf16>, vector<16x96xf32> -> vector<16x96xf32>
    %455 = arith.addf %454, %422 : vector<16x96xf32>
    %c3_239 = arith.constant 3 : index
    %c0_240 = arith.constant 0 : index
    %c0_241 = arith.constant 0 : index
    %456 = vector.load %arg16[%c3_239, %c0_240, %c0_241] : memref<8x16x96xf32, #tpu.memory_space<vmem>>, vector<1x16x96xf32>
    %457 = vector.shape_cast %456 : vector<1x16x96xf32> to vector<16x96xf32>
    %458 = vector.shape_cast %455 : vector<16x96xf32> to vector<1x16x96xf32>
    tpu.vector_store %arg16[%c3_239, %c0_240, %c0_241], %458 {strides = array<i32>} : memref<8x16x96xf32, #tpu.memory_space<vmem>>, vector<1x16x96xf32>,
    %c4_242 = arith.constant 4 : index
    %c0_243 = arith.constant 0 : index
    %c0_244 = arith.constant 0 : index
    %459 = vector.load %arg15[%c4_242, %c0_243, %c0_244] : memref<8x16x32xf32, #tpu.memory_space<vmem>>, vector<1x16x32xf32>
    %460 = vector.shape_cast %459 : vector<1x16x32xf32> to vector<16x32xf32>
    %461 = arith.truncf %460 : vector<16x32xf32> to vector<16x32xbf16>
    %cst_245 = arith.constant dense<0.000000e+00> : vector<16x96xf32>
    %462 = tpu.matmul %461, %415, %cst_245 {dimension_numbers = #tpu.dot_dimension_numbers<[1], [0], [0], [1], [0, 0, 1, 1], [], []>} : vector<16x32xbf16>, vector<32x96xbf16>, vector<16x96xf32> -> vector<16x96xf32>
    %463 = arith.addf %462, %422 : vector<16x96xf32>
    %c4_246 = arith.constant 4 : index
    %c0_247 = arith.constant 0 : index
    %c0_248 = arith.constant 0 : index
    %464 = vector.load %arg16[%c4_246, %c0_247, %c0_248] : memref<8x16x96xf32, #tpu.memory_space<vmem>>, vector<1x16x96xf32>
    %465 = vector.shape_cast %464 : vector<1x16x96xf32> to vector<16x96xf32>
    %466 = vector.shape_cast %463 : vector<16x96xf32> to vector<1x16x96xf32>
    tpu.vector_store %arg16[%c4_246, %c0_247, %c0_248], %466 {strides = array<i32>} : memref<8x16x96xf32, #tpu.memory_space<vmem>>, vector<1x16x96xf32>,
    %c5_249 = arith.constant 5 : index
    %c0_250 = arith.constant 0 : index
    %c0_251 = arith.constant 0 : index
    %467 = vector.load %arg15[%c5_249, %c0_250, %c0_251] : memref<8x16x32xf32, #tpu.memory_space<vmem>>, vector<1x16x32xf32>
    %468 = vector.shape_cast %467 : vector<1x16x32xf32> to vector<16x32xf32>
    %469 = arith.truncf %468 : vector<16x32xf32> to vector<16x32xbf16>
    %cst_252 = arith.constant dense<0.000000e+00> : vector<16x96xf32>
    %470 = tpu.matmul %469, %415, %cst_252 {dimension_numbers = #tpu.dot_dimension_numbers<[1], [0], [0], [1], [0, 0, 1, 1], [], []>} : vector<16x32xbf16>, vector<32x96xbf16>, vector<16x96xf32> -> vector<16x96xf32>
    %471 = arith.addf %470, %422 : vector<16x96xf32>
    %c5_253 = arith.constant 5 : index
    %c0_254 = arith.constant 0 : index
    %c0_255 = arith.constant 0 : index
    %472 = vector.load %arg16[%c5_253, %c0_254, %c0_255] : memref<8x16x96xf32, #tpu.memory_space<vmem>>, vector<1x16x96xf32>
    %473 = vector.shape_cast %472 : vector<1x16x96xf32> to vector<16x96xf32>
    %474 = vector.shape_cast %471 : vector<16x96xf32> to vector<1x16x96xf32>
    tpu.vector_store %arg16[%c5_253, %c0_254, %c0_255], %474 {strides = array<i32>} : memref<8x16x96xf32, #tpu.memory_space<vmem>>, vector<1x16x96xf32>,
    %c6_256 = arith.constant 6 : index
    %c0_257 = arith.constant 0 : index
    %c0_258 = arith.constant 0 : index
    %475 = vector.load %arg15[%c6_256, %c0_257, %c0_258] : memref<8x16x32xf32, #tpu.memory_space<vmem>>, vector<1x16x32xf32>
    %476 = vector.shape_cast %475 : vector<1x16x32xf32> to vector<16x32xf32>
    %477 = arith.truncf %476 : vector<16x32xf32> to vector<16x32xbf16>
    %cst_259 = arith.constant dense<0.000000e+00> : vector<16x96xf32>
    %478 = tpu.matmul %477, %415, %cst_259 {dimension_numbers = #tpu.dot_dimension_numbers<[1], [0], [0], [1], [0, 0, 1, 1], [], []>} : vector<16x32xbf16>, vector<32x96xbf16>, vector<16x96xf32> -> vector<16x96xf32>
    %479 = arith.addf %478, %422 : vector<16x96xf32>
    %c6_260 = arith.constant 6 : index
    %c0_261 = arith.constant 0 : index
    %c0_262 = arith.constant 0 : index
    %480 = vector.load %arg16[%c6_260, %c0_261, %c0_262] : memref<8x16x96xf32, #tpu.memory_space<vmem>>, vector<1x16x96xf32>
    %481 = vector.shape_cast %480 : vector<1x16x96xf32> to vector<16x96xf32>
    %482 = vector.shape_cast %479 : vector<16x96xf32> to vector<1x16x96xf32>
    tpu.vector_store %arg16[%c6_260, %c0_261, %c0_262], %482 {strides = array<i32>} : memref<8x16x96xf32, #tpu.memory_space<vmem>>, vector<1x16x96xf32>,
    %c7_263 = arith.constant 7 : index
    %c0_264 = arith.constant 0 : index
    %c0_265 = arith.constant 0 : index
    %483 = vector.load %arg15[%c7_263, %c0_264, %c0_265] : memref<8x16x32xf32, #tpu.memory_space<vmem>>, vector<1x16x32xf32>
    %484 = vector.shape_cast %483 : vector<1x16x32xf32> to vector<16x32xf32>
    %485 = arith.truncf %484 : vector<16x32xf32> to vector<16x32xbf16>
    %cst_266 = arith.constant dense<0.000000e+00> : vector<16x96xf32>
    %486 = tpu.matmul %485, %415, %cst_266 {dimension_numbers = #tpu.dot_dimension_numbers<[1], [0], [0], [1], [0, 0, 1, 1], [], []>} : vector<16x32xbf16>, vector<32x96xbf16>, vector<16x96xf32> -> vector<16x96xf32>
    %487 = arith.addf %486, %422 : vector<16x96xf32>
    %c7_267 = arith.constant 7 : index
    %c0_268 = arith.constant 0 : index
    %c0_269 = arith.constant 0 : index
    %488 = vector.load %arg16[%c7_267, %c0_268, %c0_269] : memref<8x16x96xf32, #tpu.memory_space<vmem>>, vector<1x16x96xf32>
    %489 = vector.shape_cast %488 : vector<1x16x96xf32> to vector<16x96xf32>
    %490 = vector.shape_cast %487 : vector<16x96xf32> to vector<1x16x96xf32>
    tpu.vector_store %arg16[%c7_267, %c0_268, %c0_269], %490 {strides = array<i32>} : memref<8x16x96xf32, #tpu.memory_space<vmem>>, vector<1x16x96xf32>,
    %c1_270 = arith.constant 1 : index
    %c0_271 = arith.constant 0 : index
    %c0_272 = arith.constant 0 : index
    %491 = vector.load %arg3[%c1_270, %c0_271, %c0_272] : memref<2x16x32xf32, #tpu.memory_space<vmem>>, vector<1x16x32xf32>
    %492 = vector.shape_cast %491 : vector<1x16x32xf32> to vector<16x32xf32>
    %c0_i32_273 = arith.constant 0 : i32
    %493 = arith.truncf %492 : vector<16x32xf32> to vector<16x32xbf16>
    %cst_274 = arith.constant dense<0.000000e+00> : vector<16x96xf32>
    %494 = tpu.matmul %493, %418, %cst_274 {dimension_numbers = #tpu.dot_dimension_numbers<[1], [0], [0], [1], [0, 0, 1, 1], [], []>} : vector<16x32xbf16>, vector<32x96xbf16>, vector<16x96xf32> -> vector<16x96xf32>
    %495 = arith.index_cast %c0_i32_273 : i32 to index
    %c0_275 = arith.constant 0 : index
    %c0_276 = arith.constant 0 : index
    %496 = vector.load %arg16[%495, %c0_275, %c0_276] : memref<8x16x96xf32, #tpu.memory_space<vmem>>, vector<1x16x96xf32>
    %497 = vector.shape_cast %496 : vector<1x16x96xf32> to vector<16x96xf32>
    %498 = vector.extract_strided_slice %497 {offsets = [0, 0], sizes = [16, 64], strides = [1, 1]} : vector<16x96xf32> to vector<16x64xf32>
    %499 = vector.extract_strided_slice %494 {offsets = [0, 0], sizes = [16, 64], strides = [1, 1]} : vector<16x96xf32> to vector<16x64xf32>
    %500 = arith.addf %498, %499 : vector<16x64xf32>
    %cst_277 = arith.constant 0.000000e+00 : f32
    %501 = vector.broadcast %cst_277 : f32 to vector<16x64xf32>
    %502 = arith.subf %501, %500 : vector<16x64xf32>
    %503 = math.exp %502 : vector<16x64xf32>
    %cst_278 = arith.constant 1.000000e+00 : f32
    %504 = vector.broadcast %cst_278 : f32 to vector<16x64xf32>
    %505 = arith.addf %504, %503 : vector<16x64xf32>
    %cst_279 = arith.constant 1.000000e+00 : f32
    %506 = vector.broadcast %cst_279 : f32 to vector<16x64xf32>
    %507 = arith.divf %506, %505 : vector<16x64xf32>
    %508 = vector.extract_strided_slice %507 {offsets = [0, 0], sizes = [16, 32], strides = [1, 1]} : vector<16x64xf32> to vector<16x32xf32>
    %509 = vector.extract_strided_slice %507 {offsets = [0, 32], sizes = [16, 32], strides = [1, 1]} : vector<16x64xf32> to vector<16x32xf32>
    %510 = vector.extract_strided_slice %497 {offsets = [0, 64], sizes = [16, 32], strides = [1, 1]} : vector<16x96xf32> to vector<16x32xf32>
    %511 = vector.extract_strided_slice %494 {offsets = [0, 64], sizes = [16, 32], strides = [1, 1]} : vector<16x96xf32> to vector<16x32xf32>
    %512 = arith.addf %511, %426 : vector<16x32xf32>
    %513 = arith.mulf %508, %512 : vector<16x32xf32>
    %514 = arith.addf %510, %513 : vector<16x32xf32>
    %515 = math.tanh %514 : vector<16x32xf32>
    %516 = arith.subf %492, %515 : vector<16x32xf32>
    %517 = arith.mulf %509, %516 : vector<16x32xf32>
    %518 = arith.addf %515, %517 : vector<16x32xf32>
    %519 = arith.index_cast %c0_i32_273 : i32 to index
    %c0_280 = arith.constant 0 : index
    %c0_281 = arith.constant 0 : index
    %520 = vector.load %arg15[%519, %c0_280, %c0_281] : memref<8x16x32xf32, #tpu.memory_space<vmem>>, vector<1x16x32xf32>
    %521 = vector.shape_cast %520 : vector<1x16x32xf32> to vector<16x32xf32>
    %522 = vector.shape_cast %518 : vector<16x32xf32> to vector<1x16x32xf32>
    tpu.vector_store %arg15[%519, %c0_280, %c0_281], %522 {strides = array<i32>} : memref<8x16x32xf32, #tpu.memory_space<vmem>>, vector<1x16x32xf32>,
    %c1_i32_282 = arith.constant 1 : i32
    %523 = arith.truncf %518 : vector<16x32xf32> to vector<16x32xbf16>
    %cst_283 = arith.constant dense<0.000000e+00> : vector<16x96xf32>
    %524 = tpu.matmul %523, %418, %cst_283 {dimension_numbers = #tpu.dot_dimension_numbers<[1], [0], [0], [1], [0, 0, 1, 1], [], []>} : vector<16x32xbf16>, vector<32x96xbf16>, vector<16x96xf32> -> vector<16x96xf32>
    %525 = arith.index_cast %c1_i32_282 : i32 to index
    %c0_284 = arith.constant 0 : index
    %c0_285 = arith.constant 0 : index
    %526 = vector.load %arg16[%525, %c0_284, %c0_285] : memref<8x16x96xf32, #tpu.memory_space<vmem>>, vector<1x16x96xf32>
    %527 = vector.shape_cast %526 : vector<1x16x96xf32> to vector<16x96xf32>
    %528 = vector.extract_strided_slice %527 {offsets = [0, 0], sizes = [16, 64], strides = [1, 1]} : vector<16x96xf32> to vector<16x64xf32>
    %529 = vector.extract_strided_slice %524 {offsets = [0, 0], sizes = [16, 64], strides = [1, 1]} : vector<16x96xf32> to vector<16x64xf32>
    %530 = arith.addf %528, %529 : vector<16x64xf32>
    %cst_286 = arith.constant 0.000000e+00 : f32
    %531 = vector.broadcast %cst_286 : f32 to vector<16x64xf32>
    %532 = arith.subf %531, %530 : vector<16x64xf32>
    %533 = math.exp %532 : vector<16x64xf32>
    %cst_287 = arith.constant 1.000000e+00 : f32
    %534 = vector.broadcast %cst_287 : f32 to vector<16x64xf32>
    %535 = arith.addf %534, %533 : vector<16x64xf32>
    %cst_288 = arith.constant 1.000000e+00 : f32
    %536 = vector.broadcast %cst_288 : f32 to vector<16x64xf32>
    %537 = arith.divf %536, %535 : vector<16x64xf32>
    %538 = vector.extract_strided_slice %537 {offsets = [0, 0], sizes = [16, 32], strides = [1, 1]} : vector<16x64xf32> to vector<16x32xf32>
    %539 = vector.extract_strided_slice %537 {offsets = [0, 32], sizes = [16, 32], strides = [1, 1]} : vector<16x64xf32> to vector<16x32xf32>
    %540 = vector.extract_strided_slice %527 {offsets = [0, 64], sizes = [16, 32], strides = [1, 1]} : vector<16x96xf32> to vector<16x32xf32>
    %541 = vector.extract_strided_slice %524 {offsets = [0, 64], sizes = [16, 32], strides = [1, 1]} : vector<16x96xf32> to vector<16x32xf32>
    %542 = arith.addf %541, %426 : vector<16x32xf32>
    %543 = arith.mulf %538, %542 : vector<16x32xf32>
    %544 = arith.addf %540, %543 : vector<16x32xf32>
    %545 = math.tanh %544 : vector<16x32xf32>
    %546 = arith.subf %518, %545 : vector<16x32xf32>
    %547 = arith.mulf %539, %546 : vector<16x32xf32>
    %548 = arith.addf %545, %547 : vector<16x32xf32>
    %549 = arith.index_cast %c1_i32_282 : i32 to index
    %c0_289 = arith.constant 0 : index
    %c0_290 = arith.constant 0 : index
    %550 = vector.load %arg15[%549, %c0_289, %c0_290] : memref<8x16x32xf32, #tpu.memory_space<vmem>>, vector<1x16x32xf32>
    %551 = vector.shape_cast %550 : vector<1x16x32xf32> to vector<16x32xf32>
    %552 = vector.shape_cast %548 : vector<16x32xf32> to vector<1x16x32xf32>
    tpu.vector_store %arg15[%549, %c0_289, %c0_290], %552 {strides = array<i32>} : memref<8x16x32xf32, #tpu.memory_space<vmem>>, vector<1x16x32xf32>,
    %c2_i32_291 = arith.constant 2 : i32
    %553 = arith.truncf %548 : vector<16x32xf32> to vector<16x32xbf16>
    %cst_292 = arith.constant dense<0.000000e+00> : vector<16x96xf32>
    %554 = tpu.matmul %553, %418, %cst_292 {dimension_numbers = #tpu.dot_dimension_numbers<[1], [0], [0], [1], [0, 0, 1, 1], [], []>} : vector<16x32xbf16>, vector<32x96xbf16>, vector<16x96xf32> -> vector<16x96xf32>
    %555 = arith.index_cast %c2_i32_291 : i32 to index
    %c0_293 = arith.constant 0 : index
    %c0_294 = arith.constant 0 : index
    %556 = vector.load %arg16[%555, %c0_293, %c0_294] : memref<8x16x96xf32, #tpu.memory_space<vmem>>, vector<1x16x96xf32>
    %557 = vector.shape_cast %556 : vector<1x16x96xf32> to vector<16x96xf32>
    %558 = vector.extract_strided_slice %557 {offsets = [0, 0], sizes = [16, 64], strides = [1, 1]} : vector<16x96xf32> to vector<16x64xf32>
    %559 = vector.extract_strided_slice %554 {offsets = [0, 0], sizes = [16, 64], strides = [1, 1]} : vector<16x96xf32> to vector<16x64xf32>
    %560 = arith.addf %558, %559 : vector<16x64xf32>
    %cst_295 = arith.constant 0.000000e+00 : f32
    %561 = vector.broadcast %cst_295 : f32 to vector<16x64xf32>
    %562 = arith.subf %561, %560 : vector<16x64xf32>
    %563 = math.exp %562 : vector<16x64xf32>
    %cst_296 = arith.constant 1.000000e+00 : f32
    %564 = vector.broadcast %cst_296 : f32 to vector<16x64xf32>
    %565 = arith.addf %564, %563 : vector<16x64xf32>
    %cst_297 = arith.constant 1.000000e+00 : f32
    %566 = vector.broadcast %cst_297 : f32 to vector<16x64xf32>
    %567 = arith.divf %566, %565 : vector<16x64xf32>
    %568 = vector.extract_strided_slice %567 {offsets = [0, 0], sizes = [16, 32], strides = [1, 1]} : vector<16x64xf32> to vector<16x32xf32>
    %569 = vector.extract_strided_slice %567 {offsets = [0, 32], sizes = [16, 32], strides = [1, 1]} : vector<16x64xf32> to vector<16x32xf32>
    %570 = vector.extract_strided_slice %557 {offsets = [0, 64], sizes = [16, 32], strides = [1, 1]} : vector<16x96xf32> to vector<16x32xf32>
    %571 = vector.extract_strided_slice %554 {offsets = [0, 64], sizes = [16, 32], strides = [1, 1]} : vector<16x96xf32> to vector<16x32xf32>
    %572 = arith.addf %571, %426 : vector<16x32xf32>
    %573 = arith.mulf %568, %572 : vector<16x32xf32>
    %574 = arith.addf %570, %573 : vector<16x32xf32>
    %575 = math.tanh %574 : vector<16x32xf32>
    %576 = arith.subf %548, %575 : vector<16x32xf32>
    %577 = arith.mulf %569, %576 : vector<16x32xf32>
    %578 = arith.addf %575, %577 : vector<16x32xf32>
    %579 = arith.index_cast %c2_i32_291 : i32 to index
    %c0_298 = arith.constant 0 : index
    %c0_299 = arith.constant 0 : index
    %580 = vector.load %arg15[%579, %c0_298, %c0_299] : memref<8x16x32xf32, #tpu.memory_space<vmem>>, vector<1x16x32xf32>
    %581 = vector.shape_cast %580 : vector<1x16x32xf32> to vector<16x32xf32>
    %582 = vector.shape_cast %578 : vector<16x32xf32> to vector<1x16x32xf32>
    tpu.vector_store %arg15[%579, %c0_298, %c0_299], %582 {strides = array<i32>} : memref<8x16x32xf32, #tpu.memory_space<vmem>>, vector<1x16x32xf32>,
    %c3_i32_300 = arith.constant 3 : i32
    %583 = arith.truncf %578 : vector<16x32xf32> to vector<16x32xbf16>
    %cst_301 = arith.constant dense<0.000000e+00> : vector<16x96xf32>
    %584 = tpu.matmul %583, %418, %cst_301 {dimension_numbers = #tpu.dot_dimension_numbers<[1], [0], [0], [1], [0, 0, 1, 1], [], []>} : vector<16x32xbf16>, vector<32x96xbf16>, vector<16x96xf32> -> vector<16x96xf32>
    %585 = arith.index_cast %c3_i32_300 : i32 to index
    %c0_302 = arith.constant 0 : index
    %c0_303 = arith.constant 0 : index
    %586 = vector.load %arg16[%585, %c0_302, %c0_303] : memref<8x16x96xf32, #tpu.memory_space<vmem>>, vector<1x16x96xf32>
    %587 = vector.shape_cast %586 : vector<1x16x96xf32> to vector<16x96xf32>
    %588 = vector.extract_strided_slice %587 {offsets = [0, 0], sizes = [16, 64], strides = [1, 1]} : vector<16x96xf32> to vector<16x64xf32>
    %589 = vector.extract_strided_slice %584 {offsets = [0, 0], sizes = [16, 64], strides = [1, 1]} : vector<16x96xf32> to vector<16x64xf32>
    %590 = arith.addf %588, %589 : vector<16x64xf32>
    %cst_304 = arith.constant 0.000000e+00 : f32
    %591 = vector.broadcast %cst_304 : f32 to vector<16x64xf32>
    %592 = arith.subf %591, %590 : vector<16x64xf32>
    %593 = math.exp %592 : vector<16x64xf32>
    %cst_305 = arith.constant 1.000000e+00 : f32
    %594 = vector.broadcast %cst_305 : f32 to vector<16x64xf32>
    %595 = arith.addf %594, %593 : vector<16x64xf32>
    %cst_306 = arith.constant 1.000000e+00 : f32
    %596 = vector.broadcast %cst_306 : f32 to vector<16x64xf32>
    %597 = arith.divf %596, %595 : vector<16x64xf32>
    %598 = vector.extract_strided_slice %597 {offsets = [0, 0], sizes = [16, 32], strides = [1, 1]} : vector<16x64xf32> to vector<16x32xf32>
    %599 = vector.extract_strided_slice %597 {offsets = [0, 32], sizes = [16, 32], strides = [1, 1]} : vector<16x64xf32> to vector<16x32xf32>
    %600 = vector.extract_strided_slice %587 {offsets = [0, 64], sizes = [16, 32], strides = [1, 1]} : vector<16x96xf32> to vector<16x32xf32>
    %601 = vector.extract_strided_slice %584 {offsets = [0, 64], sizes = [16, 32], strides = [1, 1]} : vector<16x96xf32> to vector<16x32xf32>
    %602 = arith.addf %601, %426 : vector<16x32xf32>
    %603 = arith.mulf %598, %602 : vector<16x32xf32>
    %604 = arith.addf %600, %603 : vector<16x32xf32>
    %605 = math.tanh %604 : vector<16x32xf32>
    %606 = arith.subf %578, %605 : vector<16x32xf32>
    %607 = arith.mulf %599, %606 : vector<16x32xf32>
    %608 = arith.addf %605, %607 : vector<16x32xf32>
    %609 = arith.index_cast %c3_i32_300 : i32 to index
    %c0_307 = arith.constant 0 : index
    %c0_308 = arith.constant 0 : index
    %610 = vector.load %arg15[%609, %c0_307, %c0_308] : memref<8x16x32xf32, #tpu.memory_space<vmem>>, vector<1x16x32xf32>
    %611 = vector.shape_cast %610 : vector<1x16x32xf32> to vector<16x32xf32>
    %612 = vector.shape_cast %608 : vector<16x32xf32> to vector<1x16x32xf32>
    tpu.vector_store %arg15[%609, %c0_307, %c0_308], %612 {strides = array<i32>} : memref<8x16x32xf32, #tpu.memory_space<vmem>>, vector<1x16x32xf32>,
    %c4_i32_309 = arith.constant 4 : i32
    %613 = arith.truncf %608 : vector<16x32xf32> to vector<16x32xbf16>
    %cst_310 = arith.constant dense<0.000000e+00> : vector<16x96xf32>
    %614 = tpu.matmul %613, %418, %cst_310 {dimension_numbers = #tpu.dot_dimension_numbers<[1], [0], [0], [1], [0, 0, 1, 1], [], []>} : vector<16x32xbf16>, vector<32x96xbf16>, vector<16x96xf32> -> vector<16x96xf32>
    %615 = arith.index_cast %c4_i32_309 : i32 to index
    %c0_311 = arith.constant 0 : index
    %c0_312 = arith.constant 0 : index
    %616 = vector.load %arg16[%615, %c0_311, %c0_312] : memref<8x16x96xf32, #tpu.memory_space<vmem>>, vector<1x16x96xf32>
    %617 = vector.shape_cast %616 : vector<1x16x96xf32> to vector<16x96xf32>
    %618 = vector.extract_strided_slice %617 {offsets = [0, 0], sizes = [16, 64], strides = [1, 1]} : vector<16x96xf32> to vector<16x64xf32>
    %619 = vector.extract_strided_slice %614 {offsets = [0, 0], sizes = [16, 64], strides = [1, 1]} : vector<16x96xf32> to vector<16x64xf32>
    %620 = arith.addf %618, %619 : vector<16x64xf32>
    %cst_313 = arith.constant 0.000000e+00 : f32
    %621 = vector.broadcast %cst_313 : f32 to vector<16x64xf32>
    %622 = arith.subf %621, %620 : vector<16x64xf32>
    %623 = math.exp %622 : vector<16x64xf32>
    %cst_314 = arith.constant 1.000000e+00 : f32
    %624 = vector.broadcast %cst_314 : f32 to vector<16x64xf32>
    %625 = arith.addf %624, %623 : vector<16x64xf32>
    %cst_315 = arith.constant 1.000000e+00 : f32
    %626 = vector.broadcast %cst_315 : f32 to vector<16x64xf32>
    %627 = arith.divf %626, %625 : vector<16x64xf32>
    %628 = vector.extract_strided_slice %627 {offsets = [0, 0], sizes = [16, 32], strides = [1, 1]} : vector<16x64xf32> to vector<16x32xf32>
    %629 = vector.extract_strided_slice %627 {offsets = [0, 32], sizes = [16, 32], strides = [1, 1]} : vector<16x64xf32> to vector<16x32xf32>
    %630 = vector.extract_strided_slice %617 {offsets = [0, 64], sizes = [16, 32], strides = [1, 1]} : vector<16x96xf32> to vector<16x32xf32>
    %631 = vector.extract_strided_slice %614 {offsets = [0, 64], sizes = [16, 32], strides = [1, 1]} : vector<16x96xf32> to vector<16x32xf32>
    %632 = arith.addf %631, %426 : vector<16x32xf32>
    %633 = arith.mulf %628, %632 : vector<16x32xf32>
    %634 = arith.addf %630, %633 : vector<16x32xf32>
    %635 = math.tanh %634 : vector<16x32xf32>
    %636 = arith.subf %608, %635 : vector<16x32xf32>
    %637 = arith.mulf %629, %636 : vector<16x32xf32>
    %638 = arith.addf %635, %637 : vector<16x32xf32>
    %639 = arith.index_cast %c4_i32_309 : i32 to index
    %c0_316 = arith.constant 0 : index
    %c0_317 = arith.constant 0 : index
    %640 = vector.load %arg15[%639, %c0_316, %c0_317] : memref<8x16x32xf32, #tpu.memory_space<vmem>>, vector<1x16x32xf32>
    %641 = vector.shape_cast %640 : vector<1x16x32xf32> to vector<16x32xf32>
    %642 = vector.shape_cast %638 : vector<16x32xf32> to vector<1x16x32xf32>
    tpu.vector_store %arg15[%639, %c0_316, %c0_317], %642 {strides = array<i32>} : memref<8x16x32xf32, #tpu.memory_space<vmem>>, vector<1x16x32xf32>,
    %c5_i32_318 = arith.constant 5 : i32
    %643 = arith.truncf %638 : vector<16x32xf32> to vector<16x32xbf16>
    %cst_319 = arith.constant dense<0.000000e+00> : vector<16x96xf32>
    %644 = tpu.matmul %643, %418, %cst_319 {dimension_numbers = #tpu.dot_dimension_numbers<[1], [0], [0], [1], [0, 0, 1, 1], [], []>} : vector<16x32xbf16>, vector<32x96xbf16>, vector<16x96xf32> -> vector<16x96xf32>
    %645 = arith.index_cast %c5_i32_318 : i32 to index
    %c0_320 = arith.constant 0 : index
    %c0_321 = arith.constant 0 : index
    %646 = vector.load %arg16[%645, %c0_320, %c0_321] : memref<8x16x96xf32, #tpu.memory_space<vmem>>, vector<1x16x96xf32>
    %647 = vector.shape_cast %646 : vector<1x16x96xf32> to vector<16x96xf32>
    %648 = vector.extract_strided_slice %647 {offsets = [0, 0], sizes = [16, 64], strides = [1, 1]} : vector<16x96xf32> to vector<16x64xf32>
    %649 = vector.extract_strided_slice %644 {offsets = [0, 0], sizes = [16, 64], strides = [1, 1]} : vector<16x96xf32> to vector<16x64xf32>
    %650 = arith.addf %648, %649 : vector<16x64xf32>
    %cst_322 = arith.constant 0.000000e+00 : f32
    %651 = vector.broadcast %cst_322 : f32 to vector<16x64xf32>
    %652 = arith.subf %651, %650 : vector<16x64xf32>
    %653 = math.exp %652 : vector<16x64xf32>
    %cst_323 = arith.constant 1.000000e+00 : f32
    %654 = vector.broadcast %cst_323 : f32 to vector<16x64xf32>
    %655 = arith.addf %654, %653 : vector<16x64xf32>
    %cst_324 = arith.constant 1.000000e+00 : f32
    %656 = vector.broadcast %cst_324 : f32 to vector<16x64xf32>
    %657 = arith.divf %656, %655 : vector<16x64xf32>
    %658 = vector.extract_strided_slice %657 {offsets = [0, 0], sizes = [16, 32], strides = [1, 1]} : vector<16x64xf32> to vector<16x32xf32>
    %659 = vector.extract_strided_slice %657 {offsets = [0, 32], sizes = [16, 32], strides = [1, 1]} : vector<16x64xf32> to vector<16x32xf32>
    %660 = vector.extract_strided_slice %647 {offsets = [0, 64], sizes = [16, 32], strides = [1, 1]} : vector<16x96xf32> to vector<16x32xf32>
    %661 = vector.extract_strided_slice %644 {offsets = [0, 64], sizes = [16, 32], strides = [1, 1]} : vector<16x96xf32> to vector<16x32xf32>
    %662 = arith.addf %661, %426 : vector<16x32xf32>
    %663 = arith.mulf %658, %662 : vector<16x32xf32>
    %664 = arith.addf %660, %663 : vector<16x32xf32>
    %665 = math.tanh %664 : vector<16x32xf32>
    %666 = arith.subf %638, %665 : vector<16x32xf32>
    %667 = arith.mulf %659, %666 : vector<16x32xf32>
    %668 = arith.addf %665, %667 : vector<16x32xf32>
    %669 = arith.index_cast %c5_i32_318 : i32 to index
    %c0_325 = arith.constant 0 : index
    %c0_326 = arith.constant 0 : index
    %670 = vector.load %arg15[%669, %c0_325, %c0_326] : memref<8x16x32xf32, #tpu.memory_space<vmem>>, vector<1x16x32xf32>
    %671 = vector.shape_cast %670 : vector<1x16x32xf32> to vector<16x32xf32>
    %672 = vector.shape_cast %668 : vector<16x32xf32> to vector<1x16x32xf32>
    tpu.vector_store %arg15[%669, %c0_325, %c0_326], %672 {strides = array<i32>} : memref<8x16x32xf32, #tpu.memory_space<vmem>>, vector<1x16x32xf32>,
    %c6_i32_327 = arith.constant 6 : i32
    %673 = arith.truncf %668 : vector<16x32xf32> to vector<16x32xbf16>
    %cst_328 = arith.constant dense<0.000000e+00> : vector<16x96xf32>
    %674 = tpu.matmul %673, %418, %cst_328 {dimension_numbers = #tpu.dot_dimension_numbers<[1], [0], [0], [1], [0, 0, 1, 1], [], []>} : vector<16x32xbf16>, vector<32x96xbf16>, vector<16x96xf32> -> vector<16x96xf32>
    %675 = arith.index_cast %c6_i32_327 : i32 to index
    %c0_329 = arith.constant 0 : index
    %c0_330 = arith.constant 0 : index
    %676 = vector.load %arg16[%675, %c0_329, %c0_330] : memref<8x16x96xf32, #tpu.memory_space<vmem>>, vector<1x16x96xf32>
    %677 = vector.shape_cast %676 : vector<1x16x96xf32> to vector<16x96xf32>
    %678 = vector.extract_strided_slice %677 {offsets = [0, 0], sizes = [16, 64], strides = [1, 1]} : vector<16x96xf32> to vector<16x64xf32>
    %679 = vector.extract_strided_slice %674 {offsets = [0, 0], sizes = [16, 64], strides = [1, 1]} : vector<16x96xf32> to vector<16x64xf32>
    %680 = arith.addf %678, %679 : vector<16x64xf32>
    %cst_331 = arith.constant 0.000000e+00 : f32
    %681 = vector.broadcast %cst_331 : f32 to vector<16x64xf32>
    %682 = arith.subf %681, %680 : vector<16x64xf32>
    %683 = math.exp %682 : vector<16x64xf32>
    %cst_332 = arith.constant 1.000000e+00 : f32
    %684 = vector.broadcast %cst_332 : f32 to vector<16x64xf32>
    %685 = arith.addf %684, %683 : vector<16x64xf32>
    %cst_333 = arith.constant 1.000000e+00 : f32
    %686 = vector.broadcast %cst_333 : f32 to vector<16x64xf32>
    %687 = arith.divf %686, %685 : vector<16x64xf32>
    %688 = vector.extract_strided_slice %687 {offsets = [0, 0], sizes = [16, 32], strides = [1, 1]} : vector<16x64xf32> to vector<16x32xf32>
    %689 = vector.extract_strided_slice %687 {offsets = [0, 32], sizes = [16, 32], strides = [1, 1]} : vector<16x64xf32> to vector<16x32xf32>
    %690 = vector.extract_strided_slice %677 {offsets = [0, 64], sizes = [16, 32], strides = [1, 1]} : vector<16x96xf32> to vector<16x32xf32>
    %691 = vector.extract_strided_slice %674 {offsets = [0, 64], sizes = [16, 32], strides = [1, 1]} : vector<16x96xf32> to vector<16x32xf32>
    %692 = arith.addf %691, %426 : vector<16x32xf32>
    %693 = arith.mulf %688, %692 : vector<16x32xf32>
    %694 = arith.addf %690, %693 : vector<16x32xf32>
    %695 = math.tanh %694 : vector<16x32xf32>
    %696 = arith.subf %668, %695 : vector<16x32xf32>
    %697 = arith.mulf %689, %696 : vector<16x32xf32>
    %698 = arith.addf %695, %697 : vector<16x32xf32>
    %699 = arith.index_cast %c6_i32_327 : i32 to index
    %c0_334 = arith.constant 0 : index
    %c0_335 = arith.constant 0 : index
    %700 = vector.load %arg15[%699, %c0_334, %c0_335] : memref<8x16x32xf32, #tpu.memory_space<vmem>>, vector<1x16x32xf32>
    %701 = vector.shape_cast %700 : vector<1x16x32xf32> to vector<16x32xf32>
    %702 = vector.shape_cast %698 : vector<16x32xf32> to vector<1x16x32xf32>
    tpu.vector_store %arg15[%699, %c0_334, %c0_335], %702 {strides = array<i32>} : memref<8x16x32xf32, #tpu.memory_space<vmem>>, vector<1x16x32xf32>,
    %c7_i32_336 = arith.constant 7 : i32
    %703 = arith.truncf %698 : vector<16x32xf32> to vector<16x32xbf16>
    %cst_337 = arith.constant dense<0.000000e+00> : vector<16x96xf32>
    %704 = tpu.matmul %703, %418, %cst_337 {dimension_numbers = #tpu.dot_dimension_numbers<[1], [0], [0], [1], [0, 0, 1, 1], [], []>} : vector<16x32xbf16>, vector<32x96xbf16>, vector<16x96xf32> -> vector<16x96xf32>
    %705 = arith.index_cast %c7_i32_336 : i32 to index
    %c0_338 = arith.constant 0 : index
    %c0_339 = arith.constant 0 : index
    %706 = vector.load %arg16[%705, %c0_338, %c0_339] : memref<8x16x96xf32, #tpu.memory_space<vmem>>, vector<1x16x96xf32>
    %707 = vector.shape_cast %706 : vector<1x16x96xf32> to vector<16x96xf32>
    %708 = vector.extract_strided_slice %707 {offsets = [0, 0], sizes = [16, 64], strides = [1, 1]} : vector<16x96xf32> to vector<16x64xf32>
    %709 = vector.extract_strided_slice %704 {offsets = [0, 0], sizes = [16, 64], strides = [1, 1]} : vector<16x96xf32> to vector<16x64xf32>
    %710 = arith.addf %708, %709 : vector<16x64xf32>
    %cst_340 = arith.constant 0.000000e+00 : f32
    %711 = vector.broadcast %cst_340 : f32 to vector<16x64xf32>
    %712 = arith.subf %711, %710 : vector<16x64xf32>
    %713 = math.exp %712 : vector<16x64xf32>
    %cst_341 = arith.constant 1.000000e+00 : f32
    %714 = vector.broadcast %cst_341 : f32 to vector<16x64xf32>
    %715 = arith.addf %714, %713 : vector<16x64xf32>
    %cst_342 = arith.constant 1.000000e+00 : f32
    %716 = vector.broadcast %cst_342 : f32 to vector<16x64xf32>
    %717 = arith.divf %716, %715 : vector<16x64xf32>
    %718 = vector.extract_strided_slice %717 {offsets = [0, 0], sizes = [16, 32], strides = [1, 1]} : vector<16x64xf32> to vector<16x32xf32>
    %719 = vector.extract_strided_slice %717 {offsets = [0, 32], sizes = [16, 32], strides = [1, 1]} : vector<16x64xf32> to vector<16x32xf32>
    %720 = vector.extract_strided_slice %707 {offsets = [0, 64], sizes = [16, 32], strides = [1, 1]} : vector<16x96xf32> to vector<16x32xf32>
    %721 = vector.extract_strided_slice %704 {offsets = [0, 64], sizes = [16, 32], strides = [1, 1]} : vector<16x96xf32> to vector<16x32xf32>
    %722 = arith.addf %721, %426 : vector<16x32xf32>
    %723 = arith.mulf %718, %722 : vector<16x32xf32>
    %724 = arith.addf %720, %723 : vector<16x32xf32>
    %725 = math.tanh %724 : vector<16x32xf32>
    %726 = arith.subf %698, %725 : vector<16x32xf32>
    %727 = arith.mulf %719, %726 : vector<16x32xf32>
    %728 = arith.addf %725, %727 : vector<16x32xf32>
    %729 = arith.index_cast %c7_i32_336 : i32 to index
    %c0_343 = arith.constant 0 : index
    %c0_344 = arith.constant 0 : index
    %730 = vector.load %arg15[%729, %c0_343, %c0_344] : memref<8x16x32xf32, #tpu.memory_space<vmem>>, vector<1x16x32xf32>
    %731 = vector.shape_cast %730 : vector<1x16x32xf32> to vector<16x32xf32>
    %732 = vector.shape_cast %728 : vector<16x32xf32> to vector<1x16x32xf32>
    tpu.vector_store %arg15[%729, %c0_343, %c0_344], %732 {strides = array<i32>} : memref<8x16x32xf32, #tpu.memory_space<vmem>>, vector<1x16x32xf32>,
    %c8_i32_345 = arith.constant 8 : i32
    %c1_346 = arith.constant 1 : index
    %c0_347 = arith.constant 0 : index
    %c0_348 = arith.constant 0 : index
    %733 = vector.load %arg14[%c1_346, %c0_347, %c0_348] : memref<2x16x32xf32, #tpu.memory_space<vmem>>, vector<1x16x32xf32>
    %734 = vector.shape_cast %733 : vector<1x16x32xf32> to vector<16x32xf32>
    %735 = vector.shape_cast %728 : vector<16x32xf32> to vector<1x16x32xf32>
    tpu.vector_store %arg14[%c1_346, %c0_347, %c0_348], %735 {strides = array<i32>} : memref<2x16x32xf32, #tpu.memory_space<vmem>>, vector<1x16x32xf32>,
    %c0_349 = arith.constant 0 : index
    %c0_350 = arith.constant 0 : index
    %736 = vector.load %arg11[%c0_349, %c0_350] : memref<32x16xf32, #tpu.memory_space<vmem>>, vector<32x16xf32>
    %737 = arith.truncf %736 : vector<32x16xf32> to vector<32x16xbf16>
    %c0_351 = arith.constant 0 : index
    %c0_352 = arith.constant 0 : index
    %738 = vector.load %arg12[%c0_351, %c0_352] : memref<1x16xf32, #tpu.memory_space<vmem>>, vector<1x16xf32>
    %739 = vector.shape_cast %738 : vector<1x16xf32> to vector<1x16xf32>
    %740 = vector.broadcast %739 : vector<1x16xf32> to vector<16x16xf32>
    %c0_353 = arith.constant 0 : index
    %c0_354 = arith.constant 0 : index
    %c0_355 = arith.constant 0 : index
    %741 = vector.load %arg15[%c0_353, %c0_354, %c0_355] : memref<8x16x32xf32, #tpu.memory_space<vmem>>, vector<1x16x32xf32>
    %742 = vector.shape_cast %741 : vector<1x16x32xf32> to vector<16x32xf32>
    %743 = math.tanh %742 : vector<16x32xf32>
    %744 = arith.truncf %743 : vector<16x32xf32> to vector<16x32xbf16>
    %cst_356 = arith.constant dense<0.000000e+00> : vector<16x16xf32>
    %745 = tpu.matmul %744, %737, %cst_356 {dimension_numbers = #tpu.dot_dimension_numbers<[1], [0], [0], [1], [0, 0, 1, 1], [], []>} : vector<16x32xbf16>, vector<32x16xbf16>, vector<16x16xf32> -> vector<16x16xf32>
    %746 = arith.addf %745, %740 : vector<16x16xf32>
    %c0_357 = arith.constant 0 : index
    %c0_358 = arith.constant 0 : index
    %c0_359 = arith.constant 0 : index
    %747 = vector.load %arg13[%c0_357, %c0_358, %c0_359] : memref<8x16x16xf32, #tpu.memory_space<vmem>>, vector<1x16x16xf32>
    %748 = vector.shape_cast %747 : vector<1x16x16xf32> to vector<16x16xf32>
    %749 = vector.shape_cast %746 : vector<16x16xf32> to vector<1x16x16xf32>
    tpu.vector_store %arg13[%c0_357, %c0_358, %c0_359], %749 {strides = array<i32>} : memref<8x16x16xf32, #tpu.memory_space<vmem>>, vector<1x16x16xf32>,
    %c1_360 = arith.constant 1 : index
    %c0_361 = arith.constant 0 : index
    %c0_362 = arith.constant 0 : index
    %750 = vector.load %arg15[%c1_360, %c0_361, %c0_362] : memref<8x16x32xf32, #tpu.memory_space<vmem>>, vector<1x16x32xf32>
    %751 = vector.shape_cast %750 : vector<1x16x32xf32> to vector<16x32xf32>
    %752 = math.tanh %751 : vector<16x32xf32>
    %753 = arith.truncf %752 : vector<16x32xf32> to vector<16x32xbf16>
    %cst_363 = arith.constant dense<0.000000e+00> : vector<16x16xf32>
    %754 = tpu.matmul %753, %737, %cst_363 {dimension_numbers = #tpu.dot_dimension_numbers<[1], [0], [0], [1], [0, 0, 1, 1], [], []>} : vector<16x32xbf16>, vector<32x16xbf16>, vector<16x16xf32> -> vector<16x16xf32>
    %755 = arith.addf %754, %740 : vector<16x16xf32>
    %c1_364 = arith.constant 1 : index
    %c0_365 = arith.constant 0 : index
    %c0_366 = arith.constant 0 : index
    %756 = vector.load %arg13[%c1_364, %c0_365, %c0_366] : memref<8x16x16xf32, #tpu.memory_space<vmem>>, vector<1x16x16xf32>
    %757 = vector.shape_cast %756 : vector<1x16x16xf32> to vector<16x16xf32>
    %758 = vector.shape_cast %755 : vector<16x16xf32> to vector<1x16x16xf32>
    tpu.vector_store %arg13[%c1_364, %c0_365, %c0_366], %758 {strides = array<i32>} : memref<8x16x16xf32, #tpu.memory_space<vmem>>, vector<1x16x16xf32>,
    %c2_367 = arith.constant 2 : index
    %c0_368 = arith.constant 0 : index
    %c0_369 = arith.constant 0 : index
    %759 = vector.load %arg15[%c2_367, %c0_368, %c0_369] : memref<8x16x32xf32, #tpu.memory_space<vmem>>, vector<1x16x32xf32>
    %760 = vector.shape_cast %759 : vector<1x16x32xf32> to vector<16x32xf32>
    %761 = math.tanh %760 : vector<16x32xf32>
    %762 = arith.truncf %761 : vector<16x32xf32> to vector<16x32xbf16>
    %cst_370 = arith.constant dense<0.000000e+00> : vector<16x16xf32>
    %763 = tpu.matmul %762, %737, %cst_370 {dimension_numbers = #tpu.dot_dimension_numbers<[1], [0], [0], [1], [0, 0, 1, 1], [], []>} : vector<16x32xbf16>, vector<32x16xbf16>, vector<16x16xf32> -> vector<16x16xf32>
    %764 = arith.addf %763, %740 : vector<16x16xf32>
    %c2_371 = arith.constant 2 : index
    %c0_372 = arith.constant 0 : index
    %c0_373 = arith.constant 0 : index
    %765 = vector.load %arg13[%c2_371, %c0_372, %c0_373] : memref<8x16x16xf32, #tpu.memory_space<vmem>>, vector<1x16x16xf32>
    %766 = vector.shape_cast %765 : vector<1x16x16xf32> to vector<16x16xf32>
    %767 = vector.shape_cast %764 : vector<16x16xf32> to vector<1x16x16xf32>
    tpu.vector_store %arg13[%c2_371, %c0_372, %c0_373], %767 {strides = array<i32>} : memref<8x16x16xf32, #tpu.memory_space<vmem>>, vector<1x16x16xf32>,
    %c3_374 = arith.constant 3 : index
    %c0_375 = arith.constant 0 : index
    %c0_376 = arith.constant 0 : index
    %768 = vector.load %arg15[%c3_374, %c0_375, %c0_376] : memref<8x16x32xf32, #tpu.memory_space<vmem>>, vector<1x16x32xf32>
    %769 = vector.shape_cast %768 : vector<1x16x32xf32> to vector<16x32xf32>
    %770 = math.tanh %769 : vector<16x32xf32>
    %771 = arith.truncf %770 : vector<16x32xf32> to vector<16x32xbf16>
    %cst_377 = arith.constant dense<0.000000e+00> : vector<16x16xf32>
    %772 = tpu.matmul %771, %737, %cst_377 {dimension_numbers = #tpu.dot_dimension_numbers<[1], [0], [0], [1], [0, 0, 1, 1], [], []>} : vector<16x32xbf16>, vector<32x16xbf16>, vector<16x16xf32> -> vector<16x16xf32>
    %773 = arith.addf %772, %740 : vector<16x16xf32>
    %c3_378 = arith.constant 3 : index
    %c0_379 = arith.constant 0 : index
    %c0_380 = arith.constant 0 : index
    %774 = vector.load %arg13[%c3_378, %c0_379, %c0_380] : memref<8x16x16xf32, #tpu.memory_space<vmem>>, vector<1x16x16xf32>
    %775 = vector.shape_cast %774 : vector<1x16x16xf32> to vector<16x16xf32>
    %776 = vector.shape_cast %773 : vector<16x16xf32> to vector<1x16x16xf32>
    tpu.vector_store %arg13[%c3_378, %c0_379, %c0_380], %776 {strides = array<i32>} : memref<8x16x16xf32, #tpu.memory_space<vmem>>, vector<1x16x16xf32>,
    %c4_381 = arith.constant 4 : index
    %c0_382 = arith.constant 0 : index
    %c0_383 = arith.constant 0 : index
    %777 = vector.load %arg15[%c4_381, %c0_382, %c0_383] : memref<8x16x32xf32, #tpu.memory_space<vmem>>, vector<1x16x32xf32>
    %778 = vector.shape_cast %777 : vector<1x16x32xf32> to vector<16x32xf32>
    %779 = math.tanh %778 : vector<16x32xf32>
    %780 = arith.truncf %779 : vector<16x32xf32> to vector<16x32xbf16>
    %cst_384 = arith.constant dense<0.000000e+00> : vector<16x16xf32>
    %781 = tpu.matmul %780, %737, %cst_384 {dimension_numbers = #tpu.dot_dimension_numbers<[1], [0], [0], [1], [0, 0, 1, 1], [], []>} : vector<16x32xbf16>, vector<32x16xbf16>, vector<16x16xf32> -> vector<16x16xf32>
    %782 = arith.addf %781, %740 : vector<16x16xf32>
    %c4_385 = arith.constant 4 : index
    %c0_386 = arith.constant 0 : index
    %c0_387 = arith.constant 0 : index
    %783 = vector.load %arg13[%c4_385, %c0_386, %c0_387] : memref<8x16x16xf32, #tpu.memory_space<vmem>>, vector<1x16x16xf32>
    %784 = vector.shape_cast %783 : vector<1x16x16xf32> to vector<16x16xf32>
    %785 = vector.shape_cast %782 : vector<16x16xf32> to vector<1x16x16xf32>
    tpu.vector_store %arg13[%c4_385, %c0_386, %c0_387], %785 {strides = array<i32>} : memref<8x16x16xf32, #tpu.memory_space<vmem>>, vector<1x16x16xf32>,
    %c5_388 = arith.constant 5 : index
    %c0_389 = arith.constant 0 : index
    %c0_390 = arith.constant 0 : index
    %786 = vector.load %arg15[%c5_388, %c0_389, %c0_390] : memref<8x16x32xf32, #tpu.memory_space<vmem>>, vector<1x16x32xf32>
    %787 = vector.shape_cast %786 : vector<1x16x32xf32> to vector<16x32xf32>
    %788 = math.tanh %787 : vector<16x32xf32>
    %789 = arith.truncf %788 : vector<16x32xf32> to vector<16x32xbf16>
    %cst_391 = arith.constant dense<0.000000e+00> : vector<16x16xf32>
    %790 = tpu.matmul %789, %737, %cst_391 {dimension_numbers = #tpu.dot_dimension_numbers<[1], [0], [0], [1], [0, 0, 1, 1], [], []>} : vector<16x32xbf16>, vector<32x16xbf16>, vector<16x16xf32> -> vector<16x16xf32>
    %791 = arith.addf %790, %740 : vector<16x16xf32>
    %c5_392 = arith.constant 5 : index
    %c0_393 = arith.constant 0 : index
    %c0_394 = arith.constant 0 : index
    %792 = vector.load %arg13[%c5_392, %c0_393, %c0_394] : memref<8x16x16xf32, #tpu.memory_space<vmem>>, vector<1x16x16xf32>
    %793 = vector.shape_cast %792 : vector<1x16x16xf32> to vector<16x16xf32>
    %794 = vector.shape_cast %791 : vector<16x16xf32> to vector<1x16x16xf32>
    tpu.vector_store %arg13[%c5_392, %c0_393, %c0_394], %794 {strides = array<i32>} : memref<8x16x16xf32, #tpu.memory_space<vmem>>, vector<1x16x16xf32>,
    %c6_395 = arith.constant 6 : index
    %c0_396 = arith.constant 0 : index
    %c0_397 = arith.constant 0 : index
    %795 = vector.load %arg15[%c6_395, %c0_396, %c0_397] : memref<8x16x32xf32, #tpu.memory_space<vmem>>, vector<1x16x32xf32>
    %796 = vector.shape_cast %795 : vector<1x16x32xf32> to vector<16x32xf32>
    %797 = math.tanh %796 : vector<16x32xf32>
    %798 = arith.truncf %797 : vector<16x32xf32> to vector<16x32xbf16>
    %cst_398 = arith.constant dense<0.000000e+00> : vector<16x16xf32>
    %799 = tpu.matmul %798, %737, %cst_398 {dimension_numbers = #tpu.dot_dimension_numbers<[1], [0], [0], [1], [0, 0, 1, 1], [], []>} : vector<16x32xbf16>, vector<32x16xbf16>, vector<16x16xf32> -> vector<16x16xf32>
    %800 = arith.addf %799, %740 : vector<16x16xf32>
    %c6_399 = arith.constant 6 : index
    %c0_400 = arith.constant 0 : index
    %c0_401 = arith.constant 0 : index
    %801 = vector.load %arg13[%c6_399, %c0_400, %c0_401] : memref<8x16x16xf32, #tpu.memory_space<vmem>>, vector<1x16x16xf32>
    %802 = vector.shape_cast %801 : vector<1x16x16xf32> to vector<16x16xf32>
    %803 = vector.shape_cast %800 : vector<16x16xf32> to vector<1x16x16xf32>
    tpu.vector_store %arg13[%c6_399, %c0_400, %c0_401], %803 {strides = array<i32>} : memref<8x16x16xf32, #tpu.memory_space<vmem>>, vector<1x16x16xf32>,
    %c7_402 = arith.constant 7 : index
    %c0_403 = arith.constant 0 : index
    %c0_404 = arith.constant 0 : index
    %804 = vector.load %arg15[%c7_402, %c0_403, %c0_404] : memref<8x16x32xf32, #tpu.memory_space<vmem>>, vector<1x16x32xf32>
    %805 = vector.shape_cast %804 : vector<1x16x32xf32> to vector<16x32xf32>
    %806 = math.tanh %805 : vector<16x32xf32>
    %807 = arith.truncf %806 : vector<16x32xf32> to vector<16x32xbf16>
    %cst_405 = arith.constant dense<0.000000e+00> : vector<16x16xf32>
    %808 = tpu.matmul %807, %737, %cst_405 {dimension_numbers = #tpu.dot_dimension_numbers<[1], [0], [0], [1], [0, 0, 1, 1], [], []>} : vector<16x32xbf16>, vector<32x16xbf16>, vector<16x16xf32> -> vector<16x16xf32>
    %809 = arith.addf %808, %740 : vector<16x16xf32>
    %c7_406 = arith.constant 7 : index
    %c0_407 = arith.constant 0 : index
    %c0_408 = arith.constant 0 : index
    %810 = vector.load %arg13[%c7_406, %c0_407, %c0_408] : memref<8x16x16xf32, #tpu.memory_space<vmem>>, vector<1x16x16xf32>
    %811 = vector.shape_cast %810 : vector<1x16x16xf32> to vector<16x16xf32>
    %812 = vector.shape_cast %809 : vector<16x16xf32> to vector<1x16x16xf32>
    tpu.vector_store %arg13[%c7_406, %c0_407, %c0_408], %812 {strides = array<i32>} : memref<8x16x16xf32, #tpu.memory_space<vmem>>, vector<1x16x16xf32>,
    return
  }
  func.func @transform_0(%arg0: i32) -> (i32, i32, i32) {
    %c0_i32 = arith.constant 0 : i32
    %c0_i32_0 = arith.constant 0 : i32
    %c0_i32_1 = arith.constant 0 : i32
    return %c0_i32, %arg0, %c0_i32_0 : i32, i32, i32
  }
  func.func @transform_1(%arg0: i32) -> (i32, i32) {
    %c0_i32 = arith.constant 0 : i32
    %c0_i32_0 = arith.constant 0 : i32
    return %arg0, %c0_i32 : i32, i32
  }
  func.func @transform_2(%arg0: i32) -> (i32, i32, i32) {
    %c0_i32 = arith.constant 0 : i32
    %c0_i32_0 = arith.constant 0 : i32
    %c0_i32_1 = arith.constant 0 : i32
    return %c0_i32, %arg0, %c0_i32_0 : i32, i32, i32
  }
  func.func @transform_3(%arg0: i32) -> (i32, i32) {
    %c0_i32 = arith.constant 0 : i32
    %c0_i32_0 = arith.constant 0 : i32
    %c0_i32_1 = arith.constant 0 : i32
    return %c0_i32, %c0_i32_0 : i32, i32
  }
  func.func @transform_4(%arg0: i32) -> (i32, i32) {
    %c0_i32 = arith.constant 0 : i32
    %c0_i32_0 = arith.constant 0 : i32
    %c0_i32_1 = arith.constant 0 : i32
    return %c0_i32, %c0_i32_0 : i32, i32
  }
  func.func @transform_5(%arg0: i32) -> (i32, i32) {
    %c0_i32 = arith.constant 0 : i32
    %c0_i32_0 = arith.constant 0 : i32
    %c0_i32_1 = arith.constant 0 : i32
    return %c0_i32, %c0_i32_0 : i32, i32
  }
  func.func @transform_6(%arg0: i32) -> (i32, i32, i32) {
    %c0_i32 = arith.constant 0 : i32
    %c0_i32_0 = arith.constant 0 : i32
    %c0_i32_1 = arith.constant 0 : i32
    %c0_i32_2 = arith.constant 0 : i32
    return %c0_i32, %c0_i32_0, %c0_i32_1 : i32, i32, i32
  }
  func.func @transform_7(%arg0: i32) -> (i32, i32, i32) {
    %c0_i32 = arith.constant 0 : i32
    %c0_i32_0 = arith.constant 0 : i32
    %c0_i32_1 = arith.constant 0 : i32
    %c0_i32_2 = arith.constant 0 : i32
    return %c0_i32, %c0_i32_0, %c0_i32_1 : i32, i32, i32
  }
  func.func @transform_8(%arg0: i32) -> (i32, i32, i32) {
    %c0_i32 = arith.constant 0 : i32
    %c0_i32_0 = arith.constant 0 : i32
    %c0_i32_1 = arith.constant 0 : i32
    %c0_i32_2 = arith.constant 0 : i32
    return %c0_i32, %c0_i32_0, %c0_i32_1 : i32, i32, i32
  }
  func.func @transform_9(%arg0: i32) -> (i32, i32, i32) {
    %c0_i32 = arith.constant 0 : i32
    %c0_i32_0 = arith.constant 0 : i32
    %c0_i32_1 = arith.constant 0 : i32
    %c0_i32_2 = arith.constant 0 : i32
    return %c0_i32, %c0_i32_0, %c0_i32_1 : i32, i32, i32
  }
  func.func @transform_10(%arg0: i32) -> (i32, i32) {
    %c0_i32 = arith.constant 0 : i32
    %c0_i32_0 = arith.constant 0 : i32
    %c0_i32_1 = arith.constant 0 : i32
    return %c0_i32, %c0_i32_0 : i32, i32
  }
  func.func @transform_11(%arg0: i32) -> (i32, i32) {
    %c0_i32 = arith.constant 0 : i32
    %c0_i32_0 = arith.constant 0 : i32
    %c0_i32_1 = arith.constant 0 : i32
    return %c0_i32, %c0_i32_0 : i32, i32
  }
  func.func @transform_12(%arg0: i32) -> (i32, i32, i32) {
    %c0_i32 = arith.constant 0 : i32
    %c0_i32_0 = arith.constant 0 : i32
    %c0_i32_1 = arith.constant 0 : i32
    return %c0_i32, %arg0, %c0_i32_0 : i32, i32, i32
  }
  func.func @transform_13(%arg0: i32) -> (i32, i32, i32) {
    %c0_i32 = arith.constant 0 : i32
    %c0_i32_0 = arith.constant 0 : i32
    %c0_i32_1 = arith.constant 0 : i32
    return %c0_i32, %arg0, %c0_i32_0 : i32, i32, i32
  }
}

</mosaic_0001>

<llo_original>
// kernel: tpu_custom_call.1
$region0: #{tpu_custom_call.1}
  #allocation0 [shape = 'u32[]', space=smem, size = 0x4, offset = 0x4, fixed_abs, tag = 'smem constant byte address 0x4 - core index']
  #allocation1 [shape = 'u32[144,128]{1,0:T(1,128)}', space=vmem, size = 0x12000, scoped, tag = 'internal scratch']
  #allocation2 [shape = 'f32[8,16,32]{2,1,0:T(8,128)}', space=vmem, size = 0x10000, scoped, tag = 'scratch operand']
  #allocation3 [shape = 'f32[8,16,96]{2,1,0:T(8,128)}', space=vmem, size = 0x10000, scoped, tag = 'scratch operand']
  %s0 = inlined_call_operand.vmem [shape: f32[8,16,4], index: 0, kind: input, shape index: {}]
  %s1 = inlined_call_operand.vmem [shape: f32[16,4], index: 1, kind: input, shape index: {}]
  %s2 = inlined_call_operand.vmem [shape: f32[2,16,32], index: 2, kind: input, shape index: {}]
  %s3 = inlined_call_operand.vmem [shape: f32[4,32], index: 3, kind: input, shape index: {}]
  %s4 = inlined_call_operand.vmem [shape: f32[4,32], index: 4, kind: input, shape index: {}]
  %s5 = inlined_call_operand.vmem [shape: f32[1,32], index: 5, kind: input, shape index: {}]
  %s6 = inlined_call_operand.vmem [shape: f32[2,32,96], index: 6, kind: input, shape index: {}]
  %s7 = inlined_call_operand.vmem [shape: f32[2,32,96], index: 7, kind: input, shape index: {}]
  %s8 = inlined_call_operand.vmem [shape: f32[2,1,96], index: 8, kind: input, shape index: {}]
  %s9 = inlined_call_operand.vmem [shape: f32[2,1,32], index: 9, kind: input, shape index: {}]
  %s10 = inlined_call_operand.vmem [shape: f32[32,16], index: 10, kind: input, shape index: {}]
  %s11 = inlined_call_operand.vmem [shape: f32[1,16], index: 11, kind: input, shape index: {}]
  %s12 = inlined_call_operand.hbm [shape: f32[8,16,16], index: 12, kind: output, shape index: {0}]
  %s13 = inlined_call_operand.hbm [shape: f32[2,16,32], index: 13, kind: output, shape index: {1}]
  %14 = xla_tuple %s12, %s13
  %s15 = sld [smem:[#allocation0]]
  $region66: #{tpu_custom_call.1} parent=0
    _
  %s17 = ssub.s32 1, %s15
  %s18 = scalar_select 0, %s17, %s15
  $region1: #{tpu_custom_call.1} parent=0
    #allocation4 [shape = 'u8[65536]{0}', space=vmem, size = 0x10000, scoped, tag = 'output window, operand 0, single buffered']
    #allocation5 [shape = 's32[1]{0}', space=sflag, size = 0x4, scoped, tag = 'scoped memory for tpu_custom_call.1']
    #allocation6 [shape = 'u8[16384]{0}', space=vmem, size = 0x4000, scoped, tag = 'output window, operand 1, single buffered']
    #allocation7 [shape = 's32[1]{0}', space=sflag, size = 0x4, scoped, tag = 'scoped memory for tpu_custom_call.1']
    %19 = vsyncpa [#allocation5], 0
    %20 = vsyncpa [#allocation7], 0
    // Predicated region
    $region2: #{tpu_custom_call.1} parent=1 // pred_check
      _
    $region3: #{tpu_custom_call.1} parent=1 // pred_check_branch
      %22 = sbr.rel (0) target = $region5
    $region4: #{tpu_custom_call.1} parent=1 // pred_region
      _
    $region5: #{tpu_custom_call.1} parent=1 // pred_fallthru
      _
    // Predicated region
    $region6: #{tpu_custom_call.1} parent=1 // pred_check
      _
    $region7: #{tpu_custom_call.1} parent=1 // pred_check_branch
      %24 = sbr.rel (0) target = $region9
    $region8: #{tpu_custom_call.1} parent=1 // pred_region
      _
    $region9: #{tpu_custom_call.1} parent=1 // pred_fallthru
      _
    // Predicated region
    $region10: #{tpu_custom_call.1} parent=1 // pred_check
      _
    $region11: #{tpu_custom_call.1} parent=1 // pred_check_branch
      %26 = sbr.rel (0) target = $region13
    $region12: #{tpu_custom_call.1} parent=1 // pred_region
      _
    $region13: #{tpu_custom_call.1} parent=1 // pred_fallthru
      _
    // Predicated region
    $region14: #{tpu_custom_call.1} parent=1 // pred_check
      _
    $region15: #{tpu_custom_call.1} parent=1 // pred_check_branch
      %28 = sbr.rel (0) target = $region17
    $region16: #{tpu_custom_call.1} parent=1 // pred_region
      _
    $region17: #{tpu_custom_call.1} parent=1 // pred_fallthru
      _
    // Predicated region
    $region18: #{tpu_custom_call.1} parent=1 // pred_check
      _
    $region19: #{tpu_custom_call.1} parent=1 // pred_check_branch
      %30 = sbr.rel (0) target = $region21
    $region20: #{tpu_custom_call.1} parent=1 // pred_region
      _
    $region21: #{tpu_custom_call.1} parent=1 // pred_fallthru
      _
    // Predicated region
    $region22: #{tpu_custom_call.1} parent=1 // pred_check
      _
    $region23: #{tpu_custom_call.1} parent=1 // pred_check_branch
      %32 = sbr.rel (0) target = $region25
    $region24: #{tpu_custom_call.1} parent=1 // pred_region
      _
    $region25: #{tpu_custom_call.1} parent=1 // pred_fallthru
      _
    // Predicated region
    $region26: #{tpu_custom_call.1} parent=1 // pred_check
      _
    $region27: #{tpu_custom_call.1} parent=1 // pred_check_branch
      %34 = sbr.rel (0) target = $region29
    $region28: #{tpu_custom_call.1} parent=1 // pred_region
      _
    $region29: #{tpu_custom_call.1} parent=1 // pred_fallthru
      _
    // Predicated region
    $region30: #{tpu_custom_call.1} parent=1 // pred_check
      _
    $region31: #{tpu_custom_call.1} parent=1 // pred_check_branch
      %36 = sbr.rel (0) target = $region33
    $region32: #{tpu_custom_call.1} parent=1 // pred_region
      _
    $region33: #{tpu_custom_call.1} parent=1 // pred_fallthru
      _
    // Predicated region
    $region34: #{tpu_custom_call.1} parent=1 // pred_check
      _
    $region35: #{tpu_custom_call.1} parent=1 // pred_check_branch
      %38 = sbr.rel (0) target = $region37
    $region36: #{tpu_custom_call.1} parent=1 // pred_region
      _
    $region37: #{tpu_custom_call.1} parent=1 // pred_fallthru
      _
    // Predicated region
    $region38: #{tpu_custom_call.1} parent=1 // pred_check
      _
    $region39: #{tpu_custom_call.1} parent=1 // pred_check_branch
      %40 = sbr.rel (0) target = $region41
    $region40: #{tpu_custom_call.1} parent=1 // pred_region
      _
    $region41: #{tpu_custom_call.1} parent=1 // pred_fallthru
      _
    // Predicated region
    $region42: #{tpu_custom_call.1} parent=1 // pred_check
      _
    $region43: #{tpu_custom_call.1} parent=1 // pred_check_branch
      %42 = sbr.rel (0) target = $region45
    $region44: #{tpu_custom_call.1} parent=1 // pred_region
      _
    $region45: #{tpu_custom_call.1} parent=1 // pred_fallthru
      _
    // Predicated region
    $region46: #{tpu_custom_call.1} parent=1 // pred_check
      _
    $region47: #{tpu_custom_call.1} parent=1 // pred_check_branch
      %44 = sbr.rel (0) target = $region49
    $region48: #{tpu_custom_call.1} parent=1 // pred_region
      _
    $region49: #{tpu_custom_call.1} parent=1 // pred_fallthru
      _
    %v46 = vld [vmem:[%s1] sm:$0xff]
    %v47 = vld [vmem:[%s1 + $0x8] sm:$0xff]
    %v48 = vpack.c.bf16 %v47, %v46
    %v49 = vld [vmem:[%s4] sm:$0xf]
    %v50 = vpack.c.bf16 %v49, %v49
    %v51 = vld [vmem:[%s5] sm:$0x1]
    %v53 = vlaneseq
    %v54 = vshrl.u32 %v53, 7
    %v55 = vsub.s32 0, %v54
    %v56 = vrot.slane %v51, %v55
    %vm58 = vcmask 31744
    %v60 = vsel %vm58, %v48, 0
    %vm62 = vcmask 1041408
    %v64 = vsel %vm62, %v50, 0
    %66 = vmatprep.subr.bf16.mxu0 0
    %67 = vmatpush1.bf16.msra.mxu0 0
    %68 = vmatprep.subr.bf16.mxu0 0
    %69 = vmatpush1.bf16.msra.mxu0 0
    %70 = vmatprep.subr.bf16.mxu0 0
    %71 = vmatpush1.bf16.msra.mxu0 0
    %72 = vmatprep.subr.bf16.mxu0 0
    %73 = vmatpush1.bf16.msra.mxu0 0
    %74 = vmatprep.subr.bf16.mxu0 0
    %75 = vmatpush1.bf16.msra.mxu0 0
    %76 = vmatprep.subr.bf16.mxu0 0
    %77 = vmatpush1.bf16.msra.mxu0 0
    %78 = vmatprep.subr.bf16.mxu0 0
    %79 = vmatpush1.bf16.msra.mxu0 0
    %80 = vmatprep.subr.bf16.mxu0 0
    %81 = vmatpush1.bf16.msra.mxu0 %v64
    %82 = vmatprep.subr.bf16.mxu0 0
    %83 = vmatpush2.bf16.msra.mxu0 0
    %84 = vmatprep.subr.bf16.mxu0 0
    %85 = vmatpush2.bf16.msra.mxu0 0
    %86 = vmatprep.subr.bf16.mxu0 0
    %87 = vmatpush2.bf16.msra.mxu0 0
    %88 = vmatprep.subr.bf16.mxu0 0
    %89 = vmatpush2.bf16.msra.mxu0 0
    %90 = vmatprep.subr.bf16.mxu0 0
    %91 = vmatpush2.bf16.msra.mxu0 0
    %92 = vmatprep.subr.bf16.mxu0 0
    %93 = vmatpush2.bf16.msra.mxu0 0
    %94 = vmatprep.subr.bf16.mxu0 0
    %95 = vmatpush2.bf16.msra.mxu0 0
    %96 = vmatprep.subr.bf16.mxu0 0
    %97 = vmatpush2.bf16.msra.mxu0 0
    %98 = vmatprep.mubr.bf16.mxu0 0
    %99 = vmatmul.mubr.bf16.gmra.mxu0 %v60
    %v100 = vpop.f32.mrf.mxu0
    %v101 = vadd.f32 %v56, %v100
    %v102 = vpop.f32.mrf.mxu0
    %v103 = vpop.f32.mrf.mxu0
    %v104 = vadd.f32 %v56, %v103
    %v105 = vpop.f32.mrf.mxu0
    %106 = vdwg.mxu0
    %v107 = vld [vmem:[%s3] sm:$0xf]
    %v108 = vpack.c.bf16 %v107, %v107
    %v109 = vld [vmem:[%s0] sm:$0xff]
    %v110 = vld [vmem:[%s0 + $0x8] sm:$0xff]
    %v111 = vpack.c.bf16 %v110, %v109
    %v113 = vsel %vm58, %v111, 0
    %v116 = vsel %vm62, %v108, 0
    %118 = vmatprep.subr.bf16.mxu0 0
    %119 = vmatpush1.bf16.msra.mxu0 0
    %120 = vmatprep.subr.bf16.mxu0 0
    %121 = vmatpush1.bf16.msra.mxu0 0
    %122 = vmatprep.subr.bf16.mxu0 0
    %123 = vmatpush1.bf16.msra.mxu0 0
    %124 = vmatprep.subr.bf16.mxu0 0
    %125 = vmatpush1.bf16.msra.mxu0 0
    %126 = vmatprep.subr.bf16.mxu0 0
    %127 = vmatpush1.bf16.msra.mxu0 0
    %128 = vmatprep.subr.bf16.mxu0 0
    %129 = vmatpush1.bf16.msra.mxu0 0
    %130 = vmatprep.subr.bf16.mxu0 0
    %131 = vmatpush1.bf16.msra.mxu0 0
    %132 = vmatprep.subr.bf16.mxu0 0
    %133 = vmatpush1.bf16.msra.mxu0 %v116
    %134 = vmatprep.subr.bf16.mxu0 0
    %135 = vmatpush2.bf16.msra.mxu0 0
    %136 = vmatprep.subr.bf16.mxu0 0
    %137 = vmatpush2.bf16.msra.mxu0 0
    %138 = vmatprep.subr.bf16.mxu0 0
    %139 = vmatpush2.bf16.msra.mxu0 0
    %140 = vmatprep.subr.bf16.mxu0 0
    %141 = vmatpush2.bf16.msra.mxu0 0
    %142 = vmatprep.subr.bf16.mxu0 0
    %143 = vmatpush2.bf16.msra.mxu0 0
    %144 = vmatprep.subr.bf16.mxu0 0
    %145 = vmatpush2.bf16.msra.mxu0 0
    %146 = vmatprep.subr.bf16.mxu0 0
    %147 = vmatpush2.bf16.msra.mxu0 0
    %148 = vmatprep.subr.bf16.mxu0 0
    %149 = vmatpush2.bf16.msra.mxu0 0
    %150 = vmatprep.mubr.bf16.mxu0 0
    %151 = vmatmul.mubr.bf16.gmra.mxu0 %v113
    %v152 = vpop.f32.mrf.mxu0
    %v153 = vadd.f32 %v101, %v152
    %v154 = vpop.f32.mrf.mxu0
    %v155 = vpop.f32.mrf.mxu0
    %v156 = vadd.f32 %v104, %v155
    %v157 = vpop.f32.mrf.mxu0
    %158 = vdwg.mxu0
    %v159 = vmax.f32 %v153, 0.0
    %v160 = vmax.f32 %v156, 0.0
    %vm161 = vcmask 261120
    %162 = vst.msk [vmem:[#allocation2] sm:$0xff] %vm161, %v159
    %163 = vst.msk [vmem:[#allocation2 + $0x8] sm:$0xff] %vm161, %v160
    %s164 = scalar_lea.vmem %s0, 16
    %v165 = vld [vmem:[%s164] sm:$0xff]
    %v166 = vld [vmem:[%s164 + $0x8] sm:$0xff]
    %v167 = vpack.c.bf16 %v166, %v165
    %v169 = vsel %vm58, %v167, 0
    %171 = vmatprep.subr.bf16.mxu0 0
    %172 = vmatpush1.bf16.msra.mxu0 0
    %173 = vmatprep.subr.bf16.mxu0 0
    %174 = vmatpush1.bf16.msra.mxu0 0
    %175 = vmatprep.subr.bf16.mxu0 0
    %176 = vmatpush1.bf16.msra.mxu0 0
    %177 = vmatprep.subr.bf16.mxu0 0
    %178 = vmatpush1.bf16.msra.mxu0 0
    %179 = vmatprep.subr.bf16.mxu0 0
    %180 = vmatpush1.bf16.msra.mxu0 0
    %181 = vmatprep.subr.bf16.mxu0 0
    %182 = vmatpush1.bf16.msra.mxu0 0
    %183 = vmatprep.subr.bf16.mxu0 0
    %184 = vmatpush1.bf16.msra.mxu0 0
    %185 = vmatprep.subr.bf16.mxu0 0
    %186 = vmatpush1.bf16.msra.mxu0 %v116
    %187 = vmatprep.subr.bf16.mxu0 0
    %188 = vmatpush2.bf16.msra.mxu0 0
    %189 = vmatprep.subr.bf16.mxu0 0
    %190 = vmatpush2.bf16.msra.mxu0 0
    %191 = vmatprep.subr.bf16.mxu0 0
    %192 = vmatpush2.bf16.msra.mxu0 0
    %193 = vmatprep.subr.bf16.mxu0 0
    %194 = vmatpush2.bf16.msra.mxu0 0
    %195 = vmatprep.subr.bf16.mxu0 0
    %196 = vmatpush2.bf16.msra.mxu0 0
    %197 = vmatprep.subr.bf16.mxu0 0
    %198 = vmatpush2.bf16.msra.mxu0 0
    %199 = vmatprep.subr.bf16.mxu0 0
    %200 = vmatpush2.bf16.msra.mxu0 0
    %201 = vmatprep.subr.bf16.mxu0 0
    %202 = vmatpush2.bf16.msra.mxu0 0
    %203 = vmatprep.mubr.bf16.mxu0 0
    %204 = vmatmul.mubr.bf16.gmra.mxu0 %v169
    %v205 = vpop.f32.mrf.mxu0
    %v206 = vadd.f32 %v101, %v205
    %v207 = vpop.f32.mrf.mxu0
    %v208 = vpop.f32.mrf.mxu0
    %v209 = vadd.f32 %v104, %v208
    %v210 = vpop.f32.mrf.mxu0
    %211 = vdwg.mxu0
    %v212 = vmax.f32 %v206, 0.0
    %v213 = vmax.f32 %v209, 0.0
    %s214 = scalar_lea.vmem [#allocation2], 16
    %215 = vst.msk [vmem:[%s214] sm:$0xff] %vm161, %v212
    %216 = vst.msk [vmem:[%s214 + $0x8] sm:$0xff] %vm161, %v213
    %s217 = scalar_lea.vmem %s0, 32
    %v218 = vld [vmem:[%s217] sm:$0xff]
    %v219 = vld [vmem:[%s217 + $0x8] sm:$0xff]
    %v220 = vpack.c.bf16 %v219, %v218
    %v222 = vsel %vm58, %v220, 0
    %224 = vmatprep.subr.bf16.mxu0 0
    %225 = vmatpush1.bf16.msra.mxu0 0
    %226 = vmatprep.subr.bf16.mxu0 0
    %227 = vmatpush1.bf16.msra.mxu0 0
    %228 = vmatprep.subr.bf16.mxu0 0
    %229 = vmatpush1.bf16.msra.mxu0 0
    %230 = vmatprep.subr.bf16.mxu0 0
    %231 = vmatpush1.bf16.msra.mxu0 0
    %232 = vmatprep.subr.bf16.mxu0 0
    %233 = vmatpush1.bf16.msra.mxu0 0
    %234 = vmatprep.subr.bf16.mxu0 0
    %235 = vmatpush1.bf16.msra.mxu0 0
    %236 = vmatprep.subr.bf16.mxu0 0
    %237 = vmatpush1.bf16.msra.mxu0 0
    %238 = vmatprep.subr.bf16.mxu0 0
    %239 = vmatpush1.bf16.msra.mxu0 %v116
    %240 = vmatprep.subr.bf16.mxu0 0
    %241 = vmatpush2.bf16.msra.mxu0 0
    %242 = vmatprep.subr.bf16.mxu0 0
    %243 = vmatpush2.bf16.msra.mxu0 0
    %244 = vmatprep.subr.bf16.mxu0 0
    %245 = vmatpush2.bf16.msra.mxu0 0
    %246 = vmatprep.subr.bf16.mxu0 0
    %247 = vmatpush2.bf16.msra.mxu0 0
    %248 = vmatprep.subr.bf16.mxu0 0
    %249 = vmatpush2.bf16.msra.mxu0 0
    %250 = vmatprep.subr.bf16.mxu0 0
    %251 = vmatpush2.bf16.msra.mxu0 0
    %252 = vmatprep.subr.bf16.mxu0 0
    %253 = vmatpush2.bf16.msra.mxu0 0
    %254 = vmatprep.subr.bf16.mxu0 0
    %255 = vmatpush2.bf16.msra.mxu0 0
    %256 = vmatprep.mubr.bf16.mxu0 0
    %257 = vmatmul.mubr.bf16.gmra.mxu0 %v222
    %v258 = vpop.f32.mrf.mxu0
    %v259 = vadd.f32 %v101, %v258
    %v260 = vpop.f32.mrf.mxu0
    %v261 = vpop.f32.mrf.mxu0
    %v262 = vadd.f32 %v104, %v261
    %v263 = vpop.f32.mrf.mxu0
    %264 = vdwg.mxu0
    %v265 = vmax.f32 %v259, 0.0
    %v266 = vmax.f32 %v262, 0.0
    %s267 = scalar_lea.vmem [#allocation2], 32
    %268 = vst.msk [vmem:[%s267] sm:$0xff] %vm161, %v265
    %269 = vst.msk [vmem:[%s267 + $0x8] sm:$0xff] %vm161, %v266
    %s270 = scalar_lea.vmem %s0, 48
    %v271 = vld [vmem:[%s270] sm:$0xff]
    %v272 = vld [vmem:[%s270 + $0x8] sm:$0xff]
    %v273 = vpack.c.bf16 %v272, %v271
    %v275 = vsel %vm58, %v273, 0
    %277 = vmatprep.subr.bf16.mxu0 0
    %278 = vmatpush1.bf16.msra.mxu0 0
    %279 = vmatprep.subr.bf16.mxu0 0
    %280 = vmatpush1.bf16.msra.mxu0 0
    %281 = vmatprep.subr.bf16.mxu0 0
    %282 = vmatpush1.bf16.msra.mxu0 0
    %283 = vmatprep.subr.bf16.mxu0 0
    %284 = vmatpush1.bf16.msra.mxu0 0
    %285 = vmatprep.subr.bf16.mxu0 0
    %286 = vmatpush1.bf16.msra.mxu0 0
    %287 = vmatprep.subr.bf16.mxu0 0
    %288 = vmatpush1.bf16.msra.mxu0 0
    %289 = vmatprep.subr.bf16.mxu0 0
    %290 = vmatpush1.bf16.msra.mxu0 0
    %291 = vmatprep.subr.bf16.mxu0 0
    %292 = vmatpush1.bf16.msra.mxu0 %v116
    %293 = vmatprep.subr.bf16.mxu0 0
    %294 = vmatpush2.bf16.msra.mxu0 0
    %295 = vmatprep.subr.bf16.mxu0 0
    %296 = vmatpush2.bf16.msra.mxu0 0
    %297 = vmatprep.subr.bf16.mxu0 0
    %298 = vmatpush2.bf16.msra.mxu0 0
    %299 = vmatprep.subr.bf16.mxu0 0
    %300 = vmatpush2.bf16.msra.mxu0 0
    %301 = vmatprep.subr.bf16.mxu0 0
    %302 = vmatpush2.bf16.msra.mxu0 0
    %303 = vmatprep.subr.bf16.mxu0 0
    %304 = vmatpush2.bf16.msra.mxu0 0
    %305 = vmatprep.subr.bf16.mxu0 0
    %306 = vmatpush2.bf16.msra.mxu0 0
    %307 = vmatprep.subr.bf16.mxu0 0
    %308 = vmatpush2.bf16.msra.mxu0 0
    %309 = vmatprep.mubr.bf16.mxu0 0
    %310 = vmatmul.mubr.bf16.gmra.mxu0 %v275
    %v311 = vpop.f32.mrf.mxu0
    %v312 = vadd.f32 %v101, %v311
    %v313 = vpop.f32.mrf.mxu0
    %v314 = vpop.f32.mrf.mxu0
    %v315 = vadd.f32 %v104, %v314
    %v316 = vpop.f32.mrf.mxu0
    %317 = vdwg.mxu0
    %v318 = vmax.f32 %v312, 0.0
    %v319 = vmax.f32 %v315, 0.0
    %s320 = scalar_lea.vmem [#allocation2], 48
    %321 = vst.msk [vmem:[%s320] sm:$0xff] %vm161, %v318
    %322 = vst.msk [vmem:[%s320 + $0x8] sm:$0xff] %vm161, %v319
    %s323 = scalar_lea.vmem %s0, 64
    %v324 = vld [vmem:[%s323] sm:$0xff]
    %v325 = vld [vmem:[%s323 + $0x8] sm:$0xff]
    %v326 = vpack.c.bf16 %v325, %v324
    %v328 = vsel %vm58, %v326, 0
    %330 = vmatprep.subr.bf16.mxu0 0
    %331 = vmatpush1.bf16.msra.mxu0 0
    %332 = vmatprep.subr.bf16.mxu0 0
    %333 = vmatpush1.bf16.msra.mxu0 0
    %334 = vmatprep.subr.bf16.mxu0 0
    %335 = vmatpush1.bf16.msra.mxu0 0
    %336 = vmatprep.subr.bf16.mxu0 0
    %337 = vmatpush1.bf16.msra.mxu0 0
    %338 = vmatprep.subr.bf16.mxu0 0
    %339 = vmatpush1.bf16.msra.mxu0 0
    %340 = vmatprep.subr.bf16.mxu0 0
    %341 = vmatpush1.bf16.msra.mxu0 0
    %342 = vmatprep.subr.bf16.mxu0 0
    %343 = vmatpush1.bf16.msra.mxu0 0
    %344 = vmatprep.subr.bf16.mxu0 0
    %345 = vmatpush1.bf16.msra.mxu0 %v116
    %346 = vmatprep.subr.bf16.mxu0 0
    %347 = vmatpush2.bf16.msra.mxu0 0
    %348 = vmatprep.subr.bf16.mxu0 0
    %349 = vmatpush2.bf16.msra.mxu0 0
    %350 = vmatprep.subr.bf16.mxu0 0
    %351 = vmatpush2.bf16.msra.mxu0 0
    %352 = vmatprep.subr.bf16.mxu0 0
    %353 = vmatpush2.bf16.msra.mxu0 0
    %354 = vmatprep.subr.bf16.mxu0 0
    %355 = vmatpush2.bf16.msra.mxu0 0
    %356 = vmatprep.subr.bf16.mxu0 0
    %357 = vmatpush2.bf16.msra.mxu0 0
    %358 = vmatprep.subr.bf16.mxu0 0
    %359 = vmatpush2.bf16.msra.mxu0 0
    %360 = vmatprep.subr.bf16.mxu0 0
    %361 = vmatpush2.bf16.msra.mxu0 0
    %362 = vmatprep.mubr.bf16.mxu0 0
    %363 = vmatmul.mubr.bf16.gmra.mxu0 %v328
    %v364 = vpop.f32.mrf.mxu0
    %v365 = vadd.f32 %v101, %v364
    %v366 = vpop.f32.mrf.mxu0
    %v367 = vpop.f32.mrf.mxu0
    %v368 = vadd.f32 %v104, %v367
    %v369 = vpop.f32.mrf.mxu0
    %370 = vdwg.mxu0
    %v371 = vmax.f32 %v365, 0.0
    %v372 = vmax.f32 %v368, 0.0
    %s373 = scalar_lea.vmem [#allocation2], 64
    %374 = vst.msk [vmem:[%s373] sm:$0xff] %vm161, %v371
    %375 = vst.msk [vmem:[%s373 + $0x8] sm:$0xff] %vm161, %v372
    %s376 = scalar_lea.vmem %s0, 80
    %v377 = vld [vmem:[%s376] sm:$0xff]
    %v378 = vld [vmem:[%s376 + $0x8] sm:$0xff]
    %v379 = vpack.c.bf16 %v378, %v377
    %v381 = vsel %vm58, %v379, 0
    %383 = vmatprep.subr.bf16.mxu0 0
    %384 = vmatpush1.bf16.msra.mxu0 0
    %385 = vmatprep.subr.bf16.mxu0 0
    %386 = vmatpush1.bf16.msra.mxu0 0
    %387 = vmatprep.subr.bf16.mxu0 0
    %388 = vmatpush1.bf16.msra.mxu0 0
    %389 = vmatprep.subr.bf16.mxu0 0
    %390 = vmatpush1.bf16.msra.mxu0 0
    %391 = vmatprep.subr.bf16.mxu0 0
    %392 = vmatpush1.bf16.msra.mxu0 0
    %393 = vmatprep.subr.bf16.mxu0 0
    %394 = vmatpush1.bf16.msra.mxu0 0
    %395 = vmatprep.subr.bf16.mxu0 0
    %396 = vmatpush1.bf16.msra.mxu0 0
    %397 = vmatprep.subr.bf16.mxu0 0
    %398 = vmatpush1.bf16.msra.mxu0 %v116
    %399 = vmatprep.subr.bf16.mxu0 0
    %400 = vmatpush2.bf16.msra.mxu0 0
    %401 = vmatprep.subr.bf16.mxu0 0
    %402 = vmatpush2.bf16.msra.mxu0 0
    %403 = vmatprep.subr.bf16.mxu0 0
    %404 = vmatpush2.bf16.msra.mxu0 0
    %405 = vmatprep.subr.bf16.mxu0 0
    %406 = vmatpush2.bf16.msra.mxu0 0
    %407 = vmatprep.subr.bf16.mxu0 0
    %408 = vmatpush2.bf16.msra.mxu0 0
    %409 = vmatprep.subr.bf16.mxu0 0
    %410 = vmatpush2.bf16.msra.mxu0 0
    %411 = vmatprep.subr.bf16.mxu0 0
    %412 = vmatpush2.bf16.msra.mxu0 0
    %413 = vmatprep.subr.bf16.mxu0 0
    %414 = vmatpush2.bf16.msra.mxu0 0
    %415 = vmatprep.mubr.bf16.mxu0 0
    %416 = vmatmul.mubr.bf16.gmra.mxu0 %v381
    %v417 = vpop.f32.mrf.mxu0
    %v418 = vadd.f32 %v101, %v417
    %v419 = vpop.f32.mrf.mxu0
    %v420 = vpop.f32.mrf.mxu0
    %v421 = vadd.f32 %v104, %v420
    %v422 = vpop.f32.mrf.mxu0
    %423 = vdwg.mxu0
    %v424 = vmax.f32 %v418, 0.0
    %v425 = vmax.f32 %v421, 0.0
    %s426 = scalar_lea.vmem [#allocation2], 80
    %427 = vst.msk [vmem:[%s426] sm:$0xff] %vm161, %v424
    %428 = vst.msk [vmem:[%s426 + $0x8] sm:$0xff] %vm161, %v425
    %s429 = scalar_lea.vmem %s0, 96
    %v430 = vld [vmem:[%s429] sm:$0xff]
    %v431 = vld [vmem:[%s429 + $0x8] sm:$0xff]
    %v432 = vpack.c.bf16 %v431, %v430
    %v434 = vsel %vm58, %v432, 0
    %436 = vmatprep.subr.bf16.mxu0 0
    %437 = vmatpush1.bf16.msra.mxu0 0
    %438 = vmatprep.subr.bf16.mxu0 0
    %439 = vmatpush1.bf16.msra.mxu0 0
    %440 = vmatprep.subr.bf16.mxu0 0
    %441 = vmatpush1.bf16.msra.mxu0 0
    %442 = vmatprep.subr.bf16.mxu0 0
    %443 = vmatpush1.bf16.msra.mxu0 0
    %444 = vmatprep.subr.bf16.mxu0 0
    %445 = vmatpush1.bf16.msra.mxu0 0
    %446 = vmatprep.subr.bf16.mxu0 0
    %447 = vmatpush1.bf16.msra.mxu0 0
    %448 = vmatprep.subr.bf16.mxu0 0
    %449 = vmatpush1.bf16.msra.mxu0 0
    %450 = vmatprep.subr.bf16.mxu0 0
    %451 = vmatpush1.bf16.msra.mxu0 %v116
    %452 = vmatprep.subr.bf16.mxu0 0
    %453 = vmatpush2.bf16.msra.mxu0 0
    %454 = vmatprep.subr.bf16.mxu0 0
    %455 = vmatpush2.bf16.msra.mxu0 0
    %456 = vmatprep.subr.bf16.mxu0 0
    %457 = vmatpush2.bf16.msra.mxu0 0
    %458 = vmatprep.subr.bf16.mxu0 0
    %459 = vmatpush2.bf16.msra.mxu0 0
    %460 = vmatprep.subr.bf16.mxu0 0
    %461 = vmatpush2.bf16.msra.mxu0 0
    %462 = vmatprep.subr.bf16.mxu0 0
    %463 = vmatpush2.bf16.msra.mxu0 0
    %464 = vmatprep.subr.bf16.mxu0 0
    %465 = vmatpush2.bf16.msra.mxu0 0
    %466 = vmatprep.subr.bf16.mxu0 0
    %467 = vmatpush2.bf16.msra.mxu0 0
    %468 = vmatprep.mubr.bf16.mxu0 0
    %469 = vmatmul.mubr.bf16.gmra.mxu0 %v434
    %v470 = vpop.f32.mrf.mxu0
    %v471 = vadd.f32 %v101, %v470
    %v472 = vpop.f32.mrf.mxu0
    %v473 = vpop.f32.mrf.mxu0
    %v474 = vadd.f32 %v104, %v473
    %v475 = vpop.f32.mrf.mxu0
    %476 = vdwg.mxu0
    %v477 = vmax.f32 %v471, 0.0
    %v478 = vmax.f32 %v474, 0.0
    %s479 = scalar_lea.vmem [#allocation2], 96
    %480 = vst.msk [vmem:[%s479] sm:$0xff] %vm161, %v477
    %481 = vst.msk [vmem:[%s479 + $0x8] sm:$0xff] %vm161, %v478
    %s482 = scalar_lea.vmem %s0, 112
    %v483 = vld [vmem:[%s482] sm:$0xff]
    %v484 = vld [vmem:[%s482 + $0x8] sm:$0xff]
    %v485 = vpack.c.bf16 %v484, %v483
    %v487 = vsel %vm58, %v485, 0
    %489 = vmatprep.subr.bf16.mxu0 0
    %490 = vmatpush1.bf16.msra.mxu0 0
    %491 = vmatprep.subr.bf16.mxu0 0
    %492 = vmatpush1.bf16.msra.mxu0 0
    %493 = vmatprep.subr.bf16.mxu0 0
    %494 = vmatpush1.bf16.msra.mxu0 0
    %495 = vmatprep.subr.bf16.mxu0 0
    %496 = vmatpush1.bf16.msra.mxu0 0
    %497 = vmatprep.subr.bf16.mxu0 0
    %498 = vmatpush1.bf16.msra.mxu0 0
    %499 = vmatprep.subr.bf16.mxu0 0
    %500 = vmatpush1.bf16.msra.mxu0 0
    %501 = vmatprep.subr.bf16.mxu0 0
    %502 = vmatpush1.bf16.msra.mxu0 0
    %503 = vmatprep.subr.bf16.mxu0 0
    %504 = vmatpush1.bf16.msra.mxu0 %v116
    %505 = vmatprep.subr.bf16.mxu0 0
    %506 = vmatpush2.bf16.msra.mxu0 0
    %507 = vmatprep.subr.bf16.mxu0 0
    %508 = vmatpush2.bf16.msra.mxu0 0
    %509 = vmatprep.subr.bf16.mxu0 0
    %510 = vmatpush2.bf16.msra.mxu0 0
    %511 = vmatprep.subr.bf16.mxu0 0
    %512 = vmatpush2.bf16.msra.mxu0 0
    %513 = vmatprep.subr.bf16.mxu0 0
    %514 = vmatpush2.bf16.msra.mxu0 0
    %515 = vmatprep.subr.bf16.mxu0 0
    %516 = vmatpush2.bf16.msra.mxu0 0
    %517 = vmatprep.subr.bf16.mxu0 0
    %518 = vmatpush2.bf16.msra.mxu0 0
    %519 = vmatprep.subr.bf16.mxu0 0
    %520 = vmatpush2.bf16.msra.mxu0 0
    %521 = vmatprep.mubr.bf16.mxu0 0
    %522 = vmatmul.mubr.bf16.gmra.mxu0 %v487
    %v523 = vpop.f32.mrf.mxu0
    %v524 = vadd.f32 %v101, %v523
    %v525 = vpop.f32.mrf.mxu0
    %v526 = vpop.f32.mrf.mxu0
    %v527 = vadd.f32 %v104, %v526
    %v528 = vpop.f32.mrf.mxu0
    %529 = vdwg.mxu0
    %v530 = vmax.f32 %v524, 0.0
    %v531 = vmax.f32 %v527, 0.0
    %s532 = scalar_lea.vmem [#allocation2], 112
    %533 = vst.msk [vmem:[%s532] sm:$0xff] %vm161, %v530
    %534 = vst.msk [vmem:[%s532 + $0x8] sm:$0xff] %vm161, %v531
    %v535 = vld [vmem:[%s6] sm:$0xff]
    %v536 = vld [vmem:[%s6 + $0x8] sm:$0xff]
    %v537 = vld [vmem:[%s6 + $0x10] sm:$0xff]
    %v538 = vld [vmem:[%s6 + $0x18] sm:$0xff]
    %v539 = vpack.c.bf16 %v536, %v535
    %v540 = vpack.c.bf16 %v538, %v537
    %v541 = vld [vmem:[%s7] sm:$0xff]
    %v542 = vld [vmem:[%s7 + $0x8] sm:$0xff]
    %v543 = vld [vmem:[%s7 + $0x10] sm:$0xff]
    %v544 = vld [vmem:[%s7 + $0x18] sm:$0xff]
    %v545 = vpack.c.bf16 %v542, %v541
    %v546 = vpack.c.bf16 %v544, %v543
    %v547 = vld [vmem:[%s8] sm:$0x1]
    %v549 = vlaneseq
    %v550 = vshrl.u32 %v549, 7
    %v551 = vsub.s32 0, %v550
    %v552 = vrot.slane %v547, %v551
    %v554 = vld [vmem:[%s9] sm:$0x1]
    %v556 = vlaneseq
    %v557 = vshrl.u32 %v556, 7
    %v558 = vsub.s32 0, %v557
    %v559 = vrot.slane %v554, %v558
    %v560 = vld [vmem:[#allocation2] sm:$0xff]
    %v561 = vld [vmem:[#allocation2 + $0x8] sm:$0xff]
    %v562 = vpack.c.bf16 %v561, %v560
    %v564 = vsel %vm161, %v562, 0
    %566 = vmatprep.subr.bf16.mxu0 0
    %567 = vmatpush1.bf16.msra.mxu0 0
    %568 = vmatprep.subr.bf16.mxu0 0
    %569 = vmatpush1.bf16.msra.mxu0 0
    %570 = vmatprep.subr.bf16.mxu0 0
    %571 = vmatpush1.bf16.msra.mxu0 0
    %572 = vmatprep.subr.bf16.mxu0 0
    %573 = vmatpush1.bf16.msra.mxu0 0
    %574 = vmatprep.subr.bf16.mxu0 0
    %575 = vmatpush1.bf16.msra.mxu0 0
    %576 = vmatprep.subr.bf16.mxu0 0
    %577 = vmatpush1.bf16.msra.mxu0 0
    %578 = vmatprep.subr.bf16.mxu0 0
    %579 = vmatpush1.bf16.msra.mxu0 %v540
    %580 = vmatprep.subr.bf16.mxu0 0
    %581 = vmatpush1.bf16.msra.mxu0 %v539
    %582 = vmatprep.subr.bf16.mxu0 0
    %583 = vmatpush2.bf16.msra.mxu0 0
    %584 = vmatprep.subr.bf16.mxu0 0
    %585 = vmatpush2.bf16.msra.mxu0 0
    %586 = vmatprep.subr.bf16.mxu0 0
    %587 = vmatpush2.bf16.msra.mxu0 0
    %588 = vmatprep.subr.bf16.mxu0 0
    %589 = vmatpush2.bf16.msra.mxu0 0
    %590 = vmatprep.subr.bf16.mxu0 0
    %591 = vmatpush2.bf16.msra.mxu0 0
    %592 = vmatprep.subr.bf16.mxu0 0
    %593 = vmatpush2.bf16.msra.mxu0 0
    %594 = vmatprep.subr.bf16.mxu0 0
    %595 = vmatpush2.bf16.msra.mxu0 0
    %596 = vmatprep.subr.bf16.mxu0 0
    %597 = vmatpush2.bf16.msra.mxu0 0
    %598 = vmatprep.mubr.bf16.mxu0 0
    %599 = vmatmul.mubr.bf16.gmra.mxu0 %v564
    %v600 = vpop.f32.mrf.mxu0
    %v601 = vadd.f32 %v552, %v600
    %v602 = vpop.f32.mrf.mxu0
    %v603 = vpop.f32.mrf.mxu0
    %v604 = vadd.f32 %v552, %v603
    %v605 = vpop.f32.mrf.mxu0
    %606 = vdwg.mxu0
    %vm607 = vcmask 785408
    %608 = vst.msk [vmem:[#allocation3] sm:$0xff] %vm607, %v601
    %609 = vst.msk [vmem:[#allocation3 + $0x8] sm:$0xff] %vm607, %v604
    %v610 = vld [vmem:[%s214] sm:$0xff]
    %v611 = vld [vmem:[%s214 + $0x8] sm:$0xff]
    %v612 = vpack.c.bf16 %v611, %v610
    %v614 = vsel %vm161, %v612, 0
    %616 = vmatprep.subr.bf16.mxu0 0
    %617 = vmatpush1.bf16.msra.mxu0 0
    %618 = vmatprep.subr.bf16.mxu0 0
    %619 = vmatpush1.bf16.msra.mxu0 0
    %620 = vmatprep.subr.bf16.mxu0 0
    %621 = vmatpush1.bf16.msra.mxu0 0
    %622 = vmatprep.subr.bf16.mxu0 0
    %623 = vmatpush1.bf16.msra.mxu0 0
    %624 = vmatprep.subr.bf16.mxu0 0
    %625 = vmatpush1.bf16.msra.mxu0 0
    %626 = vmatprep.subr.bf16.mxu0 0
    %627 = vmatpush1.bf16.msra.mxu0 0
    %628 = vmatprep.subr.bf16.mxu0 0
    %629 = vmatpush1.bf16.msra.mxu0 %v540
    %630 = vmatprep.subr.bf16.mxu0 0
    %631 = vmatpush1.bf16.msra.mxu0 %v539
    %632 = vmatprep.subr.bf16.mxu0 0
    %633 = vmatpush2.bf16.msra.mxu0 0
    %634 = vmatprep.subr.bf16.mxu0 0
    %635 = vmatpush2.bf16.msra.mxu0 0
    %636 = vmatprep.subr.bf16.mxu0 0
    %637 = vmatpush2.bf16.msra.mxu0 0
    %638 = vmatprep.subr.bf16.mxu0 0
    %639 = vmatpush2.bf16.msra.mxu0 0
    %640 = vmatprep.subr.bf16.mxu0 0
    %641 = vmatpush2.bf16.msra.mxu0 0
    %642 = vmatprep.subr.bf16.mxu0 0
    %643 = vmatpush2.bf16.msra.mxu0 0
    %644 = vmatprep.subr.bf16.mxu0 0
    %645 = vmatpush2.bf16.msra.mxu0 0
    %646 = vmatprep.subr.bf16.mxu0 0
    %647 = vmatpush2.bf16.msra.mxu0 0
    %648 = vmatprep.mubr.bf16.mxu0 0
    %649 = vmatmul.mubr.bf16.gmra.mxu0 %v614
    %v650 = vpop.f32.mrf.mxu0
    %v651 = vadd.f32 %v552, %v650
    %v652 = vpop.f32.mrf.mxu0
    %v653 = vpop.f32.mrf.mxu0
    %v654 = vadd.f32 %v552, %v653
    %v655 = vpop.f32.mrf.mxu0
    %656 = vdwg.mxu0
    %s657 = scalar_lea.vmem [#allocation3], 16
    %658 = vst.msk [vmem:[%s657] sm:$0xff] %vm607, %v651
    %659 = vst.msk [vmem:[%s657 + $0x8] sm:$0xff] %vm607, %v654
    %v660 = vld [vmem:[%s267] sm:$0xff]
    %v661 = vld [vmem:[%s267 + $0x8] sm:$0xff]
    %v662 = vpack.c.bf16 %v661, %v660
    %v664 = vsel %vm161, %v662, 0
    %666 = vmatprep.subr.bf16.mxu0 0
    %667 = vmatpush1.bf16.msra.mxu0 0
    %668 = vmatprep.subr.bf16.mxu0 0
    %669 = vmatpush1.bf16.msra.mxu0 0
    %670 = vmatprep.subr.bf16.mxu0 0
    %671 = vmatpush1.bf16.msra.mxu0 0
    %672 = vmatprep.subr.bf16.mxu0 0
    %673 = vmatpush1.bf16.msra.mxu0 0
    %674 = vmatprep.subr.bf16.mxu0 0
    %675 = vmatpush1.bf16.msra.mxu0 0
    %676 = vmatprep.subr.bf16.mxu0 0
    %677 = vmatpush1.bf16.msra.mxu0 0
    %678 = vmatprep.subr.bf16.mxu0 0
    %679 = vmatpush1.bf16.msra.mxu0 %v540
    %680 = vmatprep.subr.bf16.mxu0 0
    %681 = vmatpush1.bf16.msra.mxu0 %v539
    %682 = vmatprep.subr.bf16.mxu0 0
    %683 = vmatpush2.bf16.msra.mxu0 0
    %684 = vmatprep.subr.bf16.mxu0 0
    %685 = vmatpush2.bf16.msra.mxu0 0
    %686 = vmatprep.subr.bf16.mxu0 0
    %687 = vmatpush2.bf16.msra.mxu0 0
    %688 = vmatprep.subr.bf16.mxu0 0
    %689 = vmatpush2.bf16.msra.mxu0 0
    %690 = vmatprep.subr.bf16.mxu0 0
    %691 = vmatpush2.bf16.msra.mxu0 0
    %692 = vmatprep.subr.bf16.mxu0 0
    %693 = vmatpush2.bf16.msra.mxu0 0
    %694 = vmatprep.subr.bf16.mxu0 0
    %695 = vmatpush2.bf16.msra.mxu0 0
    %696 = vmatprep.subr.bf16.mxu0 0
    %697 = vmatpush2.bf16.msra.mxu0 0
    %698 = vmatprep.mubr.bf16.mxu0 0
    %699 = vmatmul.mubr.bf16.gmra.mxu0 %v664
    %v700 = vpop.f32.mrf.mxu0
    %v701 = vadd.f32 %v552, %v700
    %v702 = vpop.f32.mrf.mxu0
    %v703 = vpop.f32.mrf.mxu0
    %v704 = vadd.f32 %v552, %v703
    %v705 = vpop.f32.mrf.mxu0
    %706 = vdwg.mxu0
    %s707 = scalar_lea.vmem [#allocation3], 32
    %708 = vst.msk [vmem:[%s707] sm:$0xff] %vm607, %v701
    %709 = vst.msk [vmem:[%s707 + $0x8] sm:$0xff] %vm607, %v704
    %v710 = vld [vmem:[%s320] sm:$0xff]
    %v711 = vld [vmem:[%s320 + $0x8] sm:$0xff]
    %v712 = vpack.c.bf16 %v711, %v710
    %v714 = vsel %vm161, %v712, 0
    %716 = vmatprep.subr.bf16.mxu0 0
    %717 = vmatpush1.bf16.msra.mxu0 0
    %718 = vmatprep.subr.bf16.mxu0 0
    %719 = vmatpush1.bf16.msra.mxu0 0
    %720 = vmatprep.subr.bf16.mxu0 0
    %721 = vmatpush1.bf16.msra.mxu0 0
    %722 = vmatprep.subr.bf16.mxu0 0
    %723 = vmatpush1.bf16.msra.mxu0 0
    %724 = vmatprep.subr.bf16.mxu0 0
    %725 = vmatpush1.bf16.msra.mxu0 0
    %726 = vmatprep.subr.bf16.mxu0 0
    %727 = vmatpush1.bf16.msra.mxu0 0
    %728 = vmatprep.subr.bf16.mxu0 0
    %729 = vmatpush1.bf16.msra.mxu0 %v540
    %730 = vmatprep.subr.bf16.mxu0 0
    %731 = vmatpush1.bf16.msra.mxu0 %v539
    %732 = vmatprep.subr.bf16.mxu0 0
    %733 = vmatpush2.bf16.msra.mxu0 0
    %734 = vmatprep.subr.bf16.mxu0 0
    %735 = vmatpush2.bf16.msra.mxu0 0
    %736 = vmatprep.subr.bf16.mxu0 0
    %737 = vmatpush2.bf16.msra.mxu0 0
    %738 = vmatprep.subr.bf16.mxu0 0
    %739 = vmatpush2.bf16.msra.mxu0 0
    %740 = vmatprep.subr.bf16.mxu0 0
    %741 = vmatpush2.bf16.msra.mxu0 0
    %742 = vmatprep.subr.bf16.mxu0 0
    %743 = vmatpush2.bf16.msra.mxu0 0
    %744 = vmatprep.subr.bf16.mxu0 0
    %745 = vmatpush2.bf16.msra.mxu0 0
    %746 = vmatprep.subr.bf16.mxu0 0
    %747 = vmatpush2.bf16.msra.mxu0 0
    %748 = vmatprep.mubr.bf16.mxu0 0
    %749 = vmatmul.mubr.bf16.gmra.mxu0 %v714
    %v750 = vpop.f32.mrf.mxu0
    %v751 = vadd.f32 %v552, %v750
    %v752 = vpop.f32.mrf.mxu0
    %v753 = vpop.f32.mrf.mxu0
    %v754 = vadd.f32 %v552, %v753
    %v755 = vpop.f32.mrf.mxu0
    %756 = vdwg.mxu0
    %s757 = scalar_lea.vmem [#allocation3], 48
    %758 = vst.msk [vmem:[%s757] sm:$0xff] %vm607, %v751
    %759 = vst.msk [vmem:[%s757 + $0x8] sm:$0xff] %vm607, %v754
    %v760 = vld [vmem:[%s373] sm:$0xff]
    %v761 = vld [vmem:[%s373 + $0x8] sm:$0xff]
    %v762 = vpack.c.bf16 %v761, %v760
    %v764 = vsel %vm161, %v762, 0
    %766 = vmatprep.subr.bf16.mxu0 0
    %767 = vmatpush1.bf16.msra.mxu0 0
    %768 = vmatprep.subr.bf16.mxu0 0
    %769 = vmatpush1.bf16.msra.mxu0 0
    %770 = vmatprep.subr.bf16.mxu0 0
    %771 = vmatpush1.bf16.msra.mxu0 0
    %772 = vmatprep.subr.bf16.mxu0 0
    %773 = vmatpush1.bf16.msra.mxu0 0
    %774 = vmatprep.subr.bf16.mxu0 0
    %775 = vmatpush1.bf16.msra.mxu0 0
    %776 = vmatprep.subr.bf16.mxu0 0
    %777 = vmatpush1.bf16.msra.mxu0 0
    %778 = vmatprep.subr.bf16.mxu0 0
    %779 = vmatpush1.bf16.msra.mxu0 %v540
    %780 = vmatprep.subr.bf16.mxu0 0
    %781 = vmatpush1.bf16.msra.mxu0 %v539
    %782 = vmatprep.subr.bf16.mxu0 0
    %783 = vmatpush2.bf16.msra.mxu0 0
    %784 = vmatprep.subr.bf16.mxu0 0
    %785 = vmatpush2.bf16.msra.mxu0 0
    %786 = vmatprep.subr.bf16.mxu0 0
    %787 = vmatpush2.bf16.msra.mxu0 0
    %788 = vmatprep.subr.bf16.mxu0 0
    %789 = vmatpush2.bf16.msra.mxu0 0
    %790 = vmatprep.subr.bf16.mxu0 0
    %791 = vmatpush2.bf16.msra.mxu0 0
    %792 = vmatprep.subr.bf16.mxu0 0
    %793 = vmatpush2.bf16.msra.mxu0 0
    %794 = vmatprep.subr.bf16.mxu0 0
    %795 = vmatpush2.bf16.msra.mxu0 0
    %796 = vmatprep.subr.bf16.mxu0 0
    %797 = vmatpush2.bf16.msra.mxu0 0
    %798 = vmatprep.mubr.bf16.mxu0 0
    %799 = vmatmul.mubr.bf16.gmra.mxu0 %v764
    %v800 = vpop.f32.mrf.mxu0
    %v801 = vadd.f32 %v552, %v800
    %v802 = vpop.f32.mrf.mxu0
    %v803 = vpop.f32.mrf.mxu0
    %v804 = vadd.f32 %v552, %v803
    %v805 = vpop.f32.mrf.mxu0
    %806 = vdwg.mxu0
    %s807 = scalar_lea.vmem [#allocation3], 64
    %808 = vst.msk [vmem:[%s807] sm:$0xff] %vm607, %v801
    %809 = vst.msk [vmem:[%s807 + $0x8] sm:$0xff] %vm607, %v804
    %v810 = vld [vmem:[%s426] sm:$0xff]
    %v811 = vld [vmem:[%s426 + $0x8] sm:$0xff]
    %v812 = vpack.c.bf16 %v811, %v810
    %v814 = vsel %vm161, %v812, 0
    %816 = vmatprep.subr.bf16.mxu0 0
    %817 = vmatpush1.bf16.msra.mxu0 0
    %818 = vmatprep.subr.bf16.mxu0 0
    %819 = vmatpush1.bf16.msra.mxu0 0
    %820 = vmatprep.subr.bf16.mxu0 0
    %821 = vmatpush1.bf16.msra.mxu0 0
    %822 = vmatprep.subr.bf16.mxu0 0
    %823 = vmatpush1.bf16.msra.mxu0 0
    %824 = vmatprep.subr.bf16.mxu0 0
    %825 = vmatpush1.bf16.msra.mxu0 0
    %826 = vmatprep.subr.bf16.mxu0 0
    %827 = vmatpush1.bf16.msra.mxu0 0
    %828 = vmatprep.subr.bf16.mxu0 0
    %829 = vmatpush1.bf16.msra.mxu0 %v540
    %830 = vmatprep.subr.bf16.mxu0 0
    %831 = vmatpush1.bf16.msra.mxu0 %v539
    %832 = vmatprep.subr.bf16.mxu0 0
    %833 = vmatpush2.bf16.msra.mxu0 0
    %834 = vmatprep.subr.bf16.mxu0 0
    %835 = vmatpush2.bf16.msra.mxu0 0
    %836 = vmatprep.subr.bf16.mxu0 0
    %837 = vmatpush2.bf16.msra.mxu0 0
    %838 = vmatprep.subr.bf16.mxu0 0
    %839 = vmatpush2.bf16.msra.mxu0 0
    %840 = vmatprep.subr.bf16.mxu0 0
    %841 = vmatpush2.bf16.msra.mxu0 0
    %842 = vmatprep.subr.bf16.mxu0 0
    %843 = vmatpush2.bf16.msra.mxu0 0
    %844 = vmatprep.subr.bf16.mxu0 0
    %845 = vmatpush2.bf16.msra.mxu0 0
    %846 = vmatprep.subr.bf16.mxu0 0
    %847 = vmatpush2.bf16.msra.mxu0 0
    %848 = vmatprep.mubr.bf16.mxu0 0
    %849 = vmatmul.mubr.bf16.gmra.mxu0 %v814
    %v850 = vpop.f32.mrf.mxu0
    %v851 = vadd.f32 %v552, %v850
    %v852 = vpop.f32.mrf.mxu0
    %v853 = vpop.f32.mrf.mxu0
    %v854 = vadd.f32 %v552, %v853
    %v855 = vpop.f32.mrf.mxu0
    %856 = vdwg.mxu0
    %s857 = scalar_lea.vmem [#allocation3], 80
    %858 = vst.msk [vmem:[%s857] sm:$0xff] %vm607, %v851
    %859 = vst.msk [vmem:[%s857 + $0x8] sm:$0xff] %vm607, %v854
    %v860 = vld [vmem:[%s479] sm:$0xff]
    %v861 = vld [vmem:[%s479 + $0x8] sm:$0xff]
    %v862 = vpack.c.bf16 %v861, %v860
    %v864 = vsel %vm161, %v862, 0
    %866 = vmatprep.subr.bf16.mxu0 0
    %867 = vmatpush1.bf16.msra.mxu0 0
    %868 = vmatprep.subr.bf16.mxu0 0
    %869 = vmatpush1.bf16.msra.mxu0 0
    %870 = vmatprep.subr.bf16.mxu0 0
    %871 = vmatpush1.bf16.msra.mxu0 0
    %872 = vmatprep.subr.bf16.mxu0 0
    %873 = vmatpush1.bf16.msra.mxu0 0
    %874 = vmatprep.subr.bf16.mxu0 0
    %875 = vmatpush1.bf16.msra.mxu0 0
    %876 = vmatprep.subr.bf16.mxu0 0
    %877 = vmatpush1.bf16.msra.mxu0 0
    %878 = vmatprep.subr.bf16.mxu0 0
    %879 = vmatpush1.bf16.msra.mxu0 %v540
    %880 = vmatprep.subr.bf16.mxu0 0
    %881 = vmatpush1.bf16.msra.mxu0 %v539
    %882 = vmatprep.subr.bf16.mxu0 0
    %883 = vmatpush2.bf16.msra.mxu0 0
    %884 = vmatprep.subr.bf16.mxu0 0
    %885 = vmatpush2.bf16.msra.mxu0 0
    %886 = vmatprep.subr.bf16.mxu0 0
    %887 = vmatpush2.bf16.msra.mxu0 0
    %888 = vmatprep.subr.bf16.mxu0 0
    %889 = vmatpush2.bf16.msra.mxu0 0
    %890 = vmatprep.subr.bf16.mxu0 0
    %891 = vmatpush2.bf16.msra.mxu0 0
    %892 = vmatprep.subr.bf16.mxu0 0
    %893 = vmatpush2.bf16.msra.mxu0 0
    %894 = vmatprep.subr.bf16.mxu0 0
    %895 = vmatpush2.bf16.msra.mxu0 0
    %896 = vmatprep.subr.bf16.mxu0 0
    %897 = vmatpush2.bf16.msra.mxu0 0
    %898 = vmatprep.mubr.bf16.mxu0 0
    %899 = vmatmul.mubr.bf16.gmra.mxu0 %v864
    %v900 = vpop.f32.mrf.mxu0
    %v901 = vadd.f32 %v552, %v900
    %v902 = vpop.f32.mrf.mxu0
    %v903 = vpop.f32.mrf.mxu0
    %v904 = vadd.f32 %v552, %v903
    %v905 = vpop.f32.mrf.mxu0
    %906 = vdwg.mxu0
    %s907 = scalar_lea.vmem [#allocation3], 96
    %908 = vst.msk [vmem:[%s907] sm:$0xff] %vm607, %v901
    %909 = vst.msk [vmem:[%s907 + $0x8] sm:$0xff] %vm607, %v904
    %v910 = vld [vmem:[%s532] sm:$0xff]
    %v911 = vld [vmem:[%s532 + $0x8] sm:$0xff]
    %v912 = vpack.c.bf16 %v911, %v910
    %v914 = vsel %vm161, %v912, 0
    %916 = vmatprep.subr.bf16.mxu0 0
    %917 = vmatpush1.bf16.msra.mxu0 0
    %918 = vmatprep.subr.bf16.mxu0 0
    %919 = vmatpush1.bf16.msra.mxu0 0
    %920 = vmatprep.subr.bf16.mxu0 0
    %921 = vmatpush1.bf16.msra.mxu0 0
    %922 = vmatprep.subr.bf16.mxu0 0
    %923 = vmatpush1.bf16.msra.mxu0 0
    %924 = vmatprep.subr.bf16.mxu0 0
    %925 = vmatpush1.bf16.msra.mxu0 0
    %926 = vmatprep.subr.bf16.mxu0 0
    %927 = vmatpush1.bf16.msra.mxu0 0
    %928 = vmatprep.subr.bf16.mxu0 0
    %929 = vmatpush1.bf16.msra.mxu0 %v540
    %930 = vmatprep.subr.bf16.mxu0 0
    %931 = vmatpush1.bf16.msra.mxu0 %v539
    %932 = vmatprep.subr.bf16.mxu0 0
    %933 = vmatpush2.bf16.msra.mxu0 0
    %934 = vmatprep.subr.bf16.mxu0 0
    %935 = vmatpush2.bf16.msra.mxu0 0
    %936 = vmatprep.subr.bf16.mxu0 0
    %937 = vmatpush2.bf16.msra.mxu0 0
    %938 = vmatprep.subr.bf16.mxu0 0
    %939 = vmatpush2.bf16.msra.mxu0 0
    %940 = vmatprep.subr.bf16.mxu0 0
    %941 = vmatpush2.bf16.msra.mxu0 0
    %942 = vmatprep.subr.bf16.mxu0 0
    %943 = vmatpush2.bf16.msra.mxu0 0
    %944 = vmatprep.subr.bf16.mxu0 0
    %945 = vmatpush2.bf16.msra.mxu0 0
    %946 = vmatprep.subr.bf16.mxu0 0
    %947 = vmatpush2.bf16.msra.mxu0 0
    %948 = vmatprep.mubr.bf16.mxu0 0
    %949 = vmatmul.mubr.bf16.gmra.mxu0 %v914
    %v950 = vpop.f32.mrf.mxu0
    %v951 = vadd.f32 %v552, %v950
    %v952 = vpop.f32.mrf.mxu0
    %v953 = vpop.f32.mrf.mxu0
    %v954 = vadd.f32 %v552, %v953
    %v955 = vpop.f32.mrf.mxu0
    %956 = vdwg.mxu0
    %s957 = scalar_lea.vmem [#allocation3], 112
    %958 = vst.msk [vmem:[%s957] sm:$0xff] %vm607, %v951
    %959 = vst.msk [vmem:[%s957 + $0x8] sm:$0xff] %vm607, %v954
    %v960 = vld [vmem:[%s2] sm:$0xff]
    %v961 = vld [vmem:[%s2 + $0x8] sm:$0xff]
    %v962 = vpack.c.bf16 %v961, %v960
    %v964 = vsel %vm161, %v962, 0
    %966 = vmatprep.subr.bf16.mxu0 0
    %967 = vmatpush1.bf16.msra.mxu0 0
    %968 = vmatprep.subr.bf16.mxu0 0
    %969 = vmatpush1.bf16.msra.mxu0 0
    %970 = vmatprep.subr.bf16.mxu0 0
    %971 = vmatpush1.bf16.msra.mxu0 0
    %972 = vmatprep.subr.bf16.mxu0 0
    %973 = vmatpush1.bf16.msra.mxu0 0
    %974 = vmatprep.subr.bf16.mxu0 0
    %975 = vmatpush1.bf16.msra.mxu0 0
    %976 = vmatprep.subr.bf16.mxu0 0
    %977 = vmatpush1.bf16.msra.mxu0 0
    %978 = vmatprep.subr.bf16.mxu0 0
    %979 = vmatpush1.bf16.msra.mxu0 %v546
    %980 = vmatprep.subr.bf16.mxu0 0
    %981 = vmatpush1.bf16.msra.mxu0 %v545
    %982 = vmatprep.subr.bf16.mxu0 0
    %983 = vmatpush2.bf16.msra.mxu0 0
    %984 = vmatprep.subr.bf16.mxu0 0
    %985 = vmatpush2.bf16.msra.mxu0 0
    %986 = vmatprep.subr.bf16.mxu0 0
    %987 = vmatpush2.bf16.msra.mxu0 0
    %988 = vmatprep.subr.bf16.mxu0 0
    %989 = vmatpush2.bf16.msra.mxu0 0
    %990 = vmatprep.subr.bf16.mxu0 0
    %991 = vmatpush2.bf16.msra.mxu0 0
    %992 = vmatprep.subr.bf16.mxu0 0
    %993 = vmatpush2.bf16.msra.mxu0 0
    %994 = vmatprep.subr.bf16.mxu0 0
    %995 = vmatpush2.bf16.msra.mxu0 0
    %996 = vmatprep.subr.bf16.mxu0 0
    %997 = vmatpush2.bf16.msra.mxu0 0
    %998 = vmatprep.mubr.bf16.mxu0 0
    %999 = vmatmul.mubr.bf16.gmra.mxu0 %v964
    %v1000 = vpop.f32.mrf.mxu0
    %v1001 = vadd.f32 0.0, %v1000
    %v1002 = vpop.f32.mrf.mxu0
    %v1003 = vpop.f32.mrf.mxu0
    %v1004 = vadd.f32 0.0, %v1003
    %v1005 = vpop.f32.mrf.mxu0
    %1006 = vdwg.mxu0
    %v1007 = vld [vmem:[#allocation3] sm:$0xff]
    %v1008 = vld [vmem:[#allocation3 + $0x8] sm:$0xff]
    %v1009 = vadd.f32 %v1007, %v1001
    %v1010 = vadd.f32 %v1008, %v1004
    %v1011 = vsub.f32 0.0, %v1009
    %v1012 = vsub.f32 0.0, %v1010
    %v1013 = vmul.f32 %v1011, 1.442695
    %v1014 = vpow.pop %v1013
    %v1015 = vmul.f32 %v1012, 1.442695
    %v1016 = vpow.pop %v1015
    %v1017 = vadd.f32 %v1014, 1.0
    %v1018 = vadd.f32 %v1016, 1.0
    %v1019 = vrcp.pop %v1017
    %v1020 = vmul.f32 1.0, %v1019
    %v1021 = vrcp.pop %v1018
    %v1022 = vmul.f32 1.0, %v1021
    %1023 = vrot.lane.b32.xlu0 %v559, 64
    %v1024 = vpop.permute.xlu0 %1023
    %v1026 = vadd.f32 %v1001, %v1024
    %v1027 = vadd.f32 %v1004, %v1024
    %1030 = vrot.lane.b32.xlu0 %v1026, 64
    %v1031 = vpop.permute.xlu0 %1030
    %1032 = vrot.lane.b32.xlu0 %v1027, 64
    %v1033 = vpop.permute.xlu0 %1032
    %v1036 = vmul.f32 %v1020, %v1031
    %v1037 = vmul.f32 %v1022, %v1033
    %1040 = vrot.lane.b32.xlu0 %v1036, 64
    %v1041 = vpop.permute.xlu0 %1040
    %1042 = vrot.lane.b32.xlu0 %v1037, 64
    %v1043 = vpop.permute.xlu0 %1042
    %v1046 = vadd.f32 %v1007, %v1041
    %v1047 = vadd.f32 %v1008, %v1043
    %v1048 = vtanh.pop %v1046
    %v1049 = vtanh.pop %v1047
    %1052 = vrot.lane.b32.xlu0 %v1048, 64
    %v1053 = vpop.permute.xlu0 %1052
    %1054 = vrot.lane.b32.xlu0 %v1049, 64
    %v1055 = vpop.permute.xlu0 %1054
    %v1058 = vsub.f32 %v960, %v1053
    %v1059 = vsub.f32 %v961, %v1055
    %1062 = vrot.lane.b32.xlu0 %v1058, 32
    %v1063 = vpop.permute.xlu0 %1062
    %1064 = vrot.lane.b32.xlu0 %v1059, 32
    %v1065 = vpop.permute.xlu0 %1064
    %v1068 = vmul.f32 %v1020, %v1063
    %v1069 = vmul.f32 %v1022, %v1065
    %1072 = vrot.lane.b32.xlu0 %v1068, 32
    %v1073 = vpop.permute.xlu0 %1072
    %1074 = vrot.lane.b32.xlu0 %v1069, 32
    %v1075 = vpop.permute.xlu0 %1074
    %v1078 = vadd.f32 %v1048, %v1073
    %v1079 = vadd.f32 %v1049, %v1075
    %1082 = vrot.lane.b32.xlu0 %v1078, 64
    %v1083 = vpop.permute.xlu0 %1082
    %1084 = vrot.lane.b32.xlu0 %v1079, 64
    %v1085 = vpop.permute.xlu0 %1084
    %1088 = vst.msk [vmem:[#allocation2] sm:$0xff] %vm161, %v1083
    %1089 = vst.msk [vmem:[#allocation2 + $0x8] sm:$0xff] %vm161, %v1085
    %v1090 = vpack.c.bf16 %v1079, %v1078
    %1092 = vrot.lane.b32.xlu0 %v1090, 64
    %v1093 = vpop.permute.xlu0 %1092
    %v1095 = vsel %vm161, %v1093, 0
    %1097 = vmatprep.subr.bf16.mxu0 0
    %1098 = vmatpush1.bf16.msra.mxu0 0
    %1099 = vmatprep.subr.bf16.mxu0 0
    %1100 = vmatpush1.bf16.msra.mxu0 0
    %1101 = vmatprep.subr.bf16.mxu0 0
    %1102 = vmatpush1.bf16.msra.mxu0 0
    %1103 = vmatprep.subr.bf16.mxu0 0
    %1104 = vmatpush1.bf16.msra.mxu0 0
    %1105 = vmatprep.subr.bf16.mxu0 0
    %1106 = vmatpush1.bf16.msra.mxu0 0
    %1107 = vmatprep.subr.bf16.mxu0 0
    %1108 = vmatpush1.bf16.msra.mxu0 0
    %1109 = vmatprep.subr.bf16.mxu0 0
    %1110 = vmatpush1.bf16.msra.mxu0 %v546
    %1111 = vmatprep.subr.bf16.mxu0 0
    %1112 = vmatpush1.bf16.msra.mxu0 %v545
    %1113 = vmatprep.subr.bf16.mxu0 0
    %1114 = vmatpush2.bf16.msra.mxu0 0
    %1115 = vmatprep.subr.bf16.mxu0 0
    %1116 = vmatpush2.bf16.msra.mxu0 0
    %1117 = vmatprep.subr.bf16.mxu0 0
    %1118 = vmatpush2.bf16.msra.mxu0 0
    %1119 = vmatprep.subr.bf16.mxu0 0
    %1120 = vmatpush2.bf16.msra.mxu0 0
    %1121 = vmatprep.subr.bf16.mxu0 0
    %1122 = vmatpush2.bf16.msra.mxu0 0
    %1123 = vmatprep.subr.bf16.mxu0 0
    %1124 = vmatpush2.bf16.msra.mxu0 0
    %1125 = vmatprep.subr.bf16.mxu0 0
    %1126 = vmatpush2.bf16.msra.mxu0 0
    %1127 = vmatprep.subr.bf16.mxu0 0
    %1128 = vmatpush2.bf16.msra.mxu0 0
    %1129 = vmatprep.mubr.bf16.mxu0 0
    %1130 = vmatmul.mubr.bf16.gmra.mxu0 %v1095
    %v1131 = vpop.f32.mrf.mxu0
    %v1132 = vadd.f32 0.0, %v1131
    %v1133 = vpop.f32.mrf.mxu0
    %v1134 = vpop.f32.mrf.mxu0
    %v1135 = vadd.f32 0.0, %v1134
    %v1136 = vpop.f32.mrf.mxu0
    %1137 = vdwg.mxu0
    %v1138 = vld [vmem:[%s657] sm:$0xff]
    %v1139 = vld [vmem:[%s657 + $0x8] sm:$0xff]
    %v1140 = vadd.f32 %v1138, %v1132
    %v1141 = vadd.f32 %v1139, %v1135
    %v1142 = vsub.f32 0.0, %v1140
    %v1143 = vsub.f32 0.0, %v1141
    %v1144 = vmul.f32 %v1142, 1.442695
    %v1145 = vpow.pop %v1144
    %v1146 = vmul.f32 %v1143, 1.442695
    %v1147 = vpow.pop %v1146
    %v1148 = vadd.f32 %v1145, 1.0
    %v1149 = vadd.f32 %v1147, 1.0
    %v1150 = vrcp.pop %v1148
    %v1151 = vmul.f32 1.0, %v1150
    %v1152 = vrcp.pop %v1149
    %v1153 = vmul.f32 1.0, %v1152
    %v1154 = vadd.f32 %v1132, %v1024
    %v1155 = vadd.f32 %v1135, %v1024
    %1158 = vrot.lane.b32.xlu0 %v1154, 64
    %v1159 = vpop.permute.xlu0 %1158
    %1160 = vrot.lane.b32.xlu0 %v1155, 64
    %v1161 = vpop.permute.xlu0 %1160
    %v1164 = vmul.f32 %v1151, %v1159
    %v1165 = vmul.f32 %v1153, %v1161
    %1168 = vrot.lane.b32.xlu0 %v1164, 64
    %v1169 = vpop.permute.xlu0 %1168
    %1170 = vrot.lane.b32.xlu0 %v1165, 64
    %v1171 = vpop.permute.xlu0 %1170
    %v1174 = vadd.f32 %v1138, %v1169
    %v1175 = vadd.f32 %v1139, %v1171
    %v1176 = vtanh.pop %v1174
    %v1177 = vtanh.pop %v1175
    %v1178 = vsub.f32 %v1078, %v1176
    %v1179 = vsub.f32 %v1079, %v1177
    %1182 = vrot.lane.b32.xlu0 %v1178, 96
    %v1183 = vpop.permute.xlu0 %1182
    %1184 = vrot.lane.b32.xlu0 %v1179, 96
    %v1185 = vpop.permute.xlu0 %1184
    %v1188 = vmul.f32 %v1151, %v1183
    %v1189 = vmul.f32 %v1153, %v1185
    %1192 = vrot.lane.b32.xlu0 %v1188, 32
    %v1193 = vpop.permute.xlu0 %1192
    %1194 = vrot.lane.b32.xlu0 %v1189, 32
    %v1195 = vpop.permute.xlu0 %1194
    %v1198 = vadd.f32 %v1176, %v1193
    %v1199 = vadd.f32 %v1177, %v1195
    %1202 = vrot.lane.b32.xlu0 %v1198, 64
    %v1203 = vpop.permute.xlu0 %1202
    %1204 = vrot.lane.b32.xlu0 %v1199, 64
    %v1205 = vpop.permute.xlu0 %1204
    %1208 = vst.msk [vmem:[%s214] sm:$0xff] %vm161, %v1203
    %1209 = vst.msk [vmem:[%s214 + $0x8] sm:$0xff] %vm161, %v1205
    %v1210 = vpack.c.bf16 %v1199, %v1198
    %1212 = vrot.lane.b32.xlu0 %v1210, 64
    %v1213 = vpop.permute.xlu0 %1212
    %v1215 = vsel %vm161, %v1213, 0
    %1217 = vmatprep.subr.bf16.mxu0 0
    %1218 = vmatpush1.bf16.msra.mxu0 0
    %1219 = vmatprep.subr.bf16.mxu0 0
    %1220 = vmatpush1.bf16.msra.mxu0 0
    %1221 = vmatprep.subr.bf16.mxu0 0
    %1222 = vmatpush1.bf16.msra.mxu0 0
    %1223 = vmatprep.subr.bf16.mxu0 0
    %1224 = vmatpush1.bf16.msra.mxu0 0
    %1225 = vmatprep.subr.bf16.mxu0 0
    %1226 = vmatpush1.bf16.msra.mxu0 0
    %1227 = vmatprep.subr.bf16.mxu0 0
    %1228 = vmatpush1.bf16.msra.mxu0 0
    %1229 = vmatprep.subr.bf16.mxu0 0
    %1230 = vmatpush1.bf16.msra.mxu0 %v546
    %1231 = vmatprep.subr.bf16.mxu0 0
    %1232 = vmatpush1.bf16.msra.mxu0 %v545
    %1233 = vmatprep.subr.bf16.mxu0 0
    %1234 = vmatpush2.bf16.msra.mxu0 0
    %1235 = vmatprep.subr.bf16.mxu0 0
    %1236 = vmatpush2.bf16.msra.mxu0 0
    %1237 = vmatprep.subr.bf16.mxu0 0
    %1238 = vmatpush2.bf16.msra.mxu0 0
    %1239 = vmatprep.subr.bf16.mxu0 0
    %1240 = vmatpush2.bf16.msra.mxu0 0
    %1241 = vmatprep.subr.bf16.mxu0 0
    %1242 = vmatpush2.bf16.msra.mxu0 0
    %1243 = vmatprep.subr.bf16.mxu0 0
    %1244 = vmatpush2.bf16.msra.mxu0 0
    %1245 = vmatprep.subr.bf16.mxu0 0
    %1246 = vmatpush2.bf16.msra.mxu0 0
    %1247 = vmatprep.subr.bf16.mxu0 0
    %1248 = vmatpush2.bf16.msra.mxu0 0
    %1249 = vmatprep.mubr.bf16.mxu0 0
    %1250 = vmatmul.mubr.bf16.gmra.mxu0 %v1215
    %v1251 = vpop.f32.mrf.mxu0
    %v1252 = vadd.f32 0.0, %v1251
    %v1253 = vpop.f32.mrf.mxu0
    %v1254 = vpop.f32.mrf.mxu0
    %v1255 = vadd.f32 0.0, %v1254
    %v1256 = vpop.f32.mrf.mxu0
    %1257 = vdwg.mxu0
    %v1258 = vld [vmem:[%s707] sm:$0xff]
    %v1259 = vld [vmem:[%s707 + $0x8] sm:$0xff]
    %v1260 = vadd.f32 %v1258, %v1252
    %v1261 = vadd.f32 %v1259, %v1255
    %v1262 = vsub.f32 0.0, %v1260
    %v1263 = vsub.f32 0.0, %v1261
    %v1264 = vmul.f32 %v1262, 1.442695
    %v1265 = vpow.pop %v1264
    %v1266 = vmul.f32 %v1263, 1.442695
    %v1267 = vpow.pop %v1266
    %v1268 = vadd.f32 %v1265, 1.0
    %v1269 = vadd.f32 %v1267, 1.0
    %v1270 = vrcp.pop %v1268
    %v1271 = vmul.f32 1.0, %v1270
    %v1272 = vrcp.pop %v1269
    %v1273 = vmul.f32 1.0, %v1272
    %v1274 = vadd.f32 %v1252, %v1024
    %v1275 = vadd.f32 %v1255, %v1024
    %1278 = vrot.lane.b32.xlu0 %v1274, 64
    %v1279 = vpop.permute.xlu0 %1278
    %1280 = vrot.lane.b32.xlu0 %v1275, 64
    %v1281 = vpop.permute.xlu0 %1280
    %v1284 = vmul.f32 %v1271, %v1279
    %v1285 = vmul.f32 %v1273, %v1281
    %1288 = vrot.lane.b32.xlu0 %v1284, 64
    %v1289 = vpop.permute.xlu0 %1288
    %1290 = vrot.lane.b32.xlu0 %v1285, 64
    %v1291 = vpop.permute.xlu0 %1290
    %v1294 = vadd.f32 %v1258, %v1289
    %v1295 = vadd.f32 %v1259, %v1291
    %v1296 = vtanh.pop %v1294
    %v1297 = vtanh.pop %v1295
    %v1298 = vsub.f32 %v1198, %v1296
    %v1299 = vsub.f32 %v1199, %v1297
    %1302 = vrot.lane.b32.xlu0 %v1298, 96
    %v1303 = vpop.permute.xlu0 %1302
    %1304 = vrot.lane.b32.xlu0 %v1299, 96
    %v1305 = vpop.permute.xlu0 %1304
    %v1308 = vmul.f32 %v1271, %v1303
    %v1309 = vmul.f32 %v1273, %v1305
    %1312 = vrot.lane.b32.xlu0 %v1308, 32
    %v1313 = vpop.permute.xlu0 %1312
    %1314 = vrot.lane.b32.xlu0 %v1309, 32
    %v1315 = vpop.permute.xlu0 %1314
    %v1318 = vadd.f32 %v1296, %v1313
    %v1319 = vadd.f32 %v1297, %v1315
    %1322 = vrot.lane.b32.xlu0 %v1318, 64
    %v1323 = vpop.permute.xlu0 %1322
    %1324 = vrot.lane.b32.xlu0 %v1319, 64
    %v1325 = vpop.permute.xlu0 %1324
    %1328 = vst.msk [vmem:[%s267] sm:$0xff] %vm161, %v1323
    %1329 = vst.msk [vmem:[%s267 + $0x8] sm:$0xff] %vm161, %v1325
    %v1330 = vpack.c.bf16 %v1319, %v1318
    %1332 = vrot.lane.b32.xlu0 %v1330, 64
    %v1333 = vpop.permute.xlu0 %1332
    %v1335 = vsel %vm161, %v1333, 0
    %1337 = vmatprep.subr.bf16.mxu0 0
    %1338 = vmatpush1.bf16.msra.mxu0 0
    %1339 = vmatprep.subr.bf16.mxu0 0
    %1340 = vmatpush1.bf16.msra.mxu0 0
    %1341 = vmatprep.subr.bf16.mxu0 0
    %1342 = vmatpush1.bf16.msra.mxu0 0
    %1343 = vmatprep.subr.bf16.mxu0 0
    %1344 = vmatpush1.bf16.msra.mxu0 0
    %1345 = vmatprep.subr.bf16.mxu0 0
    %1346 = vmatpush1.bf16.msra.mxu0 0
    %1347 = vmatprep.subr.bf16.mxu0 0
    %1348 = vmatpush1.bf16.msra.mxu0 0
    %1349 = vmatprep.subr.bf16.mxu0 0
    %1350 = vmatpush1.bf16.msra.mxu0 %v546
    %1351 = vmatprep.subr.bf16.mxu0 0
    %1352 = vmatpush1.bf16.msra.mxu0 %v545
    %1353 = vmatprep.subr.bf16.mxu0 0
    %1354 = vmatpush2.bf16.msra.mxu0 0
    %1355 = vmatprep.subr.bf16.mxu0 0
    %1356 = vmatpush2.bf16.msra.mxu0 0
    %1357 = vmatprep.subr.bf16.mxu0 0
    %1358 = vmatpush2.bf16.msra.mxu0 0
    %1359 = vmatprep.subr.bf16.mxu0 0
    %1360 = vmatpush2.bf16.msra.mxu0 0
    %1361 = vmatprep.subr.bf16.mxu0 0
    %1362 = vmatpush2.bf16.msra.mxu0 0
    %1363 = vmatprep.subr.bf16.mxu0 0
    %1364 = vmatpush2.bf16.msra.mxu0 0
    %1365 = vmatprep.subr.bf16.mxu0 0
    %1366 = vmatpush2.bf16.msra.mxu0 0
    %1367 = vmatprep.subr.bf16.mxu0 0
    %1368 = vmatpush2.bf16.msra.mxu0 0
    %1369 = vmatprep.mubr.bf16.mxu0 0
    %1370 = vmatmul.mubr.bf16.gmra.mxu0 %v1335
    %v1371 = vpop.f32.mrf.mxu0
    %v1372 = vadd.f32 0.0, %v1371
    %v1373 = vpop.f32.mrf.mxu0
    %v1374 = vpop.f32.mrf.mxu0
    %v1375 = vadd.f32 0.0, %v1374
    %v1376 = vpop.f32.mrf.mxu0
    %1377 = vdwg.mxu0
    %v1378 = vld [vmem:[%s757] sm:$0xff]
    %v1379 = vld [vmem:[%s757 + $0x8] sm:$0xff]
    %v1380 = vadd.f32 %v1378, %v1372
    %v1381 = vadd.f32 %v1379, %v1375
    %v1382 = vsub.f32 0.0, %v1380
    %v1383 = vsub.f32 0.0, %v1381
    %v1384 = vmul.f32 %v1382, 1.442695
    %v1385 = vpow.pop %v1384
    %v1386 = vmul.f32 %v1383, 1.442695
    %v1387 = vpow.pop %v1386
    %v1388 = vadd.f32 %v1385, 1.0
    %v1389 = vadd.f32 %v1387, 1.0
    %v1390 = vrcp.pop %v1388
    %v1391 = vmul.f32 1.0, %v1390
    %v1392 = vrcp.pop %v1389
    %v1393 = vmul.f32 1.0, %v1392
    %v1394 = vadd.f32 %v1372, %v1024
    %v1395 = vadd.f32 %v1375, %v1024
    %1398 = vrot.lane.b32.xlu0 %v1394, 64
    %v1399 = vpop.permute.xlu0 %1398
    %1400 = vrot.lane.b32.xlu0 %v1395, 64
    %v1401 = vpop.permute.xlu0 %1400
    %v1404 = vmul.f32 %v1391, %v1399
    %v1405 = vmul.f32 %v1393, %v1401
    %1408 = vrot.lane.b32.xlu0 %v1404, 64
    %v1409 = vpop.permute.xlu0 %1408
    %1410 = vrot.lane.b32.xlu0 %v1405, 64
    %v1411 = vpop.permute.xlu0 %1410
    %v1414 = vadd.f32 %v1378, %v1409
    %v1415 = vadd.f32 %v1379, %v1411
    %v1416 = vtanh.pop %v1414
    %v1417 = vtanh.pop %v1415
    %v1418 = vsub.f32 %v1318, %v1416
    %v1419 = vsub.f32 %v1319, %v1417
    %1422 = vrot.lane.b32.xlu0 %v1418, 96
    %v1423 = vpop.permute.xlu0 %1422
    %1424 = vrot.lane.b32.xlu0 %v1419, 96
    %v1425 = vpop.permute.xlu0 %1424
    %v1428 = vmul.f32 %v1391, %v1423
    %v1429 = vmul.f32 %v1393, %v1425
    %1432 = vrot.lane.b32.xlu0 %v1428, 32
    %v1433 = vpop.permute.xlu0 %1432
    %1434 = vrot.lane.b32.xlu0 %v1429, 32
    %v1435 = vpop.permute.xlu0 %1434
    %v1438 = vadd.f32 %v1416, %v1433
    %v1439 = vadd.f32 %v1417, %v1435
    %1442 = vrot.lane.b32.xlu0 %v1438, 64
    %v1443 = vpop.permute.xlu0 %1442
    %1444 = vrot.lane.b32.xlu0 %v1439, 64
    %v1445 = vpop.permute.xlu0 %1444
    %1448 = vst.msk [vmem:[%s320] sm:$0xff] %vm161, %v1443
    %1449 = vst.msk [vmem:[%s320 + $0x8] sm:$0xff] %vm161, %v1445
    %v1450 = vpack.c.bf16 %v1439, %v1438
    %1452 = vrot.lane.b32.xlu0 %v1450, 64
    %v1453 = vpop.permute.xlu0 %1452
    %v1455 = vsel %vm161, %v1453, 0
    %1457 = vmatprep.subr.bf16.mxu0 0
    %1458 = vmatpush1.bf16.msra.mxu0 0
    %1459 = vmatprep.subr.bf16.mxu0 0
    %1460 = vmatpush1.bf16.msra.mxu0 0
    %1461 = vmatprep.subr.bf16.mxu0 0
    %1462 = vmatpush1.bf16.msra.mxu0 0
    %1463 = vmatprep.subr.bf16.mxu0 0
    %1464 = vmatpush1.bf16.msra.mxu0 0
    %1465 = vmatprep.subr.bf16.mxu0 0
    %1466 = vmatpush1.bf16.msra.mxu0 0
    %1467 = vmatprep.subr.bf16.mxu0 0
    %1468 = vmatpush1.bf16.msra.mxu0 0
    %1469 = vmatprep.subr.bf16.mxu0 0
    %1470 = vmatpush1.bf16.msra.mxu0 %v546
    %1471 = vmatprep.subr.bf16.mxu0 0
    %1472 = vmatpush1.bf16.msra.mxu0 %v545
    %1473 = vmatprep.subr.bf16.mxu0 0
    %1474 = vmatpush2.bf16.msra.mxu0 0
    %1475 = vmatprep.subr.bf16.mxu0 0
    %1476 = vmatpush2.bf16.msra.mxu0 0
    %1477 = vmatprep.subr.bf16.mxu0 0
    %1478 = vmatpush2.bf16.msra.mxu0 0
    %1479 = vmatprep.subr.bf16.mxu0 0
    %1480 = vmatpush2.bf16.msra.mxu0 0
    %1481 = vmatprep.subr.bf16.mxu0 0
    %1482 = vmatpush2.bf16.msra.mxu0 0
    %1483 = vmatprep.subr.bf16.mxu0 0
    %1484 = vmatpush2.bf16.msra.mxu0 0
    %1485 = vmatprep.subr.bf16.mxu0 0
    %1486 = vmatpush2.bf16.msra.mxu0 0
    %1487 = vmatprep.subr.bf16.mxu0 0
    %1488 = vmatpush2.bf16.msra.mxu0 0
    %1489 = vmatprep.mubr.bf16.mxu0 0
    %1490 = vmatmul.mubr.bf16.gmra.mxu0 %v1455
    %v1491 = vpop.f32.mrf.mxu0
    %v1492 = vadd.f32 0.0, %v1491
    %v1493 = vpop.f32.mrf.mxu0
    %v1494 = vpop.f32.mrf.mxu0
    %v1495 = vadd.f32 0.0, %v1494
    %v1496 = vpop.f32.mrf.mxu0
    %1497 = vdwg.mxu0
    %v1498 = vld [vmem:[%s807] sm:$0xff]
    %v1499 = vld [vmem:[%s807 + $0x8] sm:$0xff]
    %v1500 = vadd.f32 %v1498, %v1492
    %v1501 = vadd.f32 %v1499, %v1495
    %v1502 = vsub.f32 0.0, %v1500
    %v1503 = vsub.f32 0.0, %v1501
    %v1504 = vmul.f32 %v1502, 1.442695
    %v1505 = vpow.pop %v1504
    %v1506 = vmul.f32 %v1503, 1.442695
    %v1507 = vpow.pop %v1506
    %v1508 = vadd.f32 %v1505, 1.0
    %v1509 = vadd.f32 %v1507, 1.0
    %v1510 = vrcp.pop %v1508
    %v1511 = vmul.f32 1.0, %v1510
    %v1512 = vrcp.pop %v1509
    %v1513 = vmul.f32 1.0, %v1512
    %v1514 = vadd.f32 %v1492, %v1024
    %v1515 = vadd.f32 %v1495, %v1024
    %1518 = vrot.lane.b32.xlu0 %v1514, 64
    %v1519 = vpop.permute.xlu0 %1518
    %1520 = vrot.lane.b32.xlu0 %v1515, 64
    %v1521 = vpop.permute.xlu0 %1520
    %v1524 = vmul.f32 %v1511, %v1519
    %v1525 = vmul.f32 %v1513, %v1521
    %1528 = vrot.lane.b32.xlu0 %v1524, 64
    %v1529 = vpop.permute.xlu0 %1528
    %1530 = vrot.lane.b32.xlu0 %v1525, 64
    %v1531 = vpop.permute.xlu0 %1530
    %v1534 = vadd.f32 %v1498, %v1529
    %v1535 = vadd.f32 %v1499, %v1531
    %v1536 = vtanh.pop %v1534
    %v1537 = vtanh.pop %v1535
    %v1538 = vsub.f32 %v1438, %v1536
    %v1539 = vsub.f32 %v1439, %v1537
    %1542 = vrot.lane.b32.xlu0 %v1538, 96
    %v1543 = vpop.permute.xlu0 %1542
    %1544 = vrot.lane.b32.xlu0 %v1539, 96
    %v1545 = vpop.permute.xlu0 %1544
    %v1548 = vmul.f32 %v1511, %v1543
    %v1549 = vmul.f32 %v1513, %v1545
    %1552 = vrot.lane.b32.xlu0 %v1548, 32
    %v1553 = vpop.permute.xlu0 %1552
    %1554 = vrot.lane.b32.xlu0 %v1549, 32
    %v1555 = vpop.permute.xlu0 %1554
    %v1558 = vadd.f32 %v1536, %v1553
    %v1559 = vadd.f32 %v1537, %v1555
    %1562 = vrot.lane.b32.xlu0 %v1558, 64
    %v1563 = vpop.permute.xlu0 %1562
    %1564 = vrot.lane.b32.xlu0 %v1559, 64
    %v1565 = vpop.permute.xlu0 %1564
    %1568 = vst.msk [vmem:[%s373] sm:$0xff] %vm161, %v1563
    %1569 = vst.msk [vmem:[%s373 + $0x8] sm:$0xff] %vm161, %v1565
    %v1570 = vpack.c.bf16 %v1559, %v1558
    %1572 = vrot.lane.b32.xlu0 %v1570, 64
    %v1573 = vpop.permute.xlu0 %1572
    %v1575 = vsel %vm161, %v1573, 0
    %1577 = vmatprep.subr.bf16.mxu0 0
    %1578 = vmatpush1.bf16.msra.mxu0 0
    %1579 = vmatprep.subr.bf16.mxu0 0
    %1580 = vmatpush1.bf16.msra.mxu0 0
    %1581 = vmatprep.subr.bf16.mxu0 0
    %1582 = vmatpush1.bf16.msra.mxu0 0
    %1583 = vmatprep.subr.bf16.mxu0 0
    %1584 = vmatpush1.bf16.msra.mxu0 0
    %1585 = vmatprep.subr.bf16.mxu0 0
    %1586 = vmatpush1.bf16.msra.mxu0 0
    %1587 = vmatprep.subr.bf16.mxu0 0
    %1588 = vmatpush1.bf16.msra.mxu0 0
    %1589 = vmatprep.subr.bf16.mxu0 0
    %1590 = vmatpush1.bf16.msra.mxu0 %v546
    %1591 = vmatprep.subr.bf16.mxu0 0
    %1592 = vmatpush1.bf16.msra.mxu0 %v545
    %1593 = vmatprep.subr.bf16.mxu0 0
    %1594 = vmatpush2.bf16.msra.mxu0 0
    %1595 = vmatprep.subr.bf16.mxu0 0
    %1596 = vmatpush2.bf16.msra.mxu0 0
    %1597 = vmatprep.subr.bf16.mxu0 0
    %1598 = vmatpush2.bf16.msra.mxu0 0
    %1599 = vmatprep.subr.bf16.mxu0 0
    %1600 = vmatpush2.bf16.msra.mxu0 0
    %1601 = vmatprep.subr.bf16.mxu0 0
    %1602 = vmatpush2.bf16.msra.mxu0 0
    %1603 = vmatprep.subr.bf16.mxu0 0
    %1604 = vmatpush2.bf16.msra.mxu0 0
    %1605 = vmatprep.subr.bf16.mxu0 0
    %1606 = vmatpush2.bf16.msra.mxu0 0
    %1607 = vmatprep.subr.bf16.mxu0 0
    %1608 = vmatpush2.bf16.msra.mxu0 0
    %1609 = vmatprep.mubr.bf16.mxu0 0
    %1610 = vmatmul.mubr.bf16.gmra.mxu0 %v1575
    %v1611 = vpop.f32.mrf.mxu0
    %v1612 = vadd.f32 0.0, %v1611
    %v1613 = vpop.f32.mrf.mxu0
    %v1614 = vpop.f32.mrf.mxu0
    %v1615 = vadd.f32 0.0, %v1614
    %v1616 = vpop.f32.mrf.mxu0
    %1617 = vdwg.mxu0
    %v1618 = vld [vmem:[%s857] sm:$0xff]
    %v1619 = vld [vmem:[%s857 + $0x8] sm:$0xff]
    %v1620 = vadd.f32 %v1618, %v1612
    %v1621 = vadd.f32 %v1619, %v1615
    %v1622 = vsub.f32 0.0, %v1620
    %v1623 = vsub.f32 0.0, %v1621
    %v1624 = vmul.f32 %v1622, 1.442695
    %v1625 = vpow.pop %v1624
    %v1626 = vmul.f32 %v1623, 1.442695
    %v1627 = vpow.pop %v1626
    %v1628 = vadd.f32 %v1625, 1.0
    %v1629 = vadd.f32 %v1627, 1.0
    %v1630 = vrcp.pop %v1628
    %v1631 = vmul.f32 1.0, %v1630
    %v1632 = vrcp.pop %v1629
    %v1633 = vmul.f32 1.0, %v1632
    %v1634 = vadd.f32 %v1612, %v1024
    %v1635 = vadd.f32 %v1615, %v1024
    %1638 = vrot.lane.b32.xlu0 %v1634, 64
    %v1639 = vpop.permute.xlu0 %1638
    %1640 = vrot.lane.b32.xlu0 %v1635, 64
    %v1641 = vpop.permute.xlu0 %1640
    %v1644 = vmul.f32 %v1631, %v1639
    %v1645 = vmul.f32 %v1633, %v1641
    %1648 = vrot.lane.b32.xlu0 %v1644, 64
    %v1649 = vpop.permute.xlu0 %1648
    %1650 = vrot.lane.b32.xlu0 %v1645, 64
    %v1651 = vpop.permute.xlu0 %1650
    %v1654 = vadd.f32 %v1618, %v1649
    %v1655 = vadd.f32 %v1619, %v1651
    %v1656 = vtanh.pop %v1654
    %v1657 = vtanh.pop %v1655
    %v1658 = vsub.f32 %v1558, %v1656
    %v1659 = vsub.f32 %v1559, %v1657
    %1662 = vrot.lane.b32.xlu0 %v1658, 96
    %v1663 = vpop.permute.xlu0 %1662
    %1664 = vrot.lane.b32.xlu0 %v1659, 96
    %v1665 = vpop.permute.xlu0 %1664
    %v1668 = vmul.f32 %v1631, %v1663
    %v1669 = vmul.f32 %v1633, %v1665
    %1672 = vrot.lane.b32.xlu0 %v1668, 32
    %v1673 = vpop.permute.xlu0 %1672
    %1674 = vrot.lane.b32.xlu0 %v1669, 32
    %v1675 = vpop.permute.xlu0 %1674
    %v1678 = vadd.f32 %v1656, %v1673
    %v1679 = vadd.f32 %v1657, %v1675
    %1682 = vrot.lane.b32.xlu0 %v1678, 64
    %v1683 = vpop.permute.xlu0 %1682
    %1684 = vrot.lane.b32.xlu0 %v1679, 64
    %v1685 = vpop.permute.xlu0 %1684
    %1688 = vst.msk [vmem:[%s426] sm:$0xff] %vm161, %v1683
    %1689 = vst.msk [vmem:[%s426 + $0x8] sm:$0xff] %vm161, %v1685
    %v1690 = vpack.c.bf16 %v1679, %v1678
    %1692 = vrot.lane.b32.xlu0 %v1690, 64
    %v1693 = vpop.permute.xlu0 %1692
    %v1695 = vsel %vm161, %v1693, 0
    %1697 = vmatprep.subr.bf16.mxu0 0
    %1698 = vmatpush1.bf16.msra.mxu0 0
    %1699 = vmatprep.subr.bf16.mxu0 0
    %1700 = vmatpush1.bf16.msra.mxu0 0
    %1701 = vmatprep.subr.bf16.mxu0 0
    %1702 = vmatpush1.bf16.msra.mxu0 0
    %1703 = vmatprep.subr.bf16.mxu0 0
    %1704 = vmatpush1.bf16.msra.mxu0 0
    %1705 = vmatprep.subr.bf16.mxu0 0
    %1706 = vmatpush1.bf16.msra.mxu0 0
    %1707 = vmatprep.subr.bf16.mxu0 0
    %1708 = vmatpush1.bf16.msra.mxu0 0
    %1709 = vmatprep.subr.bf16.mxu0 0
    %1710 = vmatpush1.bf16.msra.mxu0 %v546
    %1711 = vmatprep.subr.bf16.mxu0 0
    %1712 = vmatpush1.bf16.msra.mxu0 %v545
    %1713 = vmatprep.subr.bf16.mxu0 0
    %1714 = vmatpush2.bf16.msra.mxu0 0
    %1715 = vmatprep.subr.bf16.mxu0 0
    %1716 = vmatpush2.bf16.msra.mxu0 0
    %1717 = vmatprep.subr.bf16.mxu0 0
    %1718 = vmatpush2.bf16.msra.mxu0 0
    %1719 = vmatprep.subr.bf16.mxu0 0
    %1720 = vmatpush2.bf16.msra.mxu0 0
    %1721 = vmatprep.subr.bf16.mxu0 0
    %1722 = vmatpush2.bf16.msra.mxu0 0
    %1723 = vmatprep.subr.bf16.mxu0 0
    %1724 = vmatpush2.bf16.msra.mxu0 0
    %1725 = vmatprep.subr.bf16.mxu0 0
    %1726 = vmatpush2.bf16.msra.mxu0 0
    %1727 = vmatprep.subr.bf16.mxu0 0
    %1728 = vmatpush2.bf16.msra.mxu0 0
    %1729 = vmatprep.mubr.bf16.mxu0 0
    %1730 = vmatmul.mubr.bf16.gmra.mxu0 %v1695
    %v1731 = vpop.f32.mrf.mxu0
    %v1732 = vadd.f32 0.0, %v1731
    %v1733 = vpop.f32.mrf.mxu0
    %v1734 = vpop.f32.mrf.mxu0
    %v1735 = vadd.f32 0.0, %v1734
    %v1736 = vpop.f32.mrf.mxu0
    %1737 = vdwg.mxu0
    %v1738 = vld [vmem:[%s907] sm:$0xff]
    %v1739 = vld [vmem:[%s907 + $0x8] sm:$0xff]
    %v1740 = vadd.f32 %v1738, %v1732
    %v1741 = vadd.f32 %v1739, %v1735
    %v1742 = vsub.f32 0.0, %v1740
    %v1743 = vsub.f32 0.0, %v1741
    %v1744 = vmul.f32 %v1742, 1.442695
    %v1745 = vpow.pop %v1744
    %v1746 = vmul.f32 %v1743, 1.442695
    %v1747 = vpow.pop %v1746
    %v1748 = vadd.f32 %v1745, 1.0
    %v1749 = vadd.f32 %v1747, 1.0
    %v1750 = vrcp.pop %v1748
    %v1751 = vmul.f32 1.0, %v1750
    %v1752 = vrcp.pop %v1749
    %v1753 = vmul.f32 1.0, %v1752
    %v1754 = vadd.f32 %v1732, %v1024
    %v1755 = vadd.f32 %v1735, %v1024
    %1758 = vrot.lane.b32.xlu0 %v1754, 64
    %v1759 = vpop.permute.xlu0 %1758
    %1760 = vrot.lane.b32.xlu0 %v1755, 64
    %v1761 = vpop.permute.xlu0 %1760
    %v1764 = vmul.f32 %v1751, %v1759
    %v1765 = vmul.f32 %v1753, %v1761
    %1768 = vrot.lane.b32.xlu0 %v1764, 64
    %v1769 = vpop.permute.xlu0 %1768
    %1770 = vrot.lane.b32.xlu0 %v1765, 64
    %v1771 = vpop.permute.xlu0 %1770
    %v1774 = vadd.f32 %v1738, %v1769
    %v1775 = vadd.f32 %v1739, %v1771
    %v1776 = vtanh.pop %v1774
    %v1777 = vtanh.pop %v1775
    %v1778 = vsub.f32 %v1678, %v1776
    %v1779 = vsub.f32 %v1679, %v1777
    %1782 = vrot.lane.b32.xlu0 %v1778, 96
    %v1783 = vpop.permute.xlu0 %1782
    %1784 = vrot.lane.b32.xlu0 %v1779, 96
    %v1785 = vpop.permute.xlu0 %1784
    %v1788 = vmul.f32 %v1751, %v1783
    %v1789 = vmul.f32 %v1753, %v1785
    %1792 = vrot.lane.b32.xlu0 %v1788, 32
    %v1793 = vpop.permute.xlu0 %1792
    %1794 = vrot.lane.b32.xlu0 %v1789, 32
    %v1795 = vpop.permute.xlu0 %1794
    %v1798 = vadd.f32 %v1776, %v1793
    %v1799 = vadd.f32 %v1777, %v1795
    %1802 = vrot.lane.b32.xlu0 %v1798, 64
    %v1803 = vpop.permute.xlu0 %1802
    %1804 = vrot.lane.b32.xlu0 %v1799, 64
    %v1805 = vpop.permute.xlu0 %1804
    %1808 = vst.msk [vmem:[%s479] sm:$0xff] %vm161, %v1803
    %1809 = vst.msk [vmem:[%s479 + $0x8] sm:$0xff] %vm161, %v1805
    %v1810 = vpack.c.bf16 %v1799, %v1798
    %1812 = vrot.lane.b32.xlu0 %v1810, 64
    %v1813 = vpop.permute.xlu0 %1812
    %v1815 = vsel %vm161, %v1813, 0
    %1817 = vmatprep.subr.bf16.mxu0 0
    %1818 = vmatpush1.bf16.msra.mxu0 0
    %1819 = vmatprep.subr.bf16.mxu0 0
    %1820 = vmatpush1.bf16.msra.mxu0 0
    %1821 = vmatprep.subr.bf16.mxu0 0
    %1822 = vmatpush1.bf16.msra.mxu0 0
    %1823 = vmatprep.subr.bf16.mxu0 0
    %1824 = vmatpush1.bf16.msra.mxu0 0
    %1825 = vmatprep.subr.bf16.mxu0 0
    %1826 = vmatpush1.bf16.msra.mxu0 0
    %1827 = vmatprep.subr.bf16.mxu0 0
    %1828 = vmatpush1.bf16.msra.mxu0 0
    %1829 = vmatprep.subr.bf16.mxu0 0
    %1830 = vmatpush1.bf16.msra.mxu0 %v546
    %1831 = vmatprep.subr.bf16.mxu0 0
    %1832 = vmatpush1.bf16.msra.mxu0 %v545
    %1833 = vmatprep.subr.bf16.mxu0 0
    %1834 = vmatpush2.bf16.msra.mxu0 0
    %1835 = vmatprep.subr.bf16.mxu0 0
    %1836 = vmatpush2.bf16.msra.mxu0 0
    %1837 = vmatprep.subr.bf16.mxu0 0
    %1838 = vmatpush2.bf16.msra.mxu0 0
    %1839 = vmatprep.subr.bf16.mxu0 0
    %1840 = vmatpush2.bf16.msra.mxu0 0
    %1841 = vmatprep.subr.bf16.mxu0 0
    %1842 = vmatpush2.bf16.msra.mxu0 0
    %1843 = vmatprep.subr.bf16.mxu0 0
    %1844 = vmatpush2.bf16.msra.mxu0 0
    %1845 = vmatprep.subr.bf16.mxu0 0
    %1846 = vmatpush2.bf16.msra.mxu0 0
    %1847 = vmatprep.subr.bf16.mxu0 0
    %1848 = vmatpush2.bf16.msra.mxu0 0
    %1849 = vmatprep.mubr.bf16.mxu0 0
    %1850 = vmatmul.mubr.bf16.gmra.mxu0 %v1815
    %v1851 = vpop.f32.mrf.mxu0
    %v1852 = vadd.f32 0.0, %v1851
    %v1853 = vpop.f32.mrf.mxu0
    %v1854 = vpop.f32.mrf.mxu0
    %v1855 = vadd.f32 0.0, %v1854
    %v1856 = vpop.f32.mrf.mxu0
    %1857 = vdwg.mxu0
    %v1858 = vld [vmem:[%s957] sm:$0xff]
    %v1859 = vld [vmem:[%s957 + $0x8] sm:$0xff]
    %v1860 = vadd.f32 %v1858, %v1852
    %v1861 = vadd.f32 %v1859, %v1855
    %v1862 = vsub.f32 0.0, %v1860
    %v1863 = vsub.f32 0.0, %v1861
    %v1864 = vmul.f32 %v1862, 1.442695
    %v1865 = vpow.pop %v1864
    %v1866 = vmul.f32 %v1863, 1.442695
    %v1867 = vpow.pop %v1866
    %v1868 = vadd.f32 %v1865, 1.0
    %v1869 = vadd.f32 %v1867, 1.0
    %v1870 = vrcp.pop %v1868
    %v1871 = vmul.f32 1.0, %v1870
    %v1872 = vrcp.pop %v1869
    %v1873 = vmul.f32 1.0, %v1872
    %v1874 = vadd.f32 %v1852, %v1024
    %v1875 = vadd.f32 %v1855, %v1024
    %1878 = vrot.lane.b32.xlu0 %v1874, 64
    %v1879 = vpop.permute.xlu0 %1878
    %1880 = vrot.lane.b32.xlu0 %v1875, 64
    %v1881 = vpop.permute.xlu0 %1880
    %v1884 = vmul.f32 %v1871, %v1879
    %v1885 = vmul.f32 %v1873, %v1881
    %1888 = vrot.lane.b32.xlu0 %v1884, 64
    %v1889 = vpop.permute.xlu0 %1888
    %1890 = vrot.lane.b32.xlu0 %v1885, 64
    %v1891 = vpop.permute.xlu0 %1890
    %v1894 = vadd.f32 %v1858, %v1889
    %v1895 = vadd.f32 %v1859, %v1891
    %v1896 = vtanh.pop %v1894
    %v1897 = vtanh.pop %v1895
    %v1898 = vsub.f32 %v1798, %v1896
    %v1899 = vsub.f32 %v1799, %v1897
    %1902 = vrot.lane.b32.xlu0 %v1898, 96
    %v1903 = vpop.permute.xlu0 %1902
    %1904 = vrot.lane.b32.xlu0 %v1899, 96
    %v1905 = vpop.permute.xlu0 %1904
    %v1908 = vmul.f32 %v1871, %v1903
    %v1909 = vmul.f32 %v1873, %v1905
    %1912 = vrot.lane.b32.xlu0 %v1908, 32
    %v1913 = vpop.permute.xlu0 %1912
    %1914 = vrot.lane.b32.xlu0 %v1909, 32
    %v1915 = vpop.permute.xlu0 %1914
    %v1918 = vadd.f32 %v1896, %v1913
    %v1919 = vadd.f32 %v1897, %v1915
    %1922 = vrot.lane.b32.xlu0 %v1918, 64
    %v1923 = vpop.permute.xlu0 %1922
    %1924 = vrot.lane.b32.xlu0 %v1919, 64
    %v1925 = vpop.permute.xlu0 %1924
    %1928 = vst.msk [vmem:[%s532] sm:$0xff] %vm161, %v1923
    %1929 = vst.msk [vmem:[%s532 + $0x8] sm:$0xff] %vm161, %v1925
    %1930 = vst.msk [vmem:[#allocation6] sm:$0xff] %vm161, %v1923
    %1931 = vst.msk [vmem:[#allocation6 + $0x8] sm:$0xff] %vm161, %v1925
    %s1932 = scalar_lea.vmem %s6, 32
    %v1933 = vld [vmem:[%s1932] sm:$0xff]
    %v1934 = vld [vmem:[%s1932 + $0x8] sm:$0xff]
    %v1935 = vld [vmem:[%s1932 + $0x10] sm:$0xff]
    %v1936 = vld [vmem:[%s1932 + $0x18] sm:$0xff]
    %v1937 = vpack.c.bf16 %v1934, %v1933
    %v1938 = vpack.c.bf16 %v1936, %v1935
    %s1939 = scalar_lea.vmem %s7, 32
    %v1940 = vld [vmem:[%s1939] sm:$0xff]
    %v1941 = vld [vmem:[%s1939 + $0x8] sm:$0xff]
    %v1942 = vld [vmem:[%s1939 + $0x10] sm:$0xff]
    %v1943 = vld [vmem:[%s1939 + $0x18] sm:$0xff]
    %v1944 = vpack.c.bf16 %v1941, %v1940
    %v1945 = vpack.c.bf16 %v1943, %v1942
    %s1946 = scalar_lea.vmem %s8, 1
    %v1947 = vld [vmem:[%s1946] sm:$0x1]
    %v1949 = vlaneseq
    %v1950 = vshrl.u32 %v1949, 7
    %v1951 = vsub.s32 0, %v1950
    %v1952 = vrot.slane %v1947, %v1951
    %s1954 = scalar_lea.vmem %s9, 1
    %v1955 = vld [vmem:[%s1954] sm:$0x1]
    %v1957 = vlaneseq
    %v1958 = vshrl.u32 %v1957, 7
    %v1959 = vsub.s32 0, %v1958
    %v1960 = vrot.slane %v1955, %v1959
    %v1961 = vld [vmem:[#allocation2] sm:$0xff]
    %v1962 = vld [vmem:[#allocation2 + $0x8] sm:$0xff]
    %v1963 = vpack.c.bf16 %v1962, %v1961
    %v1965 = vsel %vm161, %v1963, 0
    %1967 = vmatprep.subr.bf16.mxu0 0
    %1968 = vmatpush1.bf16.msra.mxu0 0
    %1969 = vmatprep.subr.bf16.mxu0 0
    %1970 = vmatpush1.bf16.msra.mxu0 0
    %1971 = vmatprep.subr.bf16.mxu0 0
    %1972 = vmatpush1.bf16.msra.mxu0 0
    %1973 = vmatprep.subr.bf16.mxu0 0
    %1974 = vmatpush1.bf16.msra.mxu0 0
    %1975 = vmatprep.subr.bf16.mxu0 0
    %1976 = vmatpush1.bf16.msra.mxu0 0
    %1977 = vmatprep.subr.bf16.mxu0 0
    %1978 = vmatpush1.bf16.msra.mxu0 0
    %1979 = vmatprep.subr.bf16.mxu0 0
    %1980 = vmatpush1.bf16.msra.mxu0 %v1938
    %1981 = vmatprep.subr.bf16.mxu0 0
    %1982 = vmatpush1.bf16.msra.mxu0 %v1937
    %1983 = vmatprep.subr.bf16.mxu0 0
    %1984 = vmatpush2.bf16.msra.mxu0 0
    %1985 = vmatprep.subr.bf16.mxu0 0
    %1986 = vmatpush2.bf16.msra.mxu0 0
    %1987 = vmatprep.subr.bf16.mxu0 0
    %1988 = vmatpush2.bf16.msra.mxu0 0
    %1989 = vmatprep.subr.bf16.mxu0 0
    %1990 = vmatpush2.bf16.msra.mxu0 0
    %1991 = vmatprep.subr.bf16.mxu0 0
    %1992 = vmatpush2.bf16.msra.mxu0 0
    %1993 = vmatprep.subr.bf16.mxu0 0
    %1994 = vmatpush2.bf16.msra.mxu0 0
    %1995 = vmatprep.subr.bf16.mxu0 0
    %1996 = vmatpush2.bf16.msra.mxu0 0
    %1997 = vmatprep.subr.bf16.mxu0 0
    %1998 = vmatpush2.bf16.msra.mxu0 0
    %1999 = vmatprep.mubr.bf16.mxu0 0
    %2000 = vmatmul.mubr.bf16.gmra.mxu0 %v1965
    %v2001 = vpop.f32.mrf.mxu0
    %v2002 = vadd.f32 %v1952, %v2001
    %v2003 = vpop.f32.mrf.mxu0
    %v2004 = vpop.f32.mrf.mxu0
    %v2005 = vadd.f32 %v1952, %v2004
    %v2006 = vpop.f32.mrf.mxu0
    %2007 = vdwg.mxu0
    %2008 = vst.msk [vmem:[#allocation3] sm:$0xff] %vm607, %v2002
    %2009 = vst.msk [vmem:[#allocation3 + $0x8] sm:$0xff] %vm607, %v2005
    %v2010 = vld [vmem:[%s214] sm:$0xff]
    %v2011 = vld [vmem:[%s214 + $0x8] sm:$0xff]
    %v2012 = vpack.c.bf16 %v2011, %v2010
    %v2014 = vsel %vm161, %v2012, 0
    %2016 = vmatprep.subr.bf16.mxu0 0
    %2017 = vmatpush1.bf16.msra.mxu0 0
    %2018 = vmatprep.subr.bf16.mxu0 0
    %2019 = vmatpush1.bf16.msra.mxu0 0
    %2020 = vmatprep.subr.bf16.mxu0 0
    %2021 = vmatpush1.bf16.msra.mxu0 0
    %2022 = vmatprep.subr.bf16.mxu0 0
    %2023 = vmatpush1.bf16.msra.mxu0 0
    %2024 = vmatprep.subr.bf16.mxu0 0
    %2025 = vmatpush1.bf16.msra.mxu0 0
    %2026 = vmatprep.subr.bf16.mxu0 0
    %2027 = vmatpush1.bf16.msra.mxu0 0
    %2028 = vmatprep.subr.bf16.mxu0 0
    %2029 = vmatpush1.bf16.msra.mxu0 %v1938
    %2030 = vmatprep.subr.bf16.mxu0 0
    %2031 = vmatpush1.bf16.msra.mxu0 %v1937
    %2032 = vmatprep.subr.bf16.mxu0 0
    %2033 = vmatpush2.bf16.msra.mxu0 0
    %2034 = vmatprep.subr.bf16.mxu0 0
    %2035 = vmatpush2.bf16.msra.mxu0 0
    %2036 = vmatprep.subr.bf16.mxu0 0
    %2037 = vmatpush2.bf16.msra.mxu0 0
    %2038 = vmatprep.subr.bf16.mxu0 0
    %2039 = vmatpush2.bf16.msra.mxu0 0
    %2040 = vmatprep.subr.bf16.mxu0 0
    %2041 = vmatpush2.bf16.msra.mxu0 0
    %2042 = vmatprep.subr.bf16.mxu0 0
    %2043 = vmatpush2.bf16.msra.mxu0 0
    %2044 = vmatprep.subr.bf16.mxu0 0
    %2045 = vmatpush2.bf16.msra.mxu0 0
    %2046 = vmatprep.subr.bf16.mxu0 0
    %2047 = vmatpush2.bf16.msra.mxu0 0
    %2048 = vmatprep.mubr.bf16.mxu0 0
    %2049 = vmatmul.mubr.bf16.gmra.mxu0 %v2014
    %v2050 = vpop.f32.mrf.mxu0
    %v2051 = vadd.f32 %v1952, %v2050
    %v2052 = vpop.f32.mrf.mxu0
    %v2053 = vpop.f32.mrf.mxu0
    %v2054 = vadd.f32 %v1952, %v2053
    %v2055 = vpop.f32.mrf.mxu0
    %2056 = vdwg.mxu0
    %2057 = vst.msk [vmem:[%s657] sm:$0xff] %vm607, %v2051
    %2058 = vst.msk [vmem:[%s657 + $0x8] sm:$0xff] %vm607, %v2054
    %v2059 = vld [vmem:[%s267] sm:$0xff]
    %v2060 = vld [vmem:[%s267 + $0x8] sm:$0xff]
    %v2061 = vpack.c.bf16 %v2060, %v2059
    %v2063 = vsel %vm161, %v2061, 0
    %2065 = vmatprep.subr.bf16.mxu0 0
    %2066 = vmatpush1.bf16.msra.mxu0 0
    %2067 = vmatprep.subr.bf16.mxu0 0
    %2068 = vmatpush1.bf16.msra.mxu0 0
    %2069 = vmatprep.subr.bf16.mxu0 0
    %2070 = vmatpush1.bf16.msra.mxu0 0
    %2071 = vmatprep.subr.bf16.mxu0 0
    %2072 = vmatpush1.bf16.msra.mxu0 0
    %2073 = vmatprep.subr.bf16.mxu0 0
    %2074 = vmatpush1.bf16.msra.mxu0 0
    %2075 = vmatprep.subr.bf16.mxu0 0
    %2076 = vmatpush1.bf16.msra.mxu0 0
    %2077 = vmatprep.subr.bf16.mxu0 0
    %2078 = vmatpush1.bf16.msra.mxu0 %v1938
    %2079 = vmatprep.subr.bf16.mxu0 0
    %2080 = vmatpush1.bf16.msra.mxu0 %v1937
    %2081 = vmatprep.subr.bf16.mxu0 0
    %2082 = vmatpush2.bf16.msra.mxu0 0
    %2083 = vmatprep.subr.bf16.mxu0 0
    %2084 = vmatpush2.bf16.msra.mxu0 0
    %2085 = vmatprep.subr.bf16.mxu0 0
    %2086 = vmatpush2.bf16.msra.mxu0 0
    %2087 = vmatprep.subr.bf16.mxu0 0
    %2088 = vmatpush2.bf16.msra.mxu0 0
    %2089 = vmatprep.subr.bf16.mxu0 0
    %2090 = vmatpush2.bf16.msra.mxu0 0
    %2091 = vmatprep.subr.bf16.mxu0 0
    %2092 = vmatpush2.bf16.msra.mxu0 0
    %2093 = vmatprep.subr.bf16.mxu0 0
    %2094 = vmatpush2.bf16.msra.mxu0 0
    %2095 = vmatprep.subr.bf16.mxu0 0
    %2096 = vmatpush2.bf16.msra.mxu0 0
    %2097 = vmatprep.mubr.bf16.mxu0 0
    %2098 = vmatmul.mubr.bf16.gmra.mxu0 %v2063
    %v2099 = vpop.f32.mrf.mxu0
    %v2100 = vadd.f32 %v1952, %v2099
    %v2101 = vpop.f32.mrf.mxu0
    %v2102 = vpop.f32.mrf.mxu0
    %v2103 = vadd.f32 %v1952, %v2102
    %v2104 = vpop.f32.mrf.mxu0
    %2105 = vdwg.mxu0
    %2106 = vst.msk [vmem:[%s707] sm:$0xff] %vm607, %v2100
    %2107 = vst.msk [vmem:[%s707 + $0x8] sm:$0xff] %vm607, %v2103
    %v2108 = vld [vmem:[%s320] sm:$0xff]
    %v2109 = vld [vmem:[%s320 + $0x8] sm:$0xff]
    %v2110 = vpack.c.bf16 %v2109, %v2108
    %v2112 = vsel %vm161, %v2110, 0
    %2114 = vmatprep.subr.bf16.mxu0 0
    %2115 = vmatpush1.bf16.msra.mxu0 0
    %2116 = vmatprep.subr.bf16.mxu0 0
    %2117 = vmatpush1.bf16.msra.mxu0 0
    %2118 = vmatprep.subr.bf16.mxu0 0
    %2119 = vmatpush1.bf16.msra.mxu0 0
    %2120 = vmatprep.subr.bf16.mxu0 0
    %2121 = vmatpush1.bf16.msra.mxu0 0
    %2122 = vmatprep.subr.bf16.mxu0 0
    %2123 = vmatpush1.bf16.msra.mxu0 0
    %2124 = vmatprep.subr.bf16.mxu0 0
    %2125 = vmatpush1.bf16.msra.mxu0 0
    %2126 = vmatprep.subr.bf16.mxu0 0
    %2127 = vmatpush1.bf16.msra.mxu0 %v1938
    %2128 = vmatprep.subr.bf16.mxu0 0
    %2129 = vmatpush1.bf16.msra.mxu0 %v1937
    %2130 = vmatprep.subr.bf16.mxu0 0
    %2131 = vmatpush2.bf16.msra.mxu0 0
    %2132 = vmatprep.subr.bf16.mxu0 0
    %2133 = vmatpush2.bf16.msra.mxu0 0
    %2134 = vmatprep.subr.bf16.mxu0 0
    %2135 = vmatpush2.bf16.msra.mxu0 0
    %2136 = vmatprep.subr.bf16.mxu0 0
    %2137 = vmatpush2.bf16.msra.mxu0 0
    %2138 = vmatprep.subr.bf16.mxu0 0
    %2139 = vmatpush2.bf16.msra.mxu0 0
    %2140 = vmatprep.subr.bf16.mxu0 0
    %2141 = vmatpush2.bf16.msra.mxu0 0
    %2142 = vmatprep.subr.bf16.mxu0 0
    %2143 = vmatpush2.bf16.msra.mxu0 0
    %2144 = vmatprep.subr.bf16.mxu0 0
    %2145 = vmatpush2.bf16.msra.mxu0 0
    %2146 = vmatprep.mubr.bf16.mxu0 0
    %2147 = vmatmul.mubr.bf16.gmra.mxu0 %v2112
    %v2148 = vpop.f32.mrf.mxu0
    %v2149 = vadd.f32 %v1952, %v2148
    %v2150 = vpop.f32.mrf.mxu0
    %v2151 = vpop.f32.mrf.mxu0
    %v2152 = vadd.f32 %v1952, %v2151
    %v2153 = vpop.f32.mrf.mxu0
    %2154 = vdwg.mxu0
    %2155 = vst.msk [vmem:[%s757] sm:$0xff] %vm607, %v2149
    %2156 = vst.msk [vmem:[%s757 + $0x8] sm:$0xff] %vm607, %v2152
    %v2157 = vld [vmem:[%s373] sm:$0xff]
    %v2158 = vld [vmem:[%s373 + $0x8] sm:$0xff]
    %v2159 = vpack.c.bf16 %v2158, %v2157
    %v2161 = vsel %vm161, %v2159, 0
    %2163 = vmatprep.subr.bf16.mxu0 0
    %2164 = vmatpush1.bf16.msra.mxu0 0
    %2165 = vmatprep.subr.bf16.mxu0 0
    %2166 = vmatpush1.bf16.msra.mxu0 0
    %2167 = vmatprep.subr.bf16.mxu0 0
    %2168 = vmatpush1.bf16.msra.mxu0 0
    %2169 = vmatprep.subr.bf16.mxu0 0
    %2170 = vmatpush1.bf16.msra.mxu0 0
    %2171 = vmatprep.subr.bf16.mxu0 0
    %2172 = vmatpush1.bf16.msra.mxu0 0
    %2173 = vmatprep.subr.bf16.mxu0 0
    %2174 = vmatpush1.bf16.msra.mxu0 0
    %2175 = vmatprep.subr.bf16.mxu0 0
    %2176 = vmatpush1.bf16.msra.mxu0 %v1938
    %2177 = vmatprep.subr.bf16.mxu0 0
    %2178 = vmatpush1.bf16.msra.mxu0 %v1937
    %2179 = vmatprep.subr.bf16.mxu0 0
    %2180 = vmatpush2.bf16.msra.mxu0 0
    %2181 = vmatprep.subr.bf16.mxu0 0
    %2182 = vmatpush2.bf16.msra.mxu0 0
    %2183 = vmatprep.subr.bf16.mxu0 0
    %2184 = vmatpush2.bf16.msra.mxu0 0
    %2185 = vmatprep.subr.bf16.mxu0 0
    %2186 = vmatpush2.bf16.msra.mxu0 0
    %2187 = vmatprep.subr.bf16.mxu0 0
    %2188 = vmatpush2.bf16.msra.mxu0 0
    %2189 = vmatprep.subr.bf16.mxu0 0
    %2190 = vmatpush2.bf16.msra.mxu0 0
    %2191 = vmatprep.subr.bf16.mxu0 0
    %2192 = vmatpush2.bf16.msra.mxu0 0
    %2193 = vmatprep.subr.bf16.mxu0 0
    %2194 = vmatpush2.bf16.msra.mxu0 0
    %2195 = vmatprep.mubr.bf16.mxu0 0
    %2196 = vmatmul.mubr.bf16.gmra.mxu0 %v2161
    %v2197 = vpop.f32.mrf.mxu0
    %v2198 = vadd.f32 %v1952, %v2197
    %v2199 = vpop.f32.mrf.mxu0
    %v2200 = vpop.f32.mrf.mxu0
    %v2201 = vadd.f32 %v1952, %v2200
    %v2202 = vpop.f32.mrf.mxu0
    %2203 = vdwg.mxu0
    %2204 = vst.msk [vmem:[%s807] sm:$0xff] %vm607, %v2198
    %2205 = vst.msk [vmem:[%s807 + $0x8] sm:$0xff] %vm607, %v2201
    %v2206 = vld [vmem:[%s426] sm:$0xff]
    %v2207 = vld [vmem:[%s426 + $0x8] sm:$0xff]
    %v2208 = vpack.c.bf16 %v2207, %v2206
    %v2210 = vsel %vm161, %v2208, 0
    %2212 = vmatprep.subr.bf16.mxu0 0
    %2213 = vmatpush1.bf16.msra.mxu0 0
    %2214 = vmatprep.subr.bf16.mxu0 0
    %2215 = vmatpush1.bf16.msra.mxu0 0
    %2216 = vmatprep.subr.bf16.mxu0 0
    %2217 = vmatpush1.bf16.msra.mxu0 0
    %2218 = vmatprep.subr.bf16.mxu0 0
    %2219 = vmatpush1.bf16.msra.mxu0 0
    %2220 = vmatprep.subr.bf16.mxu0 0
    %2221 = vmatpush1.bf16.msra.mxu0 0
    %2222 = vmatprep.subr.bf16.mxu0 0
    %2223 = vmatpush1.bf16.msra.mxu0 0
    %2224 = vmatprep.subr.bf16.mxu0 0
    %2225 = vmatpush1.bf16.msra.mxu0 %v1938
    %2226 = vmatprep.subr.bf16.mxu0 0
    %2227 = vmatpush1.bf16.msra.mxu0 %v1937
    %2228 = vmatprep.subr.bf16.mxu0 0
    %2229 = vmatpush2.bf16.msra.mxu0 0
    %2230 = vmatprep.subr.bf16.mxu0 0
    %2231 = vmatpush2.bf16.msra.mxu0 0
    %2232 = vmatprep.subr.bf16.mxu0 0
    %2233 = vmatpush2.bf16.msra.mxu0 0
    %2234 = vmatprep.subr.bf16.mxu0 0
    %2235 = vmatpush2.bf16.msra.mxu0 0
    %2236 = vmatprep.subr.bf16.mxu0 0
    %2237 = vmatpush2.bf16.msra.mxu0 0
    %2238 = vmatprep.subr.bf16.mxu0 0
    %2239 = vmatpush2.bf16.msra.mxu0 0
    %2240 = vmatprep.subr.bf16.mxu0 0
    %2241 = vmatpush2.bf16.msra.mxu0 0
    %2242 = vmatprep.subr.bf16.mxu0 0
    %2243 = vmatpush2.bf16.msra.mxu0 0
    %2244 = vmatprep.mubr.bf16.mxu0 0
    %2245 = vmatmul.mubr.bf16.gmra.mxu0 %v2210
    %v2246 = vpop.f32.mrf.mxu0
    %v2247 = vadd.f32 %v1952, %v2246
    %v2248 = vpop.f32.mrf.mxu0
    %v2249 = vpop.f32.mrf.mxu0
    %v2250 = vadd.f32 %v1952, %v2249
    %v2251 = vpop.f32.mrf.mxu0
    %2252 = vdwg.mxu0
    %2253 = vst.msk [vmem:[%s857] sm:$0xff] %vm607, %v2247
    %2254 = vst.msk [vmem:[%s857 + $0x8] sm:$0xff] %vm607, %v2250
    %v2255 = vld [vmem:[%s479] sm:$0xff]
    %v2256 = vld [vmem:[%s479 + $0x8] sm:$0xff]
    %v2257 = vpack.c.bf16 %v2256, %v2255
    %v2259 = vsel %vm161, %v2257, 0
    %2261 = vmatprep.subr.bf16.mxu0 0
    %2262 = vmatpush1.bf16.msra.mxu0 0
    %2263 = vmatprep.subr.bf16.mxu0 0
    %2264 = vmatpush1.bf16.msra.mxu0 0
    %2265 = vmatprep.subr.bf16.mxu0 0
    %2266 = vmatpush1.bf16.msra.mxu0 0
    %2267 = vmatprep.subr.bf16.mxu0 0
    %2268 = vmatpush1.bf16.msra.mxu0 0
    %2269 = vmatprep.subr.bf16.mxu0 0
    %2270 = vmatpush1.bf16.msra.mxu0 0
    %2271 = vmatprep.subr.bf16.mxu0 0
    %2272 = vmatpush1.bf16.msra.mxu0 0
    %2273 = vmatprep.subr.bf16.mxu0 0
    %2274 = vmatpush1.bf16.msra.mxu0 %v1938
    %2275 = vmatprep.subr.bf16.mxu0 0
    %2276 = vmatpush1.bf16.msra.mxu0 %v1937
    %2277 = vmatprep.subr.bf16.mxu0 0
    %2278 = vmatpush2.bf16.msra.mxu0 0
    %2279 = vmatprep.subr.bf16.mxu0 0
    %2280 = vmatpush2.bf16.msra.mxu0 0
    %2281 = vmatprep.subr.bf16.mxu0 0
    %2282 = vmatpush2.bf16.msra.mxu0 0
    %2283 = vmatprep.subr.bf16.mxu0 0
    %2284 = vmatpush2.bf16.msra.mxu0 0
    %2285 = vmatprep.subr.bf16.mxu0 0
    %2286 = vmatpush2.bf16.msra.mxu0 0
    %2287 = vmatprep.subr.bf16.mxu0 0
    %2288 = vmatpush2.bf16.msra.mxu0 0
    %2289 = vmatprep.subr.bf16.mxu0 0
    %2290 = vmatpush2.bf16.msra.mxu0 0
    %2291 = vmatprep.subr.bf16.mxu0 0
    %2292 = vmatpush2.bf16.msra.mxu0 0
    %2293 = vmatprep.mubr.bf16.mxu0 0
    %2294 = vmatmul.mubr.bf16.gmra.mxu0 %v2259
    %v2295 = vpop.f32.mrf.mxu0
    %v2296 = vadd.f32 %v1952, %v2295
    %v2297 = vpop.f32.mrf.mxu0
    %v2298 = vpop.f32.mrf.mxu0
    %v2299 = vadd.f32 %v1952, %v2298
    %v2300 = vpop.f32.mrf.mxu0
    %2301 = vdwg.mxu0
    %2302 = vst.msk [vmem:[%s907] sm:$0xff] %vm607, %v2296
    %2303 = vst.msk [vmem:[%s907 + $0x8] sm:$0xff] %vm607, %v2299
    %v2304 = vld [vmem:[%s532] sm:$0xff]
    %v2305 = vld [vmem:[%s532 + $0x8] sm:$0xff]
    %v2306 = vpack.c.bf16 %v2305, %v2304
    %v2308 = vsel %vm161, %v2306, 0
    %2310 = vmatprep.subr.bf16.mxu0 0
    %2311 = vmatpush1.bf16.msra.mxu0 0
    %2312 = vmatprep.subr.bf16.mxu0 0
    %2313 = vmatpush1.bf16.msra.mxu0 0
    %2314 = vmatprep.subr.bf16.mxu0 0
    %2315 = vmatpush1.bf16.msra.mxu0 0
    %2316 = vmatprep.subr.bf16.mxu0 0
    %2317 = vmatpush1.bf16.msra.mxu0 0
    %2318 = vmatprep.subr.bf16.mxu0 0
    %2319 = vmatpush1.bf16.msra.mxu0 0
    %2320 = vmatprep.subr.bf16.mxu0 0
    %2321 = vmatpush1.bf16.msra.mxu0 0
    %2322 = vmatprep.subr.bf16.mxu0 0
    %2323 = vmatpush1.bf16.msra.mxu0 %v1938
    %2324 = vmatprep.subr.bf16.mxu0 0
    %2325 = vmatpush1.bf16.msra.mxu0 %v1937
    %2326 = vmatprep.subr.bf16.mxu0 0
    %2327 = vmatpush2.bf16.msra.mxu0 0
    %2328 = vmatprep.subr.bf16.mxu0 0
    %2329 = vmatpush2.bf16.msra.mxu0 0
    %2330 = vmatprep.subr.bf16.mxu0 0
    %2331 = vmatpush2.bf16.msra.mxu0 0
    %2332 = vmatprep.subr.bf16.mxu0 0
    %2333 = vmatpush2.bf16.msra.mxu0 0
    %2334 = vmatprep.subr.bf16.mxu0 0
    %2335 = vmatpush2.bf16.msra.mxu0 0
    %2336 = vmatprep.subr.bf16.mxu0 0
    %2337 = vmatpush2.bf16.msra.mxu0 0
    %2338 = vmatprep.subr.bf16.mxu0 0
    %2339 = vmatpush2.bf16.msra.mxu0 0
    %2340 = vmatprep.subr.bf16.mxu0 0
    %2341 = vmatpush2.bf16.msra.mxu0 0
    %2342 = vmatprep.mubr.bf16.mxu0 0
    %2343 = vmatmul.mubr.bf16.gmra.mxu0 %v2308
    %v2344 = vpop.f32.mrf.mxu0
    %v2345 = vadd.f32 %v1952, %v2344
    %v2346 = vpop.f32.mrf.mxu0
    %v2347 = vpop.f32.mrf.mxu0
    %v2348 = vadd.f32 %v1952, %v2347
    %v2349 = vpop.f32.mrf.mxu0
    %2350 = vdwg.mxu0
    %2351 = vst.msk [vmem:[%s957] sm:$0xff] %vm607, %v2345
    %2352 = vst.msk [vmem:[%s957 + $0x8] sm:$0xff] %vm607, %v2348
    %s2353 = scalar_lea.vmem %s2, 16
    %v2354 = vld [vmem:[%s2353] sm:$0xff]
    %v2355 = vld [vmem:[%s2353 + $0x8] sm:$0xff]
    %v2356 = vpack.c.bf16 %v2355, %v2354
    %v2358 = vsel %vm161, %v2356, 0
    %2360 = vmatprep.subr.bf16.mxu0 0
    %2361 = vmatpush1.bf16.msra.mxu0 0
    %2362 = vmatprep.subr.bf16.mxu0 0
    %2363 = vmatpush1.bf16.msra.mxu0 0
    %2364 = vmatprep.subr.bf16.mxu0 0
    %2365 = vmatpush1.bf16.msra.mxu0 0
    %2366 = vmatprep.subr.bf16.mxu0 0
    %2367 = vmatpush1.bf16.msra.mxu0 0
    %2368 = vmatprep.subr.bf16.mxu0 0
    %2369 = vmatpush1.bf16.msra.mxu0 0
    %2370 = vmatprep.subr.bf16.mxu0 0
    %2371 = vmatpush1.bf16.msra.mxu0 0
    %2372 = vmatprep.subr.bf16.mxu0 0
    %2373 = vmatpush1.bf16.msra.mxu0 %v1945
    %2374 = vmatprep.subr.bf16.mxu0 0
    %2375 = vmatpush1.bf16.msra.mxu0 %v1944
    %2376 = vmatprep.subr.bf16.mxu0 0
    %2377 = vmatpush2.bf16.msra.mxu0 0
    %2378 = vmatprep.subr.bf16.mxu0 0
    %2379 = vmatpush2.bf16.msra.mxu0 0
    %2380 = vmatprep.subr.bf16.mxu0 0
    %2381 = vmatpush2.bf16.msra.mxu0 0
    %2382 = vmatprep.subr.bf16.mxu0 0
    %2383 = vmatpush2.bf16.msra.mxu0 0
    %2384 = vmatprep.subr.bf16.mxu0 0
    %2385 = vmatpush2.bf16.msra.mxu0 0
    %2386 = vmatprep.subr.bf16.mxu0 0
    %2387 = vmatpush2.bf16.msra.mxu0 0
    %2388 = vmatprep.subr.bf16.mxu0 0
    %2389 = vmatpush2.bf16.msra.mxu0 0
    %2390 = vmatprep.subr.bf16.mxu0 0
    %2391 = vmatpush2.bf16.msra.mxu0 0
    %2392 = vmatprep.mubr.bf16.mxu0 0
    %2393 = vmatmul.mubr.bf16.gmra.mxu0 %v2358
    %v2394 = vpop.f32.mrf.mxu0
    %v2395 = vadd.f32 0.0, %v2394
    %v2396 = vpop.f32.mrf.mxu0
    %v2397 = vpop.f32.mrf.mxu0
    %v2398 = vadd.f32 0.0, %v2397
    %v2399 = vpop.f32.mrf.mxu0
    %2400 = vdwg.mxu0
    %v2401 = vld [vmem:[#allocation3] sm:$0xff]
    %v2402 = vld [vmem:[#allocation3 + $0x8] sm:$0xff]
    %v2403 = vadd.f32 %v2401, %v2395
    %v2404 = vadd.f32 %v2402, %v2398
    %v2405 = vsub.f32 0.0, %v2403
    %v2406 = vsub.f32 0.0, %v2404
    %v2407 = vmul.f32 %v2405, 1.442695
    %v2408 = vpow.pop %v2407
    %v2409 = vmul.f32 %v2406, 1.442695
    %v2410 = vpow.pop %v2409
    %v2411 = vadd.f32 %v2408, 1.0
    %v2412 = vadd.f32 %v2410, 1.0
    %v2413 = vrcp.pop %v2411
    %v2414 = vmul.f32 1.0, %v2413
    %v2415 = vrcp.pop %v2412
    %v2416 = vmul.f32 1.0, %v2415
    %2417 = vrot.lane.b32.xlu0 %v1960, 64
    %v2418 = vpop.permute.xlu0 %2417
    %v2420 = vadd.f32 %v2395, %v2418
    %v2421 = vadd.f32 %v2398, %v2418
    %2424 = vrot.lane.b32.xlu0 %v2420, 64
    %v2425 = vpop.permute.xlu0 %2424
    %2426 = vrot.lane.b32.xlu0 %v2421, 64
    %v2427 = vpop.permute.xlu0 %2426
    %v2430 = vmul.f32 %v2414, %v2425
    %v2431 = vmul.f32 %v2416, %v2427
    %2434 = vrot.lane.b32.xlu0 %v2430, 64
    %v2435 = vpop.permute.xlu0 %2434
    %2436 = vrot.lane.b32.xlu0 %v2431, 64
    %v2437 = vpop.permute.xlu0 %2436
    %v2440 = vadd.f32 %v2401, %v2435
    %v2441 = vadd.f32 %v2402, %v2437
    %v2442 = vtanh.pop %v2440
    %v2443 = vtanh.pop %v2441
    %2446 = vrot.lane.b32.xlu0 %v2442, 64
    %v2447 = vpop.permute.xlu0 %2446
    %2448 = vrot.lane.b32.xlu0 %v2443, 64
    %v2449 = vpop.permute.xlu0 %2448
    %v2452 = vsub.f32 %v2354, %v2447
    %v2453 = vsub.f32 %v2355, %v2449
    %2456 = vrot.lane.b32.xlu0 %v2452, 32
    %v2457 = vpop.permute.xlu0 %2456
    %2458 = vrot.lane.b32.xlu0 %v2453, 32
    %v2459 = vpop.permute.xlu0 %2458
    %v2462 = vmul.f32 %v2414, %v2457
    %v2463 = vmul.f32 %v2416, %v2459
    %2466 = vrot.lane.b32.xlu0 %v2462, 32
    %v2467 = vpop.permute.xlu0 %2466
    %2468 = vrot.lane.b32.xlu0 %v2463, 32
    %v2469 = vpop.permute.xlu0 %2468
    %v2472 = vadd.f32 %v2442, %v2467
    %v2473 = vadd.f32 %v2443, %v2469
    %2476 = vrot.lane.b32.xlu0 %v2472, 64
    %v2477 = vpop.permute.xlu0 %2476
    %2478 = vrot.lane.b32.xlu0 %v2473, 64
    %v2479 = vpop.permute.xlu0 %2478
    %2482 = vst.msk [vmem:[#allocation2] sm:$0xff] %vm161, %v2477
    %2483 = vst.msk [vmem:[#allocation2 + $0x8] sm:$0xff] %vm161, %v2479
    %v2484 = vpack.c.bf16 %v2473, %v2472
    %2486 = vrot.lane.b32.xlu0 %v2484, 64
    %v2487 = vpop.permute.xlu0 %2486
    %v2489 = vsel %vm161, %v2487, 0
    %2491 = vmatprep.subr.bf16.mxu0 0
    %2492 = vmatpush1.bf16.msra.mxu0 0
    %2493 = vmatprep.subr.bf16.mxu0 0
    %2494 = vmatpush1.bf16.msra.mxu0 0
    %2495 = vmatprep.subr.bf16.mxu0 0
    %2496 = vmatpush1.bf16.msra.mxu0 0
    %2497 = vmatprep.subr.bf16.mxu0 0
    %2498 = vmatpush1.bf16.msra.mxu0 0
    %2499 = vmatprep.subr.bf16.mxu0 0
    %2500 = vmatpush1.bf16.msra.mxu0 0
    %2501 = vmatprep.subr.bf16.mxu0 0
    %2502 = vmatpush1.bf16.msra.mxu0 0
    %2503 = vmatprep.subr.bf16.mxu0 0
    %2504 = vmatpush1.bf16.msra.mxu0 %v1945
    %2505 = vmatprep.subr.bf16.mxu0 0
    %2506 = vmatpush1.bf16.msra.mxu0 %v1944
    %2507 = vmatprep.subr.bf16.mxu0 0
    %2508 = vmatpush2.bf16.msra.mxu0 0
    %2509 = vmatprep.subr.bf16.mxu0 0
    %2510 = vmatpush2.bf16.msra.mxu0 0
    %2511 = vmatprep.subr.bf16.mxu0 0
    %2512 = vmatpush2.bf16.msra.mxu0 0
    %2513 = vmatprep.subr.bf16.mxu0 0
    %2514 = vmatpush2.bf16.msra.mxu0 0
    %2515 = vmatprep.subr.bf16.mxu0 0
    %2516 = vmatpush2.bf16.msra.mxu0 0
    %2517 = vmatprep.subr.bf16.mxu0 0
    %2518 = vmatpush2.bf16.msra.mxu0 0
    %2519 = vmatprep.subr.bf16.mxu0 0
    %2520 = vmatpush2.bf16.msra.mxu0 0
    %2521 = vmatprep.subr.bf16.mxu0 0
    %2522 = vmatpush2.bf16.msra.mxu0 0
    %2523 = vmatprep.mubr.bf16.mxu0 0
    %2524 = vmatmul.mubr.bf16.gmra.mxu0 %v2489
    %v2525 = vpop.f32.mrf.mxu0
    %v2526 = vadd.f32 0.0, %v2525
    %v2527 = vpop.f32.mrf.mxu0
    %v2528 = vpop.f32.mrf.mxu0
    %v2529 = vadd.f32 0.0, %v2528
    %v2530 = vpop.f32.mrf.mxu0
    %2531 = vdwg.mxu0
    %v2532 = vld [vmem:[%s657] sm:$0xff]
    %v2533 = vld [vmem:[%s657 + $0x8] sm:$0xff]
    %v2534 = vadd.f32 %v2532, %v2526
    %v2535 = vadd.f32 %v2533, %v2529
    %v2536 = vsub.f32 0.0, %v2534
    %v2537 = vsub.f32 0.0, %v2535
    %v2538 = vmul.f32 %v2536, 1.442695
    %v2539 = vpow.pop %v2538
    %v2540 = vmul.f32 %v2537, 1.442695
    %v2541 = vpow.pop %v2540
    %v2542 = vadd.f32 %v2539, 1.0
    %v2543 = vadd.f32 %v2541, 1.0
    %v2544 = vrcp.pop %v2542
    %v2545 = vmul.f32 1.0, %v2544
    %v2546 = vrcp.pop %v2543
    %v2547 = vmul.f32 1.0, %v2546
    %v2548 = vadd.f32 %v2526, %v2418
    %v2549 = vadd.f32 %v2529, %v2418
    %2552 = vrot.lane.b32.xlu0 %v2548, 64
    %v2553 = vpop.permute.xlu0 %2552
    %2554 = vrot.lane.b32.xlu0 %v2549, 64
    %v2555 = vpop.permute.xlu0 %2554
    %v2558 = vmul.f32 %v2545, %v2553
    %v2559 = vmul.f32 %v2547, %v2555
    %2562 = vrot.lane.b32.xlu0 %v2558, 64
    %v2563 = vpop.permute.xlu0 %2562
    %2564 = vrot.lane.b32.xlu0 %v2559, 64
    %v2565 = vpop.permute.xlu0 %2564
    %v2568 = vadd.f32 %v2532, %v2563
    %v2569 = vadd.f32 %v2533, %v2565
    %v2570 = vtanh.pop %v2568
    %v2571 = vtanh.pop %v2569
    %v2572 = vsub.f32 %v2472, %v2570
    %v2573 = vsub.f32 %v2473, %v2571
    %2576 = vrot.lane.b32.xlu0 %v2572, 96
    %v2577 = vpop.permute.xlu0 %2576
    %2578 = vrot.lane.b32.xlu0 %v2573, 96
    %v2579 = vpop.permute.xlu0 %2578
    %v2582 = vmul.f32 %v2545, %v2577
    %v2583 = vmul.f32 %v2547, %v2579
    %2586 = vrot.lane.b32.xlu0 %v2582, 32
    %v2587 = vpop.permute.xlu0 %2586
    %2588 = vrot.lane.b32.xlu0 %v2583, 32
    %v2589 = vpop.permute.xlu0 %2588
    %v2592 = vadd.f32 %v2570, %v2587
    %v2593 = vadd.f32 %v2571, %v2589
    %2596 = vrot.lane.b32.xlu0 %v2592, 64
    %v2597 = vpop.permute.xlu0 %2596
    %2598 = vrot.lane.b32.xlu0 %v2593, 64
    %v2599 = vpop.permute.xlu0 %2598
    %2602 = vst.msk [vmem:[%s214] sm:$0xff] %vm161, %v2597
    %2603 = vst.msk [vmem:[%s214 + $0x8] sm:$0xff] %vm161, %v2599
    %v2604 = vpack.c.bf16 %v2593, %v2592
    %2606 = vrot.lane.b32.xlu0 %v2604, 64
    %v2607 = vpop.permute.xlu0 %2606
    %v2609 = vsel %vm161, %v2607, 0
    %2611 = vmatprep.subr.bf16.mxu0 0
    %2612 = vmatpush1.bf16.msra.mxu0 0
    %2613 = vmatprep.subr.bf16.mxu0 0
    %2614 = vmatpush1.bf16.msra.mxu0 0
    %2615 = vmatprep.subr.bf16.mxu0 0
    %2616 = vmatpush1.bf16.msra.mxu0 0
    %2617 = vmatprep.subr.bf16.mxu0 0
    %2618 = vmatpush1.bf16.msra.mxu0 0
    %2619 = vmatprep.subr.bf16.mxu0 0
    %2620 = vmatpush1.bf16.msra.mxu0 0
    %2621 = vmatprep.subr.bf16.mxu0 0
    %2622 = vmatpush1.bf16.msra.mxu0 0
    %2623 = vmatprep.subr.bf16.mxu0 0
    %2624 = vmatpush1.bf16.msra.mxu0 %v1945
    %2625 = vmatprep.subr.bf16.mxu0 0
    %2626 = vmatpush1.bf16.msra.mxu0 %v1944
    %2627 = vmatprep.subr.bf16.mxu0 0
    %2628 = vmatpush2.bf16.msra.mxu0 0
    %2629 = vmatprep.subr.bf16.mxu0 0
    %2630 = vmatpush2.bf16.msra.mxu0 0
    %2631 = vmatprep.subr.bf16.mxu0 0
    %2632 = vmatpush2.bf16.msra.mxu0 0
    %2633 = vmatprep.subr.bf16.mxu0 0
    %2634 = vmatpush2.bf16.msra.mxu0 0
    %2635 = vmatprep.subr.bf16.mxu0 0
    %2636 = vmatpush2.bf16.msra.mxu0 0
    %2637 = vmatprep.subr.bf16.mxu0 0
    %2638 = vmatpush2.bf16.msra.mxu0 0
    %2639 = vmatprep.subr.bf16.mxu0 0
    %2640 = vmatpush2.bf16.msra.mxu0 0
    %2641 = vmatprep.subr.bf16.mxu0 0
    %2642 = vmatpush2.bf16.msra.mxu0 0
    %2643 = vmatprep.mubr.bf16.mxu0 0
    %2644 = vmatmul.mubr.bf16.gmra.mxu0 %v2609
    %v2645 = vpop.f32.mrf.mxu0
    %v2646 = vadd.f32 0.0, %v2645
    %v2647 = vpop.f32.mrf.mxu0
    %v2648 = vpop.f32.mrf.mxu0
    %v2649 = vadd.f32 0.0, %v2648
    %v2650 = vpop.f32.mrf.mxu0
    %2651 = vdwg.mxu0
    %v2652 = vld [vmem:[%s707] sm:$0xff]
    %v2653 = vld [vmem:[%s707 + $0x8] sm:$0xff]
    %v2654 = vadd.f32 %v2652, %v2646
    %v2655 = vadd.f32 %v2653, %v2649
    %v2656 = vsub.f32 0.0, %v2654
    %v2657 = vsub.f32 0.0, %v2655
    %v2658 = vmul.f32 %v2656, 1.442695
    %v2659 = vpow.pop %v2658
    %v2660 = vmul.f32 %v2657, 1.442695
    %v2661 = vpow.pop %v2660
    %v2662 = vadd.f32 %v2659, 1.0
    %v2663 = vadd.f32 %v2661, 1.0
    %v2664 = vrcp.pop %v2662
    %v2665 = vmul.f32 1.0, %v2664
    %v2666 = vrcp.pop %v2663
    %v2667 = vmul.f32 1.0, %v2666
    %v2668 = vadd.f32 %v2646, %v2418
    %v2669 = vadd.f32 %v2649, %v2418
    %2672 = vrot.lane.b32.xlu0 %v2668, 64
    %v2673 = vpop.permute.xlu0 %2672
    %2674 = vrot.lane.b32.xlu0 %v2669, 64
    %v2675 = vpop.permute.xlu0 %2674
    %v2678 = vmul.f32 %v2665, %v2673
    %v2679 = vmul.f32 %v2667, %v2675
    %2682 = vrot.lane.b32.xlu0 %v2678, 64
    %v2683 = vpop.permute.xlu0 %2682
    %2684 = vrot.lane.b32.xlu0 %v2679, 64
    %v2685 = vpop.permute.xlu0 %2684
    %v2688 = vadd.f32 %v2652, %v2683
    %v2689 = vadd.f32 %v2653, %v2685
    %v2690 = vtanh.pop %v2688
    %v2691 = vtanh.pop %v2689
    %v2692 = vsub.f32 %v2592, %v2690
    %v2693 = vsub.f32 %v2593, %v2691
    %2696 = vrot.lane.b32.xlu0 %v2692, 96
    %v2697 = vpop.permute.xlu0 %2696
    %2698 = vrot.lane.b32.xlu0 %v2693, 96
    %v2699 = vpop.permute.xlu0 %2698
    %v2702 = vmul.f32 %v2665, %v2697
    %v2703 = vmul.f32 %v2667, %v2699
    %2706 = vrot.lane.b32.xlu0 %v2702, 32
    %v2707 = vpop.permute.xlu0 %2706
    %2708 = vrot.lane.b32.xlu0 %v2703, 32
    %v2709 = vpop.permute.xlu0 %2708
    %v2712 = vadd.f32 %v2690, %v2707
    %v2713 = vadd.f32 %v2691, %v2709
    %2716 = vrot.lane.b32.xlu0 %v2712, 64
    %v2717 = vpop.permute.xlu0 %2716
    %2718 = vrot.lane.b32.xlu0 %v2713, 64
    %v2719 = vpop.permute.xlu0 %2718
    %2722 = vst.msk [vmem:[%s267] sm:$0xff] %vm161, %v2717
    %2723 = vst.msk [vmem:[%s267 + $0x8] sm:$0xff] %vm161, %v2719
    %v2724 = vpack.c.bf16 %v2713, %v2712
    %2726 = vrot.lane.b32.xlu0 %v2724, 64
    %v2727 = vpop.permute.xlu0 %2726
    %v2729 = vsel %vm161, %v2727, 0
    %2731 = vmatprep.subr.bf16.mxu0 0
    %2732 = vmatpush1.bf16.msra.mxu0 0
    %2733 = vmatprep.subr.bf16.mxu0 0
    %2734 = vmatpush1.bf16.msra.mxu0 0
    %2735 = vmatprep.subr.bf16.mxu0 0
    %2736 = vmatpush1.bf16.msra.mxu0 0
    %2737 = vmatprep.subr.bf16.mxu0 0
    %2738 = vmatpush1.bf16.msra.mxu0 0
    %2739 = vmatprep.subr.bf16.mxu0 0
    %2740 = vmatpush1.bf16.msra.mxu0 0
    %2741 = vmatprep.subr.bf16.mxu0 0
    %2742 = vmatpush1.bf16.msra.mxu0 0
    %2743 = vmatprep.subr.bf16.mxu0 0
    %2744 = vmatpush1.bf16.msra.mxu0 %v1945
    %2745 = vmatprep.subr.bf16.mxu0 0
    %2746 = vmatpush1.bf16.msra.mxu0 %v1944
    %2747 = vmatprep.subr.bf16.mxu0 0
    %2748 = vmatpush2.bf16.msra.mxu0 0
    %2749 = vmatprep.subr.bf16.mxu0 0
    %2750 = vmatpush2.bf16.msra.mxu0 0
    %2751 = vmatprep.subr.bf16.mxu0 0
    %2752 = vmatpush2.bf16.msra.mxu0 0
    %2753 = vmatprep.subr.bf16.mxu0 0
    %2754 = vmatpush2.bf16.msra.mxu0 0
    %2755 = vmatprep.subr.bf16.mxu0 0
    %2756 = vmatpush2.bf16.msra.mxu0 0
    %2757 = vmatprep.subr.bf16.mxu0 0
    %2758 = vmatpush2.bf16.msra.mxu0 0
    %2759 = vmatprep.subr.bf16.mxu0 0
    %2760 = vmatpush2.bf16.msra.mxu0 0
    %2761 = vmatprep.subr.bf16.mxu0 0
    %2762 = vmatpush2.bf16.msra.mxu0 0
    %2763 = vmatprep.mubr.bf16.mxu0 0
    %2764 = vmatmul.mubr.bf16.gmra.mxu0 %v2729
    %v2765 = vpop.f32.mrf.mxu0
    %v2766 = vadd.f32 0.0, %v2765
    %v2767 = vpop.f32.mrf.mxu0
    %v2768 = vpop.f32.mrf.mxu0
    %v2769 = vadd.f32 0.0, %v2768
    %v2770 = vpop.f32.mrf.mxu0
    %2771 = vdwg.mxu0
    %v2772 = vld [vmem:[%s757] sm:$0xff]
    %v2773 = vld [vmem:[%s757 + $0x8] sm:$0xff]
    %v2774 = vadd.f32 %v2772, %v2766
    %v2775 = vadd.f32 %v2773, %v2769
    %v2776 = vsub.f32 0.0, %v2774
    %v2777 = vsub.f32 0.0, %v2775
    %v2778 = vmul.f32 %v2776, 1.442695
    %v2779 = vpow.pop %v2778
    %v2780 = vmul.f32 %v2777, 1.442695
    %v2781 = vpow.pop %v2780
    %v2782 = vadd.f32 %v2779, 1.0
    %v2783 = vadd.f32 %v2781, 1.0
    %v2784 = vrcp.pop %v2782
    %v2785 = vmul.f32 1.0, %v2784
    %v2786 = vrcp.pop %v2783
    %v2787 = vmul.f32 1.0, %v2786
    %v2788 = vadd.f32 %v2766, %v2418
    %v2789 = vadd.f32 %v2769, %v2418
    %2792 = vrot.lane.b32.xlu0 %v2788, 64
    %v2793 = vpop.permute.xlu0 %2792
    %2794 = vrot.lane.b32.xlu0 %v2789, 64
    %v2795 = vpop.permute.xlu0 %2794
    %v2798 = vmul.f32 %v2785, %v2793
    %v2799 = vmul.f32 %v2787, %v2795
    %2802 = vrot.lane.b32.xlu0 %v2798, 64
    %v2803 = vpop.permute.xlu0 %2802
    %2804 = vrot.lane.b32.xlu0 %v2799, 64
    %v2805 = vpop.permute.xlu0 %2804
    %v2808 = vadd.f32 %v2772, %v2803
    %v2809 = vadd.f32 %v2773, %v2805
    %v2810 = vtanh.pop %v2808
    %v2811 = vtanh.pop %v2809
    %v2812 = vsub.f32 %v2712, %v2810
    %v2813 = vsub.f32 %v2713, %v2811
    %2816 = vrot.lane.b32.xlu0 %v2812, 96
    %v2817 = vpop.permute.xlu0 %2816
    %2818 = vrot.lane.b32.xlu0 %v2813, 96
    %v2819 = vpop.permute.xlu0 %2818
    %v2822 = vmul.f32 %v2785, %v2817
    %v2823 = vmul.f32 %v2787, %v2819
    %2826 = vrot.lane.b32.xlu0 %v2822, 32
    %v2827 = vpop.permute.xlu0 %2826
    %2828 = vrot.lane.b32.xlu0 %v2823, 32
    %v2829 = vpop.permute.xlu0 %2828
    %v2832 = vadd.f32 %v2810, %v2827
    %v2833 = vadd.f32 %v2811, %v2829
    %2836 = vrot.lane.b32.xlu0 %v2832, 64
    %v2837 = vpop.permute.xlu0 %2836
    %2838 = vrot.lane.b32.xlu0 %v2833, 64
    %v2839 = vpop.permute.xlu0 %2838
    %2842 = vst.msk [vmem:[%s320] sm:$0xff] %vm161, %v2837
    %2843 = vst.msk [vmem:[%s320 + $0x8] sm:$0xff] %vm161, %v2839
    %v2844 = vpack.c.bf16 %v2833, %v2832
    %2846 = vrot.lane.b32.xlu0 %v2844, 64
    %v2847 = vpop.permute.xlu0 %2846
    %v2849 = vsel %vm161, %v2847, 0
    %2851 = vmatprep.subr.bf16.mxu0 0
    %2852 = vmatpush1.bf16.msra.mxu0 0
    %2853 = vmatprep.subr.bf16.mxu0 0
    %2854 = vmatpush1.bf16.msra.mxu0 0
    %2855 = vmatprep.subr.bf16.mxu0 0
    %2856 = vmatpush1.bf16.msra.mxu0 0
    %2857 = vmatprep.subr.bf16.mxu0 0
    %2858 = vmatpush1.bf16.msra.mxu0 0
    %2859 = vmatprep.subr.bf16.mxu0 0
    %2860 = vmatpush1.bf16.msra.mxu0 0
    %2861 = vmatprep.subr.bf16.mxu0 0
    %2862 = vmatpush1.bf16.msra.mxu0 0
    %2863 = vmatprep.subr.bf16.mxu0 0
    %2864 = vmatpush1.bf16.msra.mxu0 %v1945
    %2865 = vmatprep.subr.bf16.mxu0 0
    %2866 = vmatpush1.bf16.msra.mxu0 %v1944
    %2867 = vmatprep.subr.bf16.mxu0 0
    %2868 = vmatpush2.bf16.msra.mxu0 0
    %2869 = vmatprep.subr.bf16.mxu0 0
    %2870 = vmatpush2.bf16.msra.mxu0 0
    %2871 = vmatprep.subr.bf16.mxu0 0
    %2872 = vmatpush2.bf16.msra.mxu0 0
    %2873 = vmatprep.subr.bf16.mxu0 0
    %2874 = vmatpush2.bf16.msra.mxu0 0
    %2875 = vmatprep.subr.bf16.mxu0 0
    %2876 = vmatpush2.bf16.msra.mxu0 0
    %2877 = vmatprep.subr.bf16.mxu0 0
    %2878 = vmatpush2.bf16.msra.mxu0 0
    %2879 = vmatprep.subr.bf16.mxu0 0
    %2880 = vmatpush2.bf16.msra.mxu0 0
    %2881 = vmatprep.subr.bf16.mxu0 0
    %2882 = vmatpush2.bf16.msra.mxu0 0
    %2883 = vmatprep.mubr.bf16.mxu0 0
    %2884 = vmatmul.mubr.bf16.gmra.mxu0 %v2849
    %v2885 = vpop.f32.mrf.mxu0
    %v2886 = vadd.f32 0.0, %v2885
    %v2887 = vpop.f32.mrf.mxu0
    %v2888 = vpop.f32.mrf.mxu0
    %v2889 = vadd.f32 0.0, %v2888
    %v2890 = vpop.f32.mrf.mxu0
    %2891 = vdwg.mxu0
    %v2892 = vld [vmem:[%s807] sm:$0xff]
    %v2893 = vld [vmem:[%s807 + $0x8] sm:$0xff]
    %v2894 = vadd.f32 %v2892, %v2886
    %v2895 = vadd.f32 %v2893, %v2889
    %v2896 = vsub.f32 0.0, %v2894
    %v2897 = vsub.f32 0.0, %v2895
    %v2898 = vmul.f32 %v2896, 1.442695
    %v2899 = vpow.pop %v2898
    %v2900 = vmul.f32 %v2897, 1.442695
    %v2901 = vpow.pop %v2900
    %v2902 = vadd.f32 %v2899, 1.0
    %v2903 = vadd.f32 %v2901, 1.0
    %v2904 = vrcp.pop %v2902
    %v2905 = vmul.f32 1.0, %v2904
    %v2906 = vrcp.pop %v2903
    %v2907 = vmul.f32 1.0, %v2906
    %v2908 = vadd.f32 %v2886, %v2418
    %v2909 = vadd.f32 %v2889, %v2418
    %2912 = vrot.lane.b32.xlu0 %v2908, 64
    %v2913 = vpop.permute.xlu0 %2912
    %2914 = vrot.lane.b32.xlu0 %v2909, 64
    %v2915 = vpop.permute.xlu0 %2914
    %v2918 = vmul.f32 %v2905, %v2913
    %v2919 = vmul.f32 %v2907, %v2915
    %2922 = vrot.lane.b32.xlu0 %v2918, 64
    %v2923 = vpop.permute.xlu0 %2922
    %2924 = vrot.lane.b32.xlu0 %v2919, 64
    %v2925 = vpop.permute.xlu0 %2924
    %v2928 = vadd.f32 %v2892, %v2923
    %v2929 = vadd.f32 %v2893, %v2925
    %v2930 = vtanh.pop %v2928
    %v2931 = vtanh.pop %v2929
    %v2932 = vsub.f32 %v2832, %v2930
    %v2933 = vsub.f32 %v2833, %v2931
    %2936 = vrot.lane.b32.xlu0 %v2932, 96
    %v2937 = vpop.permute.xlu0 %2936
    %2938 = vrot.lane.b32.xlu0 %v2933, 96
    %v2939 = vpop.permute.xlu0 %2938
    %v2942 = vmul.f32 %v2905, %v2937
    %v2943 = vmul.f32 %v2907, %v2939
    %2946 = vrot.lane.b32.xlu0 %v2942, 32
    %v2947 = vpop.permute.xlu0 %2946
    %2948 = vrot.lane.b32.xlu0 %v2943, 32
    %v2949 = vpop.permute.xlu0 %2948
    %v2952 = vadd.f32 %v2930, %v2947
    %v2953 = vadd.f32 %v2931, %v2949
    %2956 = vrot.lane.b32.xlu0 %v2952, 64
    %v2957 = vpop.permute.xlu0 %2956
    %2958 = vrot.lane.b32.xlu0 %v2953, 64
    %v2959 = vpop.permute.xlu0 %2958
    %2962 = vst.msk [vmem:[%s373] sm:$0xff] %vm161, %v2957
    %2963 = vst.msk [vmem:[%s373 + $0x8] sm:$0xff] %vm161, %v2959
    %v2964 = vpack.c.bf16 %v2953, %v2952
    %2966 = vrot.lane.b32.xlu0 %v2964, 64
    %v2967 = vpop.permute.xlu0 %2966
    %v2969 = vsel %vm161, %v2967, 0
    %2971 = vmatprep.subr.bf16.mxu0 0
    %2972 = vmatpush1.bf16.msra.mxu0 0
    %2973 = vmatprep.subr.bf16.mxu0 0
    %2974 = vmatpush1.bf16.msra.mxu0 0
    %2975 = vmatprep.subr.bf16.mxu0 0
    %2976 = vmatpush1.bf16.msra.mxu0 0
    %2977 = vmatprep.subr.bf16.mxu0 0
    %2978 = vmatpush1.bf16.msra.mxu0 0
    %2979 = vmatprep.subr.bf16.mxu0 0
    %2980 = vmatpush1.bf16.msra.mxu0 0
    %2981 = vmatprep.subr.bf16.mxu0 0
    %2982 = vmatpush1.bf16.msra.mxu0 0
    %2983 = vmatprep.subr.bf16.mxu0 0
    %2984 = vmatpush1.bf16.msra.mxu0 %v1945
    %2985 = vmatprep.subr.bf16.mxu0 0
    %2986 = vmatpush1.bf16.msra.mxu0 %v1944
    %2987 = vmatprep.subr.bf16.mxu0 0
    %2988 = vmatpush2.bf16.msra.mxu0 0
    %2989 = vmatprep.subr.bf16.mxu0 0
    %2990 = vmatpush2.bf16.msra.mxu0 0
    %2991 = vmatprep.subr.bf16.mxu0 0
    %2992 = vmatpush2.bf16.msra.mxu0 0
    %2993 = vmatprep.subr.bf16.mxu0 0
    %2994 = vmatpush2.bf16.msra.mxu0 0
    %2995 = vmatprep.subr.bf16.mxu0 0
    %2996 = vmatpush2.bf16.msra.mxu0 0
    %2997 = vmatprep.subr.bf16.mxu0 0
    %2998 = vmatpush2.bf16.msra.mxu0 0
    %2999 = vmatprep.subr.bf16.mxu0 0
    %3000 = vmatpush2.bf16.msra.mxu0 0
    %3001 = vmatprep.subr.bf16.mxu0 0
    %3002 = vmatpush2.bf16.msra.mxu0 0
    %3003 = vmatprep.mubr.bf16.mxu0 0
    %3004 = vmatmul.mubr.bf16.gmra.mxu0 %v2969
    %v3005 = vpop.f32.mrf.mxu0
    %v3006 = vadd.f32 0.0, %v3005
    %v3007 = vpop.f32.mrf.mxu0
    %v3008 = vpop.f32.mrf.mxu0
    %v3009 = vadd.f32 0.0, %v3008
    %v3010 = vpop.f32.mrf.mxu0
    %3011 = vdwg.mxu0
    %v3012 = vld [vmem:[%s857] sm:$0xff]
    %v3013 = vld [vmem:[%s857 + $0x8] sm:$0xff]
    %v3014 = vadd.f32 %v3012, %v3006
    %v3015 = vadd.f32 %v3013, %v3009
    %v3016 = vsub.f32 0.0, %v3014
    %v3017 = vsub.f32 0.0, %v3015
    %v3018 = vmul.f32 %v3016, 1.442695
    %v3019 = vpow.pop %v3018
    %v3020 = vmul.f32 %v3017, 1.442695
    %v3021 = vpow.pop %v3020
    %v3022 = vadd.f32 %v3019, 1.0
    %v3023 = vadd.f32 %v3021, 1.0
    %v3024 = vrcp.pop %v3022
    %v3025 = vmul.f32 1.0, %v3024
    %v3026 = vrcp.pop %v3023
    %v3027 = vmul.f32 1.0, %v3026
    %v3028 = vadd.f32 %v3006, %v2418
    %v3029 = vadd.f32 %v3009, %v2418
    %3032 = vrot.lane.b32.xlu0 %v3028, 64
    %v3033 = vpop.permute.xlu0 %3032
    %3034 = vrot.lane.b32.xlu0 %v3029, 64
    %v3035 = vpop.permute.xlu0 %3034
    %v3038 = vmul.f32 %v3025, %v3033
    %v3039 = vmul.f32 %v3027, %v3035
    %3042 = vrot.lane.b32.xlu0 %v3038, 64
    %v3043 = vpop.permute.xlu0 %3042
    %3044 = vrot.lane.b32.xlu0 %v3039, 64
    %v3045 = vpop.permute.xlu0 %3044
    %v3048 = vadd.f32 %v3012, %v3043
    %v3049 = vadd.f32 %v3013, %v3045
    %v3050 = vtanh.pop %v3048
    %v3051 = vtanh.pop %v3049
    %v3052 = vsub.f32 %v2952, %v3050
    %v3053 = vsub.f32 %v2953, %v3051
    %3056 = vrot.lane.b32.xlu0 %v3052, 96
    %v3057 = vpop.permute.xlu0 %3056
    %3058 = vrot.lane.b32.xlu0 %v3053, 96
    %v3059 = vpop.permute.xlu0 %3058
    %v3062 = vmul.f32 %v3025, %v3057
    %v3063 = vmul.f32 %v3027, %v3059
    %3066 = vrot.lane.b32.xlu0 %v3062, 32
    %v3067 = vpop.permute.xlu0 %3066
    %3068 = vrot.lane.b32.xlu0 %v3063, 32
    %v3069 = vpop.permute.xlu0 %3068
    %v3072 = vadd.f32 %v3050, %v3067
    %v3073 = vadd.f32 %v3051, %v3069
    %3076 = vrot.lane.b32.xlu0 %v3072, 64
    %v3077 = vpop.permute.xlu0 %3076
    %3078 = vrot.lane.b32.xlu0 %v3073, 64
    %v3079 = vpop.permute.xlu0 %3078
    %3082 = vst.msk [vmem:[%s426] sm:$0xff] %vm161, %v3077
    %3083 = vst.msk [vmem:[%s426 + $0x8] sm:$0xff] %vm161, %v3079
    %v3084 = vpack.c.bf16 %v3073, %v3072
    %3086 = vrot.lane.b32.xlu0 %v3084, 64
    %v3087 = vpop.permute.xlu0 %3086
    %v3089 = vsel %vm161, %v3087, 0
    %3091 = vmatprep.subr.bf16.mxu0 0
    %3092 = vmatpush1.bf16.msra.mxu0 0
    %3093 = vmatprep.subr.bf16.mxu0 0
    %3094 = vmatpush1.bf16.msra.mxu0 0
    %3095 = vmatprep.subr.bf16.mxu0 0
    %3096 = vmatpush1.bf16.msra.mxu0 0
    %3097 = vmatprep.subr.bf16.mxu0 0
    %3098 = vmatpush1.bf16.msra.mxu0 0
    %3099 = vmatprep.subr.bf16.mxu0 0
    %3100 = vmatpush1.bf16.msra.mxu0 0
    %3101 = vmatprep.subr.bf16.mxu0 0
    %3102 = vmatpush1.bf16.msra.mxu0 0
    %3103 = vmatprep.subr.bf16.mxu0 0
    %3104 = vmatpush1.bf16.msra.mxu0 %v1945
    %3105 = vmatprep.subr.bf16.mxu0 0
    %3106 = vmatpush1.bf16.msra.mxu0 %v1944
    %3107 = vmatprep.subr.bf16.mxu0 0
    %3108 = vmatpush2.bf16.msra.mxu0 0
    %3109 = vmatprep.subr.bf16.mxu0 0
    %3110 = vmatpush2.bf16.msra.mxu0 0
    %3111 = vmatprep.subr.bf16.mxu0 0
    %3112 = vmatpush2.bf16.msra.mxu0 0
    %3113 = vmatprep.subr.bf16.mxu0 0
    %3114 = vmatpush2.bf16.msra.mxu0 0
    %3115 = vmatprep.subr.bf16.mxu0 0
    %3116 = vmatpush2.bf16.msra.mxu0 0
    %3117 = vmatprep.subr.bf16.mxu0 0
    %3118 = vmatpush2.bf16.msra.mxu0 0
    %3119 = vmatprep.subr.bf16.mxu0 0
    %3120 = vmatpush2.bf16.msra.mxu0 0
    %3121 = vmatprep.subr.bf16.mxu0 0
    %3122 = vmatpush2.bf16.msra.mxu0 0
    %3123 = vmatprep.mubr.bf16.mxu0 0
    %3124 = vmatmul.mubr.bf16.gmra.mxu0 %v3089
    %v3125 = vpop.f32.mrf.mxu0
    %v3126 = vadd.f32 0.0, %v3125
    %v3127 = vpop.f32.mrf.mxu0
    %v3128 = vpop.f32.mrf.mxu0
    %v3129 = vadd.f32 0.0, %v3128
    %v3130 = vpop.f32.mrf.mxu0
    %3131 = vdwg.mxu0
    %v3132 = vld [vmem:[%s907] sm:$0xff]
    %v3133 = vld [vmem:[%s907 + $0x8] sm:$0xff]
    %v3134 = vadd.f32 %v3132, %v3126
    %v3135 = vadd.f32 %v3133, %v3129
    %v3136 = vsub.f32 0.0, %v3134
    %v3137 = vsub.f32 0.0, %v3135
    %v3138 = vmul.f32 %v3136, 1.442695
    %v3139 = vpow.pop %v3138
    %v3140 = vmul.f32 %v3137, 1.442695
    %v3141 = vpow.pop %v3140
    %v3142 = vadd.f32 %v3139, 1.0
    %v3143 = vadd.f32 %v3141, 1.0
    %v3144 = vrcp.pop %v3142
    %v3145 = vmul.f32 1.0, %v3144
    %v3146 = vrcp.pop %v3143
    %v3147 = vmul.f32 1.0, %v3146
    %v3148 = vadd.f32 %v3126, %v2418
    %v3149 = vadd.f32 %v3129, %v2418
    %3152 = vrot.lane.b32.xlu0 %v3148, 64
    %v3153 = vpop.permute.xlu0 %3152
    %3154 = vrot.lane.b32.xlu0 %v3149, 64
    %v3155 = vpop.permute.xlu0 %3154
    %v3158 = vmul.f32 %v3145, %v3153
    %v3159 = vmul.f32 %v3147, %v3155
    %3162 = vrot.lane.b32.xlu0 %v3158, 64
    %v3163 = vpop.permute.xlu0 %3162
    %3164 = vrot.lane.b32.xlu0 %v3159, 64
    %v3165 = vpop.permute.xlu0 %3164
    %v3168 = vadd.f32 %v3132, %v3163
    %v3169 = vadd.f32 %v3133, %v3165
    %v3170 = vtanh.pop %v3168
    %v3171 = vtanh.pop %v3169
    %v3172 = vsub.f32 %v3072, %v3170
    %v3173 = vsub.f32 %v3073, %v3171
    %3176 = vrot.lane.b32.xlu0 %v3172, 96
    %v3177 = vpop.permute.xlu0 %3176
    %3178 = vrot.lane.b32.xlu0 %v3173, 96
    %v3179 = vpop.permute.xlu0 %3178
    %v3182 = vmul.f32 %v3145, %v3177
    %v3183 = vmul.f32 %v3147, %v3179
    %3186 = vrot.lane.b32.xlu0 %v3182, 32
    %v3187 = vpop.permute.xlu0 %3186
    %3188 = vrot.lane.b32.xlu0 %v3183, 32
    %v3189 = vpop.permute.xlu0 %3188
    %v3192 = vadd.f32 %v3170, %v3187
    %v3193 = vadd.f32 %v3171, %v3189
    %3196 = vrot.lane.b32.xlu0 %v3192, 64
    %v3197 = vpop.permute.xlu0 %3196
    %3198 = vrot.lane.b32.xlu0 %v3193, 64
    %v3199 = vpop.permute.xlu0 %3198
    %3202 = vst.msk [vmem:[%s479] sm:$0xff] %vm161, %v3197
    %3203 = vst.msk [vmem:[%s479 + $0x8] sm:$0xff] %vm161, %v3199
    %v3204 = vpack.c.bf16 %v3193, %v3192
    %3206 = vrot.lane.b32.xlu0 %v3204, 64
    %v3207 = vpop.permute.xlu0 %3206
    %v3209 = vsel %vm161, %v3207, 0
    %3211 = vmatprep.subr.bf16.mxu0 0
    %3212 = vmatpush1.bf16.msra.mxu0 0
    %3213 = vmatprep.subr.bf16.mxu0 0
    %3214 = vmatpush1.bf16.msra.mxu0 0
    %3215 = vmatprep.subr.bf16.mxu0 0
    %3216 = vmatpush1.bf16.msra.mxu0 0
    %3217 = vmatprep.subr.bf16.mxu0 0
    %3218 = vmatpush1.bf16.msra.mxu0 0
    %3219 = vmatprep.subr.bf16.mxu0 0
    %3220 = vmatpush1.bf16.msra.mxu0 0
    %3221 = vmatprep.subr.bf16.mxu0 0
    %3222 = vmatpush1.bf16.msra.mxu0 0
    %3223 = vmatprep.subr.bf16.mxu0 0
    %3224 = vmatpush1.bf16.msra.mxu0 %v1945
    %3225 = vmatprep.subr.bf16.mxu0 0
    %3226 = vmatpush1.bf16.msra.mxu0 %v1944
    %3227 = vmatprep.subr.bf16.mxu0 0
    %3228 = vmatpush2.bf16.msra.mxu0 0
    %3229 = vmatprep.subr.bf16.mxu0 0
    %3230 = vmatpush2.bf16.msra.mxu0 0
    %3231 = vmatprep.subr.bf16.mxu0 0
    %3232 = vmatpush2.bf16.msra.mxu0 0
    %3233 = vmatprep.subr.bf16.mxu0 0
    %3234 = vmatpush2.bf16.msra.mxu0 0
    %3235 = vmatprep.subr.bf16.mxu0 0
    %3236 = vmatpush2.bf16.msra.mxu0 0
    %3237 = vmatprep.subr.bf16.mxu0 0
    %3238 = vmatpush2.bf16.msra.mxu0 0
    %3239 = vmatprep.subr.bf16.mxu0 0
    %3240 = vmatpush2.bf16.msra.mxu0 0
    %3241 = vmatprep.subr.bf16.mxu0 0
    %3242 = vmatpush2.bf16.msra.mxu0 0
    %3243 = vmatprep.mubr.bf16.mxu0 0
    %3244 = vmatmul.mubr.bf16.gmra.mxu0 %v3209
    %v3245 = vpop.f32.mrf.mxu0
    %v3246 = vadd.f32 0.0, %v3245
    %v3247 = vpop.f32.mrf.mxu0
    %v3248 = vpop.f32.mrf.mxu0
    %v3249 = vadd.f32 0.0, %v3248
    %v3250 = vpop.f32.mrf.mxu0
    %3251 = vdwg.mxu0
    %v3252 = vld [vmem:[%s957] sm:$0xff]
    %v3253 = vld [vmem:[%s957 + $0x8] sm:$0xff]
    %v3254 = vadd.f32 %v3252, %v3246
    %v3255 = vadd.f32 %v3253, %v3249
    %v3256 = vsub.f32 0.0, %v3254
    %v3257 = vsub.f32 0.0, %v3255
    %v3258 = vmul.f32 %v3256, 1.442695
    %v3259 = vpow.pop %v3258
    %v3260 = vmul.f32 %v3257, 1.442695
    %v3261 = vpow.pop %v3260
    %v3262 = vadd.f32 %v3259, 1.0
    %v3263 = vadd.f32 %v3261, 1.0
    %v3264 = vrcp.pop %v3262
    %v3265 = vmul.f32 1.0, %v3264
    %v3266 = vrcp.pop %v3263
    %v3267 = vmul.f32 1.0, %v3266
    %v3268 = vadd.f32 %v3246, %v2418
    %v3269 = vadd.f32 %v3249, %v2418
    %3272 = vrot.lane.b32.xlu0 %v3268, 64
    %v3273 = vpop.permute.xlu0 %3272
    %3274 = vrot.lane.b32.xlu0 %v3269, 64
    %v3275 = vpop.permute.xlu0 %3274
    %v3278 = vmul.f32 %v3265, %v3273
    %v3279 = vmul.f32 %v3267, %v3275
    %3282 = vrot.lane.b32.xlu0 %v3278, 64
    %v3283 = vpop.permute.xlu0 %3282
    %3284 = vrot.lane.b32.xlu0 %v3279, 64
    %v3285 = vpop.permute.xlu0 %3284
    %v3288 = vadd.f32 %v3252, %v3283
    %v3289 = vadd.f32 %v3253, %v3285
    %v3290 = vtanh.pop %v3288
    %v3291 = vtanh.pop %v3289
    %v3292 = vsub.f32 %v3192, %v3290
    %v3293 = vsub.f32 %v3193, %v3291
    %3296 = vrot.lane.b32.xlu0 %v3292, 96
    %v3297 = vpop.permute.xlu0 %3296
    %3298 = vrot.lane.b32.xlu0 %v3293, 96
    %v3299 = vpop.permute.xlu0 %3298
    %v3302 = vmul.f32 %v3265, %v3297
    %v3303 = vmul.f32 %v3267, %v3299
    %3306 = vrot.lane.b32.xlu0 %v3302, 32
    %v3307 = vpop.permute.xlu0 %3306
    %3308 = vrot.lane.b32.xlu0 %v3303, 32
    %v3309 = vpop.permute.xlu0 %3308
    %v3312 = vadd.f32 %v3290, %v3307
    %v3313 = vadd.f32 %v3291, %v3309
    %3316 = vrot.lane.b32.xlu0 %v3312, 64
    %v3317 = vpop.permute.xlu0 %3316
    %3318 = vrot.lane.b32.xlu0 %v3313, 64
    %v3319 = vpop.permute.xlu0 %3318
    %3322 = vst.msk [vmem:[%s532] sm:$0xff] %vm161, %v3317
    %3323 = vst.msk [vmem:[%s532 + $0x8] sm:$0xff] %vm161, %v3319
    %s3324 = scalar_lea.vmem [#allocation6], 16
    %3325 = vst.msk [vmem:[%s3324] sm:$0xff] %vm161, %v3317
    %3326 = vst.msk [vmem:[%s3324 + $0x8] sm:$0xff] %vm161, %v3319
    %v3327 = vld [vmem:[%s10] sm:$0xff]
    %v3328 = vld [vmem:[%s10 + $0x8] sm:$0xff]
    %v3329 = vld [vmem:[%s10 + $0x10] sm:$0xff]
    %v3330 = vld [vmem:[%s10 + $0x18] sm:$0xff]
    %v3331 = vpack.c.bf16 %v3328, %v3327
    %v3332 = vpack.c.bf16 %v3330, %v3329
    %v3333 = vld [vmem:[%s11] sm:$0x1]
    %v3335 = vlaneseq
    %v3336 = vshrl.u32 %v3335, 7
    %v3337 = vsub.s32 0, %v3336
    %v3338 = vrot.slane %v3333, %v3337
    %v3340 = vld [vmem:[#allocation2] sm:$0xff]
    %v3341 = vld [vmem:[#allocation2 + $0x8] sm:$0xff]
    %v3342 = vtanh.pop %v3340
    %v3343 = vtanh.pop %v3341
    %v3344 = vpack.c.bf16 %v3343, %v3342
    %v3346 = vsel %vm161, %v3344, 0
    %3348 = vmatprep.subr.bf16.mxu0 0
    %3349 = vmatpush1.bf16.msra.mxu0 0
    %3350 = vmatprep.subr.bf16.mxu0 0
    %3351 = vmatpush1.bf16.msra.mxu0 0
    %3352 = vmatprep.subr.bf16.mxu0 0
    %3353 = vmatpush1.bf16.msra.mxu0 0
    %3354 = vmatprep.subr.bf16.mxu0 0
    %3355 = vmatpush1.bf16.msra.mxu0 0
    %3356 = vmatprep.subr.bf16.mxu0 0
    %3357 = vmatpush1.bf16.msra.mxu0 0
    %3358 = vmatprep.subr.bf16.mxu0 0
    %3359 = vmatpush1.bf16.msra.mxu0 0
    %3360 = vmatprep.subr.bf16.mxu0 0
    %3361 = vmatpush1.bf16.msra.mxu0 %v3332
    %3362 = vmatprep.subr.bf16.mxu0 0
    %3363 = vmatpush1.bf16.msra.mxu0 %v3331
    %3364 = vmatprep.subr.bf16.mxu0 0
    %3365 = vmatpush2.bf16.msra.mxu0 0
    %3366 = vmatprep.subr.bf16.mxu0 0
    %3367 = vmatpush2.bf16.msra.mxu0 0
    %3368 = vmatprep.subr.bf16.mxu0 0
    %3369 = vmatpush2.bf16.msra.mxu0 0
    %3370 = vmatprep.subr.bf16.mxu0 0
    %3371 = vmatpush2.bf16.msra.mxu0 0
    %3372 = vmatprep.subr.bf16.mxu0 0
    %3373 = vmatpush2.bf16.msra.mxu0 0
    %3374 = vmatprep.subr.bf16.mxu0 0
    %3375 = vmatpush2.bf16.msra.mxu0 0
    %3376 = vmatprep.subr.bf16.mxu0 0
    %3377 = vmatpush2.bf16.msra.mxu0 0
    %3378 = vmatprep.subr.bf16.mxu0 0
    %3379 = vmatpush2.bf16.msra.mxu0 0
    %3380 = vmatprep.mubr.bf16.mxu0 0
    %3381 = vmatmul.mubr.bf16.gmra.mxu0 %v3346
    %v3382 = vpop.f32.mrf.mxu0
    %v3383 = vadd.f32 %v3338, %v3382
    %v3384 = vpop.f32.mrf.mxu0
    %v3385 = vpop.f32.mrf.mxu0
    %v3386 = vadd.f32 %v3338, %v3385
    %v3387 = vpop.f32.mrf.mxu0
    %3388 = vdwg.mxu0
    %vm3389 = vcmask 130048
    %3390 = vst.msk [vmem:[#allocation4] sm:$0xff] %vm3389, %v3383
    %3391 = vst.msk [vmem:[#allocation4 + $0x8] sm:$0xff] %vm3389, %v3386
    %v3392 = vld [vmem:[%s214] sm:$0xff]
    %v3393 = vld [vmem:[%s214 + $0x8] sm:$0xff]
    %v3394 = vtanh.pop %v3392
    %v3395 = vtanh.pop %v3393
    %v3396 = vpack.c.bf16 %v3395, %v3394
    %v3398 = vsel %vm161, %v3396, 0
    %3400 = vmatprep.subr.bf16.mxu0 0
    %3401 = vmatpush1.bf16.msra.mxu0 0
    %3402 = vmatprep.subr.bf16.mxu0 0
    %3403 = vmatpush1.bf16.msra.mxu0 0
    %3404 = vmatprep.subr.bf16.mxu0 0
    %3405 = vmatpush1.bf16.msra.mxu0 0
    %3406 = vmatprep.subr.bf16.mxu0 0
    %3407 = vmatpush1.bf16.msra.mxu0 0
    %3408 = vmatprep.subr.bf16.mxu0 0
    %3409 = vmatpush1.bf16.msra.mxu0 0
    %3410 = vmatprep.subr.bf16.mxu0 0
    %3411 = vmatpush1.bf16.msra.mxu0 0
    %3412 = vmatprep.subr.bf16.mxu0 0
    %3413 = vmatpush1.bf16.msra.mxu0 %v3332
    %3414 = vmatprep.subr.bf16.mxu0 0
    %3415 = vmatpush1.bf16.msra.mxu0 %v3331
    %3416 = vmatprep.subr.bf16.mxu0 0
    %3417 = vmatpush2.bf16.msra.mxu0 0
    %3418 = vmatprep.subr.bf16.mxu0 0
    %3419 = vmatpush2.bf16.msra.mxu0 0
    %3420 = vmatprep.subr.bf16.mxu0 0
    %3421 = vmatpush2.bf16.msra.mxu0 0
    %3422 = vmatprep.subr.bf16.mxu0 0
    %3423 = vmatpush2.bf16.msra.mxu0 0
    %3424 = vmatprep.subr.bf16.mxu0 0
    %3425 = vmatpush2.bf16.msra.mxu0 0
    %3426 = vmatprep.subr.bf16.mxu0 0
    %3427 = vmatpush2.bf16.msra.mxu0 0
    %3428 = vmatprep.subr.bf16.mxu0 0
    %3429 = vmatpush2.bf16.msra.mxu0 0
    %3430 = vmatprep.subr.bf16.mxu0 0
    %3431 = vmatpush2.bf16.msra.mxu0 0
    %3432 = vmatprep.mubr.bf16.mxu0 0
    %3433 = vmatmul.mubr.bf16.gmra.mxu0 %v3398
    %v3434 = vpop.f32.mrf.mxu0
    %v3435 = vadd.f32 %v3338, %v3434
    %v3436 = vpop.f32.mrf.mxu0
    %v3437 = vpop.f32.mrf.mxu0
    %v3438 = vadd.f32 %v3338, %v3437
    %v3439 = vpop.f32.mrf.mxu0
    %3440 = vdwg.mxu0
    %s3441 = scalar_lea.vmem [#allocation4], 16
    %3442 = vst.msk [vmem:[%s3441] sm:$0xff] %vm3389, %v3435
    %3443 = vst.msk [vmem:[%s3441 + $0x8] sm:$0xff] %vm3389, %v3438
    %v3444 = vld [vmem:[%s267] sm:$0xff]
    %v3445 = vld [vmem:[%s267 + $0x8] sm:$0xff]
    %v3446 = vtanh.pop %v3444
    %v3447 = vtanh.pop %v3445
    %v3448 = vpack.c.bf16 %v3447, %v3446
    %v3450 = vsel %vm161, %v3448, 0
    %3452 = vmatprep.subr.bf16.mxu0 0
    %3453 = vmatpush1.bf16.msra.mxu0 0
    %3454 = vmatprep.subr.bf16.mxu0 0
    %3455 = vmatpush1.bf16.msra.mxu0 0
    %3456 = vmatprep.subr.bf16.mxu0 0
    %3457 = vmatpush1.bf16.msra.mxu0 0
    %3458 = vmatprep.subr.bf16.mxu0 0
    %3459 = vmatpush1.bf16.msra.mxu0 0
    %3460 = vmatprep.subr.bf16.mxu0 0
    %3461 = vmatpush1.bf16.msra.mxu0 0
    %3462 = vmatprep.subr.bf16.mxu0 0
    %3463 = vmatpush1.bf16.msra.mxu0 0
    %3464 = vmatprep.subr.bf16.mxu0 0
    %3465 = vmatpush1.bf16.msra.mxu0 %v3332
    %3466 = vmatprep.subr.bf16.mxu0 0
    %3467 = vmatpush1.bf16.msra.mxu0 %v3331
    %3468 = vmatprep.subr.bf16.mxu0 0
    %3469 = vmatpush2.bf16.msra.mxu0 0
    %3470 = vmatprep.subr.bf16.mxu0 0
    %3471 = vmatpush2.bf16.msra.mxu0 0
    %3472 = vmatprep.subr.bf16.mxu0 0
    %3473 = vmatpush2.bf16.msra.mxu0 0
    %3474 = vmatprep.subr.bf16.mxu0 0
    %3475 = vmatpush2.bf16.msra.mxu0 0
    %3476 = vmatprep.subr.bf16.mxu0 0
    %3477 = vmatpush2.bf16.msra.mxu0 0
    %3478 = vmatprep.subr.bf16.mxu0 0
    %3479 = vmatpush2.bf16.msra.mxu0 0
    %3480 = vmatprep.subr.bf16.mxu0 0
    %3481 = vmatpush2.bf16.msra.mxu0 0
    %3482 = vmatprep.subr.bf16.mxu0 0
    %3483 = vmatpush2.bf16.msra.mxu0 0
    %3484 = vmatprep.mubr.bf16.mxu0 0
    %3485 = vmatmul.mubr.bf16.gmra.mxu0 %v3450
    %v3486 = vpop.f32.mrf.mxu0
    %v3487 = vadd.f32 %v3338, %v3486
    %v3488 = vpop.f32.mrf.mxu0
    %v3489 = vpop.f32.mrf.mxu0
    %v3490 = vadd.f32 %v3338, %v3489
    %v3491 = vpop.f32.mrf.mxu0
    %3492 = vdwg.mxu0
    %s3493 = scalar_lea.vmem [#allocation4], 32
    %3494 = vst.msk [vmem:[%s3493] sm:$0xff] %vm3389, %v3487
    %3495 = vst.msk [vmem:[%s3493 + $0x8] sm:$0xff] %vm3389, %v3490
    %v3496 = vld [vmem:[%s320] sm:$0xff]
    %v3497 = vld [vmem:[%s320 + $0x8] sm:$0xff]
    %v3498 = vtanh.pop %v3496
    %v3499 = vtanh.pop %v3497
    %v3500 = vpack.c.bf16 %v3499, %v3498
    %v3502 = vsel %vm161, %v3500, 0
    %3504 = vmatprep.subr.bf16.mxu0 0
    %3505 = vmatpush1.bf16.msra.mxu0 0
    %3506 = vmatprep.subr.bf16.mxu0 0
    %3507 = vmatpush1.bf16.msra.mxu0 0
    %3508 = vmatprep.subr.bf16.mxu0 0
    %3509 = vmatpush1.bf16.msra.mxu0 0
    %3510 = vmatprep.subr.bf16.mxu0 0
    %3511 = vmatpush1.bf16.msra.mxu0 0
    %3512 = vmatprep.subr.bf16.mxu0 0
    %3513 = vmatpush1.bf16.msra.mxu0 0
    %3514 = vmatprep.subr.bf16.mxu0 0
    %3515 = vmatpush1.bf16.msra.mxu0 0
    %3516 = vmatprep.subr.bf16.mxu0 0
    %3517 = vmatpush1.bf16.msra.mxu0 %v3332
    %3518 = vmatprep.subr.bf16.mxu0 0
    %3519 = vmatpush1.bf16.msra.mxu0 %v3331
    %3520 = vmatprep.subr.bf16.mxu0 0
    %3521 = vmatpush2.bf16.msra.mxu0 0
    %3522 = vmatprep.subr.bf16.mxu0 0
    %3523 = vmatpush2.bf16.msra.mxu0 0
    %3524 = vmatprep.subr.bf16.mxu0 0
    %3525 = vmatpush2.bf16.msra.mxu0 0
    %3526 = vmatprep.subr.bf16.mxu0 0
    %3527 = vmatpush2.bf16.msra.mxu0 0
    %3528 = vmatprep.subr.bf16.mxu0 0
    %3529 = vmatpush2.bf16.msra.mxu0 0
    %3530 = vmatprep.subr.bf16.mxu0 0
    %3531 = vmatpush2.bf16.msra.mxu0 0
    %3532 = vmatprep.subr.bf16.mxu0 0
    %3533 = vmatpush2.bf16.msra.mxu0 0
    %3534 = vmatprep.subr.bf16.mxu0 0
    %3535 = vmatpush2.bf16.msra.mxu0 0
    %3536 = vmatprep.mubr.bf16.mxu0 0
    %3537 = vmatmul.mubr.bf16.gmra.mxu0 %v3502
    %v3538 = vpop.f32.mrf.mxu0
    %v3539 = vadd.f32 %v3338, %v3538
    %v3540 = vpop.f32.mrf.mxu0
    %v3541 = vpop.f32.mrf.mxu0
    %v3542 = vadd.f32 %v3338, %v3541
    %v3543 = vpop.f32.mrf.mxu0
    %3544 = vdwg.mxu0
    %s3545 = scalar_lea.vmem [#allocation4], 48
    %3546 = vst.msk [vmem:[%s3545] sm:$0xff] %vm3389, %v3539
    %3547 = vst.msk [vmem:[%s3545 + $0x8] sm:$0xff] %vm3389, %v3542
    %v3548 = vld [vmem:[%s373] sm:$0xff]
    %v3549 = vld [vmem:[%s373 + $0x8] sm:$0xff]
    %v3550 = vtanh.pop %v3548
    %v3551 = vtanh.pop %v3549
    %v3552 = vpack.c.bf16 %v3551, %v3550
    %v3554 = vsel %vm161, %v3552, 0
    %3556 = vmatprep.subr.bf16.mxu0 0
    %3557 = vmatpush1.bf16.msra.mxu0 0
    %3558 = vmatprep.subr.bf16.mxu0 0
    %3559 = vmatpush1.bf16.msra.mxu0 0
    %3560 = vmatprep.subr.bf16.mxu0 0
    %3561 = vmatpush1.bf16.msra.mxu0 0
    %3562 = vmatprep.subr.bf16.mxu0 0
    %3563 = vmatpush1.bf16.msra.mxu0 0
    %3564 = vmatprep.subr.bf16.mxu0 0
    %3565 = vmatpush1.bf16.msra.mxu0 0
    %3566 = vmatprep.subr.bf16.mxu0 0
    %3567 = vmatpush1.bf16.msra.mxu0 0
    %3568 = vmatprep.subr.bf16.mxu0 0
    %3569 = vmatpush1.bf16.msra.mxu0 %v3332
    %3570 = vmatprep.subr.bf16.mxu0 0
    %3571 = vmatpush1.bf16.msra.mxu0 %v3331
    %3572 = vmatprep.subr.bf16.mxu0 0
    %3573 = vmatpush2.bf16.msra.mxu0 0
    %3574 = vmatprep.subr.bf16.mxu0 0
    %3575 = vmatpush2.bf16.msra.mxu0 0
    %3576 = vmatprep.subr.bf16.mxu0 0
    %3577 = vmatpush2.bf16.msra.mxu0 0
    %3578 = vmatprep.subr.bf16.mxu0 0
    %3579 = vmatpush2.bf16.msra.mxu0 0
    %3580 = vmatprep.subr.bf16.mxu0 0
    %3581 = vmatpush2.bf16.msra.mxu0 0
    %3582 = vmatprep.subr.bf16.mxu0 0
    %3583 = vmatpush2.bf16.msra.mxu0 0
    %3584 = vmatprep.subr.bf16.mxu0 0
    %3585 = vmatpush2.bf16.msra.mxu0 0
    %3586 = vmatprep.subr.bf16.mxu0 0
    %3587 = vmatpush2.bf16.msra.mxu0 0
    %3588 = vmatprep.mubr.bf16.mxu0 0
    %3589 = vmatmul.mubr.bf16.gmra.mxu0 %v3554
    %v3590 = vpop.f32.mrf.mxu0
    %v3591 = vadd.f32 %v3338, %v3590
    %v3592 = vpop.f32.mrf.mxu0
    %v3593 = vpop.f32.mrf.mxu0
    %v3594 = vadd.f32 %v3338, %v3593
    %v3595 = vpop.f32.mrf.mxu0
    %3596 = vdwg.mxu0
    %s3597 = scalar_lea.vmem [#allocation4], 64
    %3598 = vst.msk [vmem:[%s3597] sm:$0xff] %vm3389, %v3591
    %3599 = vst.msk [vmem:[%s3597 + $0x8] sm:$0xff] %vm3389, %v3594
    %v3600 = vld [vmem:[%s426] sm:$0xff]
    %v3601 = vld [vmem:[%s426 + $0x8] sm:$0xff]
    %v3602 = vtanh.pop %v3600
    %v3603 = vtanh.pop %v3601
    %v3604 = vpack.c.bf16 %v3603, %v3602
    %v3606 = vsel %vm161, %v3604, 0
    %3608 = vmatprep.subr.bf16.mxu0 0
    %3609 = vmatpush1.bf16.msra.mxu0 0
    %3610 = vmatprep.subr.bf16.mxu0 0
    %3611 = vmatpush1.bf16.msra.mxu0 0
    %3612 = vmatprep.subr.bf16.mxu0 0
    %3613 = vmatpush1.bf16.msra.mxu0 0
    %3614 = vmatprep.subr.bf16.mxu0 0
    %3615 = vmatpush1.bf16.msra.mxu0 0
    %3616 = vmatprep.subr.bf16.mxu0 0
    %3617 = vmatpush1.bf16.msra.mxu0 0
    %3618 = vmatprep.subr.bf16.mxu0 0
    %3619 = vmatpush1.bf16.msra.mxu0 0
    %3620 = vmatprep.subr.bf16.mxu0 0
    %3621 = vmatpush1.bf16.msra.mxu0 %v3332
    %3622 = vmatprep.subr.bf16.mxu0 0
    %3623 = vmatpush1.bf16.msra.mxu0 %v3331
    %3624 = vmatprep.subr.bf16.mxu0 0
    %3625 = vmatpush2.bf16.msra.mxu0 0
    %3626 = vmatprep.subr.bf16.mxu0 0
    %3627 = vmatpush2.bf16.msra.mxu0 0
    %3628 = vmatprep.subr.bf16.mxu0 0
    %3629 = vmatpush2.bf16.msra.mxu0 0
    %3630 = vmatprep.subr.bf16.mxu0 0
    %3631 = vmatpush2.bf16.msra.mxu0 0
    %3632 = vmatprep.subr.bf16.mxu0 0
    %3633 = vmatpush2.bf16.msra.mxu0 0
    %3634 = vmatprep.subr.bf16.mxu0 0
    %3635 = vmatpush2.bf16.msra.mxu0 0
    %3636 = vmatprep.subr.bf16.mxu0 0
    %3637 = vmatpush2.bf16.msra.mxu0 0
    %3638 = vmatprep.subr.bf16.mxu0 0
    %3639 = vmatpush2.bf16.msra.mxu0 0
    %3640 = vmatprep.mubr.bf16.mxu0 0
    %3641 = vmatmul.mubr.bf16.gmra.mxu0 %v3606
    %v3642 = vpop.f32.mrf.mxu0
    %v3643 = vadd.f32 %v3338, %v3642
    %v3644 = vpop.f32.mrf.mxu0
    %v3645 = vpop.f32.mrf.mxu0
    %v3646 = vadd.f32 %v3338, %v3645
    %v3647 = vpop.f32.mrf.mxu0
    %3648 = vdwg.mxu0
    %s3649 = scalar_lea.vmem [#allocation4], 80
    %3650 = vst.msk [vmem:[%s3649] sm:$0xff] %vm3389, %v3643
    %3651 = vst.msk [vmem:[%s3649 + $0x8] sm:$0xff] %vm3389, %v3646
    %v3652 = vld [vmem:[%s479] sm:$0xff]
    %v3653 = vld [vmem:[%s479 + $0x8] sm:$0xff]
    %v3654 = vtanh.pop %v3652
    %v3655 = vtanh.pop %v3653
    %v3656 = vpack.c.bf16 %v3655, %v3654
    %v3658 = vsel %vm161, %v3656, 0
    %3660 = vmatprep.subr.bf16.mxu0 0
    %3661 = vmatpush1.bf16.msra.mxu0 0
    %3662 = vmatprep.subr.bf16.mxu0 0
    %3663 = vmatpush1.bf16.msra.mxu0 0
    %3664 = vmatprep.subr.bf16.mxu0 0
    %3665 = vmatpush1.bf16.msra.mxu0 0
    %3666 = vmatprep.subr.bf16.mxu0 0
    %3667 = vmatpush1.bf16.msra.mxu0 0
    %3668 = vmatprep.subr.bf16.mxu0 0
    %3669 = vmatpush1.bf16.msra.mxu0 0
    %3670 = vmatprep.subr.bf16.mxu0 0
    %3671 = vmatpush1.bf16.msra.mxu0 0
    %3672 = vmatprep.subr.bf16.mxu0 0
    %3673 = vmatpush1.bf16.msra.mxu0 %v3332
    %3674 = vmatprep.subr.bf16.mxu0 0
    %3675 = vmatpush1.bf16.msra.mxu0 %v3331
    %3676 = vmatprep.subr.bf16.mxu0 0
    %3677 = vmatpush2.bf16.msra.mxu0 0
    %3678 = vmatprep.subr.bf16.mxu0 0
    %3679 = vmatpush2.bf16.msra.mxu0 0
    %3680 = vmatprep.subr.bf16.mxu0 0
    %3681 = vmatpush2.bf16.msra.mxu0 0
    %3682 = vmatprep.subr.bf16.mxu0 0
    %3683 = vmatpush2.bf16.msra.mxu0 0
    %3684 = vmatprep.subr.bf16.mxu0 0
    %3685 = vmatpush2.bf16.msra.mxu0 0
    %3686 = vmatprep.subr.bf16.mxu0 0
    %3687 = vmatpush2.bf16.msra.mxu0 0
    %3688 = vmatprep.subr.bf16.mxu0 0
    %3689 = vmatpush2.bf16.msra.mxu0 0
    %3690 = vmatprep.subr.bf16.mxu0 0
    %3691 = vmatpush2.bf16.msra.mxu0 0
    %3692 = vmatprep.mubr.bf16.mxu0 0
    %3693 = vmatmul.mubr.bf16.gmra.mxu0 %v3658
    %v3694 = vpop.f32.mrf.mxu0
    %v3695 = vadd.f32 %v3338, %v3694
    %v3696 = vpop.f32.mrf.mxu0
    %v3697 = vpop.f32.mrf.mxu0
    %v3698 = vadd.f32 %v3338, %v3697
    %v3699 = vpop.f32.mrf.mxu0
    %3700 = vdwg.mxu0
    %s3701 = scalar_lea.vmem [#allocation4], 96
    %3702 = vst.msk [vmem:[%s3701] sm:$0xff] %vm3389, %v3695
    %3703 = vst.msk [vmem:[%s3701 + $0x8] sm:$0xff] %vm3389, %v3698
    %v3704 = vld [vmem:[%s532] sm:$0xff]
    %v3705 = vld [vmem:[%s532 + $0x8] sm:$0xff]
    %v3706 = vtanh.pop %v3704
    %v3707 = vtanh.pop %v3705
    %v3708 = vpack.c.bf16 %v3707, %v3706
    %v3710 = vsel %vm161, %v3708, 0
    %3712 = vmatprep.subr.bf16.mxu0 0
    %3713 = vmatpush1.bf16.msra.mxu0 0
    %3714 = vmatprep.subr.bf16.mxu0 0
    %3715 = vmatpush1.bf16.msra.mxu0 0
    %3716 = vmatprep.subr.bf16.mxu0 0
    %3717 = vmatpush1.bf16.msra.mxu0 0
    %3718 = vmatprep.subr.bf16.mxu0 0
    %3719 = vmatpush1.bf16.msra.mxu0 0
    %3720 = vmatprep.subr.bf16.mxu0 0
    %3721 = vmatpush1.bf16.msra.mxu0 0
    %3722 = vmatprep.subr.bf16.mxu0 0
    %3723 = vmatpush1.bf16.msra.mxu0 0
    %3724 = vmatprep.subr.bf16.mxu0 0
    %3725 = vmatpush1.bf16.msra.mxu0 %v3332
    %3726 = vmatprep.subr.bf16.mxu0 0
    %3727 = vmatpush1.bf16.msra.mxu0 %v3331
    %3728 = vmatprep.subr.bf16.mxu0 0
    %3729 = vmatpush2.bf16.msra.mxu0 0
    %3730 = vmatprep.subr.bf16.mxu0 0
    %3731 = vmatpush2.bf16.msra.mxu0 0
    %3732 = vmatprep.subr.bf16.mxu0 0
    %3733 = vmatpush2.bf16.msra.mxu0 0
    %3734 = vmatprep.subr.bf16.mxu0 0
    %3735 = vmatpush2.bf16.msra.mxu0 0
    %3736 = vmatprep.subr.bf16.mxu0 0
    %3737 = vmatpush2.bf16.msra.mxu0 0
    %3738 = vmatprep.subr.bf16.mxu0 0
    %3739 = vmatpush2.bf16.msra.mxu0 0
    %3740 = vmatprep.subr.bf16.mxu0 0
    %3741 = vmatpush2.bf16.msra.mxu0 0
    %3742 = vmatprep.subr.bf16.mxu0 0
    %3743 = vmatpush2.bf16.msra.mxu0 0
    %3744 = vmatprep.mubr.bf16.mxu0 0
    %3745 = vmatmul.mubr.bf16.gmra.mxu0 %v3710
    %v3746 = vpop.f32.mrf.mxu0
    %v3747 = vadd.f32 %v3338, %v3746
    %v3748 = vpop.f32.mrf.mxu0
    %v3749 = vpop.f32.mrf.mxu0
    %v3750 = vadd.f32 %v3338, %v3749
    %v3751 = vpop.f32.mrf.mxu0
    %3752 = vdwg.mxu0
    %s3753 = scalar_lea.vmem [#allocation4], 112
    %3754 = vst.msk [vmem:[%s3753] sm:$0xff] %vm3389, %v3747
    %3755 = vst.msk [vmem:[%s3753 + $0x8] sm:$0xff] %vm3389, %v3750
    // Predicated region
    $region50: #{tpu_custom_call.1} parent=1 // pred_check
      _
    $region51: #{tpu_custom_call.1} parent=1 // pred_check_branch
      %3757 = sbr.rel (0) target = $region53
    $region52: #{tpu_custom_call.1} parent=1 // pred_region
      %s3759 = ssub.s32 2048, 2048
      %3760 = vsyncadd [#allocation5], %s3759
      %s3761 = sshll.u32 [#allocation4], 4
      %s3762 = int_to_ptr.vmem [resolvable:$true] %s3761
      %3767 = dma.vmem_to_hbm [thread:$0]  %s3762, 2048, %s12, [#allocation5], 128, 128, 8
    $region53: #{tpu_custom_call.1} parent=1 // pred_fallthru
      _
    // Predicated region
    $region54: #{tpu_custom_call.1} parent=1 // pred_check
      _
    $region55: #{tpu_custom_call.1} parent=1 // pred_check_branch
      %3769 = sbr.rel (0) target = $region57
    $region56: #{tpu_custom_call.1} parent=1 // pred_region
      %s3771 = ssub.s32 512, 512
      %3772 = vsyncadd [#allocation7], %s3771
      %s3773 = sshll.u32 [#allocation6], 4
      %s3774 = int_to_ptr.vmem [resolvable:$true] %s3773
      %3779 = dma.vmem_to_hbm [thread:$0]  %s3774, 512, %s13, [#allocation7], 128, 128, 8
    $region57: #{tpu_custom_call.1} parent=1 // pred_fallthru
      _
    // Predicated region
    $region58: #{tpu_custom_call.1} parent=1 // pred_check
      _
    $region59: #{tpu_custom_call.1} parent=1 // pred_check_branch
      %3781 = sbr.rel (0) target = $region61
    $region60: #{tpu_custom_call.1} parent=1 // pred_region
      %3782 = dma.done [#allocation5], 2048
    $region61: #{tpu_custom_call.1} parent=1 // pred_fallthru
      _
    // Predicated region
    $region62: #{tpu_custom_call.1} parent=1 // pred_check
      _
    $region63: #{tpu_custom_call.1} parent=1 // pred_check_branch
      %3784 = sbr.rel (0) target = $region65
    $region64: #{tpu_custom_call.1} parent=1 // pred_region
      %3785 = dma.done [#allocation7], 512
    $region65: #{tpu_custom_call.1} parent=1 // pred_fallthru
      _
    %3786 = vsyncpa [#allocation5], 1
    %3787 = vsyncpa [#allocation7], 1

</llo_original>
